<compile_context>
chip_gen: v7x
topology: tpu7x:2x2x1
jax: 0.10.0
libtpu: 0.0.40
codegen_flags: <defaults>
</compile_context>

<pallas_src>
import functools
import math

import numpy as np
import jax
import jax.numpy as jnp
from jax.experimental import pallas as pl
from jax.experimental.pallas import tpu as pltpu

F32 = jnp.float32
BF16 = jnp.bfloat16
VMEM_SPEC = pl.BlockSpec(memory_space=pltpu.MemorySpace.VMEM)


def _cparams(limit_mb=48):
    # <= 48 MiB so it also fits v7x's 64 MiB physical VMEM (v5e/v6e have 128 MiB).
    return pltpu.CompilerParams(vmem_limit_bytes=limit_mb * 1024 * 1024)


def _ln_math(x, g, b, eps=1e-5):
    mu = jnp.mean(x, axis=-1, keepdims=True)
    var = jnp.mean((x - mu) ** 2, axis=-1, keepdims=True)
    return (x - mu) * jax.lax.rsqrt(var + eps) * g + b


# ------------------------------------------------------------------ stem kernel
# channel attention + patch-embedding matmul + cls/pos scatter, fully fused.
# All data shuffles are expressed as tiny selection/scatter matmuls (MXU-friendly,
# no in-kernel reshapes/transposes).

def _stem_kernel(patches_ref, msel_ref, selc_ref, caw1_ref, cab1_ref, caw2_ref, cab2_ref,
                 mexp_ref, sele_ref, pew_ref, peb_ref, mscat_ref, mtile_ref, rowadd_ref,
                 o_ref):
    x = patches_ref[...]                                                     # (B*N, C*P*P) f32

    # --- CellularChannelAttention: global avg pool per (batch, channel) via selection matmuls
    pooled_flat = jnp.dot(msel_ref[...], x, preferred_element_type=F32)      # (B, C*P*P)
    pooled = jnp.dot(pooled_flat, selc_ref[...], preferred_element_type=F32)  # (B, C)
    h = jnp.dot(pooled, caw1_ref[...], preferred_element_type=F32) + cab1_ref[...]
    h = jnp.maximum(h, 0.0)
    gate = jax.nn.sigmoid(jnp.dot(h, caw2_ref[...], preferred_element_type=F32) + cab2_ref[...])

    gate_rows = jnp.dot(mexp_ref[...], gate, preferred_element_type=F32)     # (B*N, C)
    gate_full = jnp.dot(gate_rows, sele_ref[...], preferred_element_type=F32)  # (B*N, C*P*P)
    gated = x * gate_full

    # --- patch embedding: Conv2d(k=P, s=P) == one matmul (bf16 weights, f32 accumulate)
    tokens = jnp.dot(gated.astype(pew_ref.dtype), pew_ref[...],
                     preferred_element_type=F32) + peb_ref[...]              # (B*N, D)

    # --- scatter tokens into padded sequence, add cls token + positional embedding
    o_ref[...] = (jnp.dot(mscat_ref[...], tokens, preferred_element_type=F32)
                  + jnp.dot(mtile_ref[...], rowadd_ref[...], preferred_element_type=F32))


# ------------------------------------------------------------------ transformer encoder kernel
# One pallas_call for all L layers: grid=(L,), stacked weights streamed per layer,
# residual stream held in a persistent VMEM scratch.

def _encoder_kernel(x0_ref, ln1g, ln1b, wq, bq, wk, bk, wv, bv, wo, bo,
                    ln2g, ln2b, w1, b1, w2, b2, o_ref, res_ref,
                    *, B, Sp, S, H, hdp, hd):
    l = pl.program_id(0)

    @pl.when(l == 0)
    def _():
        res_ref[...] = x0_ref[...]

    x = res_ref[...]                                                         # (B*Sp, D) f32

    # ---- pre-norm multi-head self-attention (head dim zero-padded to hdp lanes) ----
    xn = _ln_math(x, ln1g[0], ln1b[0])
    xb = xn.astype(wq.dtype)
    q = jnp.dot(xb, wq[0], preferred_element_type=F32) + bq[0]               # (B*Sp, H*hdp)
    k = jnp.dot(xb, wk[0], preferred_element_type=F32) + bk[0]
    v = jnp.dot(xb, wv[0], preferred_element_type=F32) + bv[0]

    scale = 1.0 / math.sqrt(hd)
    kmask = jax.lax.broadcasted_iota(jnp.int32, (Sp, Sp), 1) < S             # mask padded keys

    batch_rows = []
    for bi in range(B):                       # static & tiny -> unrolled at trace time
        rs = slice(bi * Sp, (bi + 1) * Sp)                                   # 8-row aligned
        heads = []
        for hi in range(H):
            cs = slice(hi * hdp, (hi + 1) * hdp)                             # 128-lane aligned
            qh, kh, vh = q[rs, cs], k[rs, cs], v[rs, cs]
            s = jnp.dot(qh, kh.T, preferred_element_type=F32) * scale        # (Sp, Sp)
            s = jnp.where(kmask, s, -1e30)
            s = s - jnp.max(s, axis=-1, keepdims=True)
            p = jnp.exp(s)
            p = p * pl.reciprocal(jnp.sum(p, axis=-1, keepdims=True), approx=True)
            heads.append(jnp.dot(p, vh, preferred_element_type=F32))         # (Sp, hdp)
        batch_rows.append(jnp.concatenate(heads, axis=-1))                   # (Sp, H*hdp)
    ao = jnp.concatenate(batch_rows, axis=0)                                 # (B*Sp, H*hdp)

    attn = jnp.dot(ao.astype(wo.dtype), wo[0], preferred_element_type=F32) + bo[0]
    x1 = x + attn

    # ---- MLP (exact-erf GELU, matching nn.GELU default) ----
    xn2 = _ln_math(x1, ln2g[0], ln2b[0])
    hm = jnp.dot(xn2.astype(w1.dtype), w1[0], preferred_element_type=F32) + b1[0]
    hm = 0.5 * hm * (1.0 + jax.lax.erf(hm * (1.0 / math.sqrt(2.0))))
    h2 = jnp.dot(hm.astype(w2.dtype), w2[0], preferred_element_type=F32) + b2[0]

    new_x = x1 + h2
    res_ref[...] = new_x
    o_ref[...] = new_x


# ------------------------------------------------------------------ fused heads kernel
# final LayerNorm + all projection/prediction heads in one call on the tiny cls features.

def _heads_kernel(x_ref, lng, lnb, mcls,
                  mw1, mb1, mw2, mb2, mw3, mb3,
                  lw1, lb1, lw2, lb2,
                  pw1, pb1, pg1, pbe1, pw2, pb2, pg2, pbe2, pw3, pb3,
                  cw1, cb1, cw2, cb2,
                  hw1, hb1, hw2, hb2,
                  seq_o, morph_o, loc_o, emb_o, cc_o, health_o):
    xn = _ln_math(x_ref[...], lng[...], lnb[...])                            # final encoder LN
    seq_o[...] = xn
    cls = jnp.dot(mcls[...], xn, preferred_element_type=F32)                 # (B, D) cls rows

    def dense(a, w, b, act="none"):
        y = jnp.dot(a.astype(w.dtype), w[...], preferred_element_type=F32) + b[...]
        if act == "relu":
            y = jnp.maximum(y, 0.0)
        elif act == "sigmoid":
            y = jax.nn.sigmoid(y)
        return y

    # morphology_head
    m = dense(cls, mw1, mb1, "relu")
    m = dense(m, mw2, mb2, "relu")
    morph_o[...] = dense(m, mw3, mb3)
    # localization_head
    l1 = dense(cls, lw1, lb1, "relu")
    loc_o[...] = dense(l1, lw2, lb2)
    # morphology_projector: Linear-LN-ReLU -> Linear-LN-ReLU -> Linear
    p1 = jnp.maximum(_ln_math(dense(cls, pw1, pb1), pg1[...], pbe1[...]), 0.0)
    p2 = jnp.maximum(_ln_math(dense(p1, pw2, pb2), pg2[...], pbe2[...]), 0.0)
    emb = dense(p2, pw3, pb3)
    emb_o[...] = emb
    # cell_cycle_head
    c1 = dense(emb, cw1, cb1, "relu")
    cc_o[...] = dense(c1, cw2, cb2)
    # health_scorer
    h1 = dense(emb, hw1, hb1, "relu")
    health_o[...] = dense(h1, hw2, hb2, "sigmoid")


# ------------------------------------------------------------------ params

def init_params(cfg, key):
    C = cfg["num_input_channels"]
    P = cfg["patch_size"]
    D = cfg["hidden_size"]
    L = cfg["num_layers"]
    N = (cfg["img_size"] // P) ** 2
    keys = iter(jax.random.split(key, 128))

    def dense(fi, fo):
        w = jax.random.normal(next(keys), (fi, fo), F32) * 0.02
        return w, jnp.zeros((1, fo), F32)

    def ln(dim):
        return jnp.ones((1, dim), F32), jnp.zeros((1, dim), F32)

    params = {}
    r = max(1, C // 16)
    w1, b1 = dense(C, r)
    w2, b2 = dense(r, C)
    params["channel_attention"] = dict(w1=w1, b1=b1, w2=w2, b2=b2)

    params["pe_w"], params["pe_b"] = dense(C * P * P, D)
    params["pos_embedding"] = jax.random.normal(next(keys), (1, N + 1, D), F32) * 0.02
    params["cls_token"] = jax.random.normal(next(keys), (1, 1, D), F32) * 0.02

    blocks = []
    for _ in range(L):
        ln1_g, ln1_b = ln(D)
        ln2_g, ln2_b = ln(D)
        wq, bq = dense(D, D)
        wk, bk = dense(D, D)
        wv, bv = dense(D, D)
        wo, bo = dense(D, D)
        mw1, mb1 = dense(D, 4 * D)
        mw2, mb2 = dense(4 * D, D)
        blocks.append(dict(ln1_g=ln1_g, ln1_b=ln1_b, wq=wq, bq=bq, wk=wk, bk=bk,
                           wv=wv, bv=bv, wo=wo, bo=bo, ln2_g=ln2_g, ln2_b=ln2_b,
                           w1=mw1, b1=mb1, w2=mw2, b2=mb2))
    params["blocks"] = blocks
    params["ln_g"], params["ln_b"] = ln(D)

    w1, b1 = dense(D, 512); w2, b2 = dense(512, 256); w3, b3 = dense(256, 128)
    params["morphology_head"] = dict(w1=w1, b1=b1, w2=w2, b2=b2, w3=w3, b3=b3)
    w1, b1 = dense(D, 256); w2, b2 = dense(256, 64)
    params["localization_head"] = dict(w1=w1, b1=b1, w2=w2, b2=b2)

    w1, b1 = dense(768, 512); g1, be1 = ln(512)
    w2, b2 = dense(512, 256); g2, be2 = ln(256)
    w3, b3 = dense(256, 128)
    params["morphology_projector"] = dict(w1=w1, b1=b1, ln1_g=g1, ln1_b=be1,
                                          w2=w2, b2=b2, ln2_g=g2, ln2_b=be2,
                                          w3=w3, b3=b3)
    w1, b1 = dense(128, 64); w2, b2 = dense(64, 5)
    params["cell_cycle_head"] = dict(w1=w1, b1=b1, w2=w2, b2=b2)
    w1, b1 = dense(128, 64); w2, b2 = dense(64, 1)
    params["health_scorer"] = dict(w1=w1, b1=b1, w2=w2, b2=b2)
    return params


def prepare_params(params, cfg):
    """One-time prep: bf16 weights, head-dim lane padding, per-layer weight stacking."""
    D = cfg["hidden_size"]
    H = cfg["num_heads"]
    P = cfg["patch_size"]
    N = (cfg["img_size"] // P) ** 2
    Sp = max(8, ((N + 1 + 7) // 8) * 8)          # sequence padded to a sublane multiple
    hd = D // H
    hdp = ((hd + 127) // 128) * 128              # per-head width padded to a lane multiple

    def pad_cols(w):   # (D, D) head-major columns -> (D, H*hdp), zero-padded lanes
        w3 = w.reshape(D, H, hd)
        return jnp.pad(w3, ((0, 0), (0, 0), (0, hdp - hd))).reshape(D, H * hdp)

    def pad_rows(w):   # (D, D) head-major rows -> (H*hdp, D), zero-padded rows
        w3 = w.reshape(H, hd, D)
        return jnp.pad(w3, ((0, 0), (0, hdp - hd), (0, 0))).reshape(H * hdp, D)

    def pad_bias(b):   # (1, D) -> (1, H*hdp)
        b3 = b.reshape(1, H, hd)
        return jnp.pad(b3, ((0, 0), (0, 0), (0, hdp - hd))).reshape(1, H * hdp)

    blks = params["blocks"]
    stack = lambda f, name: jnp.stack([f(blk[name]) for blk in blks])
    ident = lambda a: a
    tobf = lambda a: a.astype(BF16)
    enc = dict(
        ln1_g=stack(ident, "ln1_g"), ln1_b=stack(ident, "ln1_b"),
        wq=stack(lambda w: pad_cols(w).astype(BF16), "wq"), bq=stack(pad_bias, "bq"),
        wk=stack(lambda w: pad_cols(w).astype(BF16), "wk"), bk=stack(pad_bias, "bk"),
        wv=stack(lambda w: pad_cols(w).astype(BF16), "wv"), bv=stack(pad_bias, "bv"),
        wo=stack(lambda w: pad_rows(w).astype(BF16), "wo"), bo=stack(ident, "bo"),
        ln2_g=stack(ident, "ln2_g"), ln2_b=stack(ident, "ln2_b"),
        w1=stack(tobf, "w1"), b1=stack(ident, "b1"),
        w2=stack(tobf, "w2"), b2=stack(ident, "b2"),
    )

    pos = params["pos_embedding"][0]             # (N+1, D)
    cls = params["cls_token"][0]                 # (1, D)
    rowadd = jnp.zeros((Sp, D), F32)
    rowadd = rowadd.at[0:1].set(cls + pos[0:1])
    rowadd = rowadd.at[1:N + 1].set(pos[1:])

    stem = dict(ca=params["channel_attention"],
                pe_w=params["pe_w"].astype(BF16), pe_b=params["pe_b"], rowadd=rowadd)

    def head_bf16(d):
        return {k: (v.astype(BF16) if k.startswith("w") else v) for k, v in d.items()}

    heads = dict(ln_g=params["ln_g"], ln_b=params["ln_b"],
                 morph=head_bf16(params["morphology_head"]),
                 loc=head_bf16(params["localization_head"]),
                 proj=head_bf16(params["morphology_projector"]),
                 cc=head_bf16(params["cell_cycle_head"]),
                 hs=head_bf16(params["health_scorer"]))
    return dict(enc=enc, stem=stem, heads=heads, Sp=Sp, hdp=hdp, hd=hd, N=N)


# ------------------------------------------------------------------ forward

def encoder_forward(x, prep, cfg):
    B, C, Him, Wim = x.shape
    P = cfg["patch_size"]
    D = cfg["hidden_size"]
    H = cfg["num_heads"]
    L = cfg["num_layers"]
    nH, nW = Him // P, Wim // P
    N = nH * nW
    Sp, hdp, hd = prep["Sp"], prep["hdp"], prep["hd"]
    PP = P * P
    CPP = C * PP
    BN, BSp = B * N, B * Sp

    # im2col for the stride==kernel Conv2d (pure layout op, done once in XLA)
    patches = (x.reshape(B, C, nH, P, nW, P)
                 .transpose(0, 2, 4, 1, 3, 5)
                 .reshape(BN, CPP))

    # static selection / scatter matrices (host-side constants, tiny)
    rr, bb = np.arange(BN), np.arange(B)
    msel = (rr[None, :] // N == bb[:, None]).astype(np.float32) / N          # (B, BN)
    mexp = (rr[:, None] // N == bb[None, :]).astype(np.float32)              # (BN, B)
    jj, cc = np.arange(CPP), np.arange(C)
    selc = (jj[:, None] // PP == cc[None, :]).astype(np.float32) / PP        # (CPP, C)
    sele = (cc[:, None] == jj[None, :] // PP).astype(np.float32)             # (C, CPP)
    RR, TT = np.arange(BSp), np.arange(BN)
    mscat = ((RR[:, None] // Sp == TT[None, :] // N) &
             (RR[:, None] % Sp == TT[None, :] % N + 1)).astype(np.float32)   # (BSp, BN)
    mtile = (RR[:, None] % Sp == np.arange(Sp)[None, :]).astype(np.float32)  # (BSp, Sp)
    mcls = ((np.arange(B) * Sp)[:, None] == RR[None, :]).astype(np.float32)  # (B, BSp)

    # ---- 1. stem ----
    st = prep["stem"]
    ca = st["ca"]
    seq0 = pl.pallas_call(
        _stem_kernel,
        out_shape=jax.ShapeDtypeStruct((BSp, D), F32),
        in_specs=[VMEM_SPEC] * 14,
        out_specs=VMEM_SPEC,
        compiler_params=_cparams(),
    )(patches, msel, selc, ca["w1"], ca["b1"], ca["w2"], ca["b2"],
      mexp, sele, st["pe_w"], st["pe_b"], mscat, mtile, st["rowadd"])

    # ---- 2. transformer encoder: all L layers in one call, weights streamed per layer ----
    e = prep["enc"]
    enc_in = [e["ln1_g"], e["ln1_b"], e["wq"], e["bq"], e["wk"], e["bk"], e["wv"], e["bv"],
              e["wo"], e["bo"], e["ln2_g"], e["ln2_b"], e["w1"], e["b1"], e["w2"], e["b2"]]
    in_specs = ([pl.BlockSpec((BSp, D), lambda l: (0, 0))]
                + [pl.BlockSpec((1,) + a.shape[1:], lambda l: (l, 0, 0)) for a in enc_in])
    seq_enc = pl.pallas_call(
        functools.partial(_encoder_kernel, B=B, Sp=Sp, S=N + 1, H=H, hdp=hdp, hd=hd),
        out_shape=jax.ShapeDtypeStruct((BSp, D), F32),
        grid=(L,),
        in_specs=in_specs,
        out_specs=pl.BlockSpec((BSp, D), lambda l: (0, 0)),
        scratch_shapes=[pltpu.VMEM((BSp, D), F32)],
        compiler_params=pltpu.CompilerParams(
            dimension_semantics=("arbitrary",),
            vmem_limit_bytes=48 * 1024 * 1024),
    )(seq0, *enc_in)

    # ---- 3. fused heads ----
    hp = prep["heads"]
    mh, lh, pj, cch, hsh = hp["morph"], hp["loc"], hp["proj"], hp["cc"], hp["hs"]
    heads_args = (seq_enc, hp["ln_g"], hp["ln_b"], mcls,
                  mh["w1"], mh["b1"], mh["w2"], mh["b2"], mh["w3"], mh["b3"],
                  lh["w1"], lh["b1"], lh["w2"], lh["b2"],
                  pj["w1"], pj["b1"], pj["ln1_g"], pj["ln1_b"],
                  pj["w2"], pj["b2"], pj["ln2_g"], pj["ln2_b"], pj["w3"], pj["b3"],
                  cch["w1"], cch["b1"], cch["w2"], cch["b2"],
                  hsh["w1"], hsh["b1"], hsh["w2"], hsh["b2"])
    seq_norm, morph_feat, loc_feat, morph_emb, cc_logits, health = pl.pallas_call(
        _heads_kernel,
        out_shape=(jax.ShapeDtypeStruct((BSp, D), F32),
                   jax.ShapeDtypeStruct((B, 128), F32),
                   jax.ShapeDtypeStruct((B, 64), F32),
                   jax.ShapeDtypeStruct((B, 128), F32),
                   jax.ShapeDtypeStruct((B, 5), F32),
                   jax.ShapeDtypeStruct((B, 1), F32)),
        in_specs=[VMEM_SPEC] * len(heads_args),
        out_specs=(VMEM_SPEC,) * 6,
        compiler_params=_cparams(),
    )(*heads_args)

    seq3 = seq_norm.reshape(B, Sp, D)
    cls_tok = seq3[:, 0]               # (B, D)
    patch_features = seq3[:, 1:N + 1]  # (B, N, D) — padded rows dropped

    raw = dict(embeddings=cls_tok,
               patch_features=patch_features,
               morphology_features=morph_feat,
               localization_features=loc_feat)
    return dict(morphology_embedding=morph_emb,
                cell_cycle_logits=cc_logits,
                health_score=health,
                raw_features=raw)


# ------------------------------------------------------------------ main

if __name__ == "__main__":
    cfg = dict(img_size=32, patch_size=16, hidden_size=768, num_layers=2,
               num_heads=8, num_input_channels=4,
               channel_attention=True, use_spatial_attention=False)

    key = jax.random.PRNGKey(0)
    pkey, xkey = jax.random.split(key)
    params = init_params(cfg, pkey)
    prep = prepare_params(params, cfg)

    x = jax.random.normal(xkey, (2, cfg["num_input_channels"],
                                 cfg["img_size"], cfg["img_size"]), F32)

    out = encoder_forward(x, prep, cfg)
    out = jax.block_until_ready(out)

    assert out["morphology_embedding"].shape == (2, 128)
    assert out["cell_cycle_logits"].shape == (2, 5)
    assert out["health_score"].shape == (2, 1)
    assert out["raw_features"]["embeddings"].shape == (2, 768)
    assert out["raw_features"]["patch_features"].shape == (2, 4, 768)
    assert out["raw_features"]["morphology_features"].shape == (2, 128)
    assert out["raw_features"]["localization_features"].shape == (2, 64)
    for v in jax.tree_util.tree_leaves(out):
        assert bool(jnp.all(jnp.isfinite(v)))
    print("KERNEL_OK")
</pallas_src>

<mosaic_0001>
module attributes {stable_mosaic.version = 11 : i64} {
  func.func @_stem_kernel(%arg0: memref<8x1024xf32, #tpu.memory_space<vmem>>, %arg1: memref<2x8xf32, #tpu.memory_space<vmem>>, %arg2: memref<1024x4xf32, #tpu.memory_space<vmem>>, %arg3: memref<4x1xf32, #tpu.memory_space<vmem>>, %arg4: memref<1x1xf32, #tpu.memory_space<vmem>>, %arg5: memref<1x4xf32, #tpu.memory_space<vmem>>, %arg6: memref<1x4xf32, #tpu.memory_space<vmem>>, %arg7: memref<8x2xf32, #tpu.memory_space<vmem>>, %arg8: memref<4x1024xf32, #tpu.memory_space<vmem>>, %arg9: memref<1024x768xbf16, #tpu.memory_space<vmem>>, %arg10: memref<1x768xf32, #tpu.memory_space<vmem>>, %arg11: memref<16x8xf32, #tpu.memory_space<vmem>>, %arg12: memref<16x8xf32, #tpu.memory_space<vmem>>, %arg13: memref<8x768xf32, #tpu.memory_space<vmem>>, %arg14: memref<16x768xf32, #tpu.memory_space<vmem>>) attributes {dimension_semantics = [], scalar_prefetch = 0 : i64, scratch_operands = 0 : i64, tpu.core_type = #tpu.core_type<tc>} {
    %c0 = arith.constant 0 : index
    %c0_0 = arith.constant 0 : index
    %0 = vector.load %arg0[%c0, %c0_0] : memref<8x1024xf32, #tpu.memory_space<vmem>>, vector<8x1024xf32>
    %c0_1 = arith.constant 0 : index
    %c0_2 = arith.constant 0 : index
    %1 = vector.load %arg1[%c0_1, %c0_2] : memref<2x8xf32, #tpu.memory_space<vmem>>, vector<2x8xf32>
    %cst = arith.constant dense<0.000000e+00> : vector<2x1024xf32>
    %2 = tpu.matmul %1, %0, %cst {dimension_numbers = #tpu.dot_dimension_numbers<[1], [0], [0], [1], [0, 0, 1, 1], [], []>} : vector<2x8xf32>, vector<8x1024xf32>, vector<2x1024xf32> -> vector<2x1024xf32>
    %c0_3 = arith.constant 0 : index
    %c0_4 = arith.constant 0 : index
    %3 = vector.load %arg2[%c0_3, %c0_4] : memref<1024x4xf32, #tpu.memory_space<vmem>>, vector<1024x4xf32>
    %cst_5 = arith.constant dense<0.000000e+00> : vector<2x4xf32>
    %4 = tpu.matmul %2, %3, %cst_5 {dimension_numbers = #tpu.dot_dimension_numbers<[1], [0], [0], [1], [0, 0, 1, 1], [], []>} : vector<2x1024xf32>, vector<1024x4xf32>, vector<2x4xf32> -> vector<2x4xf32>
    %c0_6 = arith.constant 0 : index
    %c0_7 = arith.constant 0 : index
    %5 = vector.load %arg3[%c0_6, %c0_7] : memref<4x1xf32, #tpu.memory_space<vmem>>, vector<4x1xf32>
    %cst_8 = arith.constant dense<0.000000e+00> : vector<2x1xf32>
    %6 = tpu.matmul %4, %5, %cst_8 {dimension_numbers = #tpu.dot_dimension_numbers<[1], [0], [0], [1], [0, 0, 1, 1], [], []>} : vector<2x4xf32>, vector<4x1xf32>, vector<2x1xf32> -> vector<2x1xf32>
    %c0_9 = arith.constant 0 : index
    %c0_10 = arith.constant 0 : index
    %7 = vector.load %arg4[%c0_9, %c0_10] : memref<1x1xf32, #tpu.memory_space<vmem>>, vector<1x1xf32>
    %8 = vector.broadcast %7 : vector<1x1xf32> to vector<2x1xf32>
    %9 = arith.addf %6, %8 : vector<2x1xf32>
    %cst_11 = arith.constant 0.000000e+00 : f32
    %10 = vector.broadcast %cst_11 : f32 to vector<2x1xf32>
    %11 = arith.maximumf %9, %10 : vector<2x1xf32>
    %c0_12 = arith.constant 0 : index
    %c0_13 = arith.constant 0 : index
    %12 = vector.load %arg5[%c0_12, %c0_13] : memref<1x4xf32, #tpu.memory_space<vmem>>, vector<1x4xf32>
    %cst_14 = arith.constant dense<0.000000e+00> : vector<2x4xf32>
    %13 = tpu.matmul %11, %12, %cst_14 {dimension_numbers = #tpu.dot_dimension_numbers<[1], [0], [0], [1], [0, 0, 1, 1], [], []>} : vector<2x1xf32>, vector<1x4xf32>, vector<2x4xf32> -> vector<2x4xf32>
    %c0_15 = arith.constant 0 : index
    %c0_16 = arith.constant 0 : index
    %14 = vector.load %arg6[%c0_15, %c0_16] : memref<1x4xf32, #tpu.memory_space<vmem>>, vector<1x4xf32>
    %15 = vector.broadcast %14 : vector<1x4xf32> to vector<2x4xf32>
    %16 = arith.addf %13, %15 : vector<2x4xf32>
    %17 = arith.negf %16 : vector<2x4xf32>
    %18 = math.exp %17 : vector<2x4xf32>
    %cst_17 = arith.constant 1.000000e+00 : f32
    %19 = vector.broadcast %cst_17 : f32 to vector<2x4xf32>
    %20 = arith.addf %19, %18 : vector<2x4xf32>
    %21 = arith.divf %19, %20 : vector<2x4xf32>
    %c0_18 = arith.constant 0 : index
    %c0_19 = arith.constant 0 : index
    %22 = vector.load %arg7[%c0_18, %c0_19] : memref<8x2xf32, #tpu.memory_space<vmem>>, vector<8x2xf32>
    %cst_20 = arith.constant dense<0.000000e+00> : vector<8x4xf32>
    %23 = tpu.matmul %22, %21, %cst_20 {dimension_numbers = #tpu.dot_dimension_numbers<[1], [0], [0], [1], [0, 0, 1, 1], [], []>} : vector<8x2xf32>, vector<2x4xf32>, vector<8x4xf32> -> vector<8x4xf32>
    %c0_21 = arith.constant 0 : index
    %c0_22 = arith.constant 0 : index
    %24 = vector.load %arg8[%c0_21, %c0_22] : memref<4x1024xf32, #tpu.memory_space<vmem>>, vector<4x1024xf32>
    %cst_23 = arith.constant dense<0.000000e+00> : vector<8x1024xf32>
    %25 = tpu.matmul %23, %24, %cst_23 {dimension_numbers = #tpu.dot_dimension_numbers<[1], [0], [0], [1], [0, 0, 1, 1], [], []>} : vector<8x4xf32>, vector<4x1024xf32>, vector<8x1024xf32> -> vector<8x1024xf32>
    %26 = arith.mulf %0, %25 : vector<8x1024xf32>
    %27 = arith.truncf %26 : vector<8x1024xf32> to vector<8x1024xbf16>
    %c0_24 = arith.constant 0 : index
    %c0_25 = arith.constant 0 : index
    %28 = vector.load %arg9[%c0_24, %c0_25] : memref<1024x768xbf16, #tpu.memory_space<vmem>>, vector<1024x768xbf16>
    %cst_26 = arith.constant dense<0.000000e+00> : vector<8x768xf32>
    %29 = tpu.matmul %27, %28, %cst_26 {dimension_numbers = #tpu.dot_dimension_numbers<[1], [0], [0], [1], [0, 0, 1, 1], [], []>} : vector<8x1024xbf16>, vector<1024x768xbf16>, vector<8x768xf32> -> vector<8x768xf32>
    %c0_27 = arith.constant 0 : index
    %c0_28 = arith.constant 0 : index
    %30 = vector.load %arg10[%c0_27, %c0_28] : memref<1x768xf32, #tpu.memory_space<vmem>>, vector<1x768xf32>
    %31 = vector.broadcast %30 : vector<1x768xf32> to vector<8x768xf32>
    %32 = arith.addf %29, %31 : vector<8x768xf32>
    %c0_29 = arith.constant 0 : index
    %c0_30 = arith.constant 0 : index
    %33 = vector.load %arg11[%c0_29, %c0_30] : memref<16x8xf32, #tpu.memory_space<vmem>>, vector<16x8xf32>
    %cst_31 = arith.constant dense<0.000000e+00> : vector<16x768xf32>
    %34 = tpu.matmul %33, %32, %cst_31 {dimension_numbers = #tpu.dot_dimension_numbers<[1], [0], [0], [1], [0, 0, 1, 1], [], []>} : vector<16x8xf32>, vector<8x768xf32>, vector<16x768xf32> -> vector<16x768xf32>
    %c0_32 = arith.constant 0 : index
    %c0_33 = arith.constant 0 : index
    %35 = vector.load %arg12[%c0_32, %c0_33] : memref<16x8xf32, #tpu.memory_space<vmem>>, vector<16x8xf32>
    %c0_34 = arith.constant 0 : index
    %c0_35 = arith.constant 0 : index
    %36 = vector.load %arg13[%c0_34, %c0_35] : memref<8x768xf32, #tpu.memory_space<vmem>>, vector<8x768xf32>
    %cst_36 = arith.constant dense<0.000000e+00> : vector<16x768xf32>
    %37 = tpu.matmul %35, %36, %cst_36 {dimension_numbers = #tpu.dot_dimension_numbers<[1], [0], [0], [1], [0, 0, 1, 1], [], []>} : vector<16x8xf32>, vector<8x768xf32>, vector<16x768xf32> -> vector<16x768xf32>
    %38 = arith.addf %34, %37 : vector<16x768xf32>
    %c0_37 = arith.constant 0 : index
    %c0_38 = arith.constant 0 : index
    %39 = vector.load %arg14[%c0_37, %c0_38] : memref<16x768xf32, #tpu.memory_space<vmem>>, vector<16x768xf32>
    tpu.vector_store %arg14[%c0_37, %c0_38], %38 {strides = array<i32>} : memref<16x768xf32, #tpu.memory_space<vmem>>, vector<16x768xf32>,
    return
  }
}

</mosaic_0001>

<llo_original>
// kernel: tpu_custom_call.1
$region0: #{tpu_custom_call.1}
  #allocation0 [shape = 'u32[]', space=smem, size = 0x4, offset = 0x4, fixed_abs, tag = 'smem constant byte address 0x4 - core index']
  #allocation1 [shape = 'u32[144,128]{1,0:T(1,128)}', space=vmem, size = 0x12000, scoped, tag = 'internal scratch']
  #allocation2 [shape = 'f32[1,1]{1,0:T(1,128)S(1)}', space=vmem, size = 0x200, scoped, tag = 'scoped memory for tpu_custom_call.1']
  %s0 = inlined_call_operand.hbm [shape: f32[8,1024], index: 0, kind: input, shape index: {}]
  %s1 = inlined_call_operand.hbm [shape: f32[2,8], index: 1, kind: input, shape index: {}]
  %s2 = inlined_call_operand.vmem [shape: f32[1024,4], index: 2, kind: input, shape index: {}]
  %s3 = inlined_call_operand.vmem [shape: f32[4,1], index: 3, kind: input, shape index: {}]
  %s4 = inlined_call_operand.<no memory space> [shape: f32[1,1], index: 4, kind: input, shape index: {}]
  %s5 = inlined_call_operand.hbm [shape: f32[1,4], index: 5, kind: input, shape index: {}]
  %s6 = inlined_call_operand.hbm [shape: f32[1,4], index: 6, kind: input, shape index: {}]
  %s7 = inlined_call_operand.vmem [shape: f32[8,2], index: 7, kind: input, shape index: {}]
  %s8 = inlined_call_operand.hbm [shape: f32[4,1024], index: 8, kind: input, shape index: {}]
  %s9 = inlined_call_operand.hbm [shape: bf16[1024,768], index: 9, kind: input, shape index: {}]
  %s10 = inlined_call_operand.hbm [shape: f32[1,768], index: 10, kind: input, shape index: {}]
  %s11 = inlined_call_operand.vmem [shape: f32[16,8], index: 11, kind: input, shape index: {}]
  %s12 = inlined_call_operand.vmem [shape: f32[16,8], index: 12, kind: input, shape index: {}]
  %s13 = inlined_call_operand.hbm [shape: f32[8,768], index: 13, kind: input, shape index: {}]
  %s14 = inlined_call_operand.hbm [shape: f32[16,768], index: 14, kind: output, shape index: {}]
  %s15 = sld [smem:[#allocation0]]
  $region98: #{tpu_custom_call.1} parent=0
    _
  %s17 = ssub.s32 1, %s15
  %s18 = scalar_select 0, %s17, %s15
  %v19 = vstv %s4
  %20 = vst [vmem:[#allocation2] sm:$0x1] %v19
  $region1: #{tpu_custom_call.1} parent=0
    #allocation3 [shape = 'u8[32768]{0}', space=vmem, size = 0x8000, scoped, tag = 'input window, operand 0, single buffered']
    #allocation4 [shape = 's32[1]{0}', space=sflag, size = 0x4, scoped, tag = 'scoped memory for tpu_custom_call.1']
    #allocation5 [shape = 's32[1]{0}', space=sflag, size = 0x4, scoped, tag = 'scoped memory for tpu_custom_call.1']
    #allocation6 [shape = 'u8[1024]{0}', space=vmem, size = 0x400, scoped, tag = 'input window, operand 1, single buffered']
    #allocation7 [shape = 's32[1]{0}', space=sflag, size = 0x4, scoped, tag = 'scoped memory for tpu_custom_call.1']
    #allocation8 [shape = 'u8[512]{0}', space=vmem, size = 0x400, scoped, tag = 'input window, operand 5, single buffered']
    #allocation9 [shape = 'u8[512]{0}', space=vmem, size = 0x400, scoped, tag = 'input window, operand 6, single buffered']
    #allocation10 [shape = 's32[1]{0}', space=sflag, size = 0x4, scoped, tag = 'scoped memory for tpu_custom_call.1']
    #allocation11 [shape = 'u8[16384]{0}', space=vmem, size = 0x4000, scoped, tag = 'input window, operand 8, single buffered']
    #allocation12 [shape = 'u8[1572864]{0}', space=vmem, size = 0x180000, scoped, tag = 'input window, operand 9, single buffered']
    #allocation13 [shape = 's32[1]{0}', space=sflag, size = 0x4, scoped, tag = 'scoped memory for tpu_custom_call.1']
    #allocation14 [shape = 'u8[3072]{0}', space=vmem, size = 0xc00, scoped, tag = 'input window, operand 10, single buffered']
    #allocation15 [shape = 'u8[24576]{0}', space=vmem, size = 0x6000, scoped, tag = 'input window, operand 13, single buffered']
    #allocation16 [shape = 's32[1]{0}', space=sflag, size = 0x4, scoped, tag = 'scoped memory for tpu_custom_call.1']
    #allocation17 [shape = 'u8[49152]{0}', space=vmem, size = 0xc000, scoped, tag = 'output window, operand 0, single buffered']
    %21 = vsyncpa [#allocation4], 0
    %22 = vsyncpa [#allocation7], 0
    %23 = vsyncpa [#allocation10], 0
    %24 = vsyncpa [#allocation13], 0
    %25 = vsyncpa [#allocation16], 0
    %26 = vsyncpa [#allocation5], 0
    // Predicated region
    $region2: #{tpu_custom_call.1} parent=1 // pred_check
      _
    $region3: #{tpu_custom_call.1} parent=1 // pred_check_branch
      %28 = sbr.rel (0) target = $region5
    $region4: #{tpu_custom_call.1} parent=1 // pred_region
      %s30 = ssub.s32 1024, 1024
      %31 = vsyncadd [#allocation4], %s30
      %s33 = sshll.u32 [#allocation3], 4
      %s34 = int_to_ptr.vmem [resolvable:$true] %s33
      %36 = dma.hbm_to_vmem [thread:$0]  %s0, 1024, %s34, [#allocation4]
    $region5: #{tpu_custom_call.1} parent=1 // pred_fallthru
      _
    // Predicated region
    $region6: #{tpu_custom_call.1} parent=1 // pred_check
      _
    $region7: #{tpu_custom_call.1} parent=1 // pred_check_branch
      %38 = sbr.rel (0) target = $region9
    $region8: #{tpu_custom_call.1} parent=1 // pred_region
      %s40 = ssub.s32 32, 32
      %41 = vsyncadd [#allocation7], %s40
      %s43 = sshll.u32 [#allocation6], 4
      %s44 = int_to_ptr.vmem [resolvable:$true] %s43
      %46 = dma.hbm_to_vmem [thread:$0]  %s1, 32, %s44, [#allocation7]
    $region9: #{tpu_custom_call.1} parent=1 // pred_fallthru
      _
    // Predicated region
    $region10: #{tpu_custom_call.1} parent=1 // pred_check
      _
    $region11: #{tpu_custom_call.1} parent=1 // pred_check_branch
      %48 = sbr.rel (0) target = $region13
    $region12: #{tpu_custom_call.1} parent=1 // pred_region
      _
    $region13: #{tpu_custom_call.1} parent=1 // pred_fallthru
      _
    // Predicated region
    $region14: #{tpu_custom_call.1} parent=1 // pred_check
      _
    $region15: #{tpu_custom_call.1} parent=1 // pred_check_branch
      %50 = sbr.rel (0) target = $region17
    $region16: #{tpu_custom_call.1} parent=1 // pred_region
      _
    $region17: #{tpu_custom_call.1} parent=1 // pred_fallthru
      _
    // Predicated region
    $region18: #{tpu_custom_call.1} parent=1 // pred_check
      _
    $region19: #{tpu_custom_call.1} parent=1 // pred_check_branch
      %52 = sbr.rel (0) target = $region21
    $region20: #{tpu_custom_call.1} parent=1 // pred_region
      _
    $region21: #{tpu_custom_call.1} parent=1 // pred_fallthru
      _
    // Predicated region
    $region22: #{tpu_custom_call.1} parent=1 // pred_check
      _
    $region23: #{tpu_custom_call.1} parent=1 // pred_check_branch
      %54 = sbr.rel (0) target = $region25
    $region24: #{tpu_custom_call.1} parent=1 // pred_region
      %s56 = ssub.s32 16, 16
      %57 = vsyncadd [#allocation7], %s56
      %s59 = sshll.u32 [#allocation8], 4
      %s60 = int_to_ptr.vmem [resolvable:$true] %s59
      %62 = dma.hbm_to_vmem [thread:$0]  %s5, 16, %s60, [#allocation7]
    $region25: #{tpu_custom_call.1} parent=1 // pred_fallthru
      _
    // Predicated region
    $region26: #{tpu_custom_call.1} parent=1 // pred_check
      _
    $region27: #{tpu_custom_call.1} parent=1 // pred_check_branch
      %64 = sbr.rel (0) target = $region29
    $region28: #{tpu_custom_call.1} parent=1 // pred_region
      %s66 = ssub.s32 16, 16
      %67 = vsyncadd [#allocation10], %s66
      %s69 = sshll.u32 [#allocation9], 4
      %s70 = int_to_ptr.vmem [resolvable:$true] %s69
      %72 = dma.hbm_to_vmem [thread:$0]  %s6, 16, %s70, [#allocation10]
    $region29: #{tpu_custom_call.1} parent=1 // pred_fallthru
      _
    // Predicated region
    $region30: #{tpu_custom_call.1} parent=1 // pred_check
      _
    $region31: #{tpu_custom_call.1} parent=1 // pred_check_branch
      %74 = sbr.rel (0) target = $region33
    $region32: #{tpu_custom_call.1} parent=1 // pred_region
      _
    $region33: #{tpu_custom_call.1} parent=1 // pred_fallthru
      _
    // Predicated region
    $region34: #{tpu_custom_call.1} parent=1 // pred_check
      _
    $region35: #{tpu_custom_call.1} parent=1 // pred_check_branch
      %76 = sbr.rel (0) target = $region37
    $region36: #{tpu_custom_call.1} parent=1 // pred_region
      %s78 = ssub.s32 512, 512
      %79 = vsyncadd [#allocation10], %s78
      %s81 = sshll.u32 [#allocation11], 4
      %s82 = int_to_ptr.vmem [resolvable:$true] %s81
      %84 = dma.hbm_to_vmem [thread:$0]  %s8, 512, %s82, [#allocation10]
    $region37: #{tpu_custom_call.1} parent=1 // pred_fallthru
      _
    // Predicated region
    $region38: #{tpu_custom_call.1} parent=1 // pred_check
      _
    $region39: #{tpu_custom_call.1} parent=1 // pred_check_branch
      %86 = sbr.rel (0) target = $region41
    $region40: #{tpu_custom_call.1} parent=1 // pred_region
      %s88 = ssub.s32 49152, 49152
      %89 = vsyncadd [#allocation13], %s88
      %s90 = sshll.u32 [#allocation12], 4
      %s91 = int_to_ptr.vmem [resolvable:$true] %s90
      %96 = dma.hbm_to_vmem [thread:$0]  %s9, 49152, %s91, [#allocation13], 384, 384, 24
    $region41: #{tpu_custom_call.1} parent=1 // pred_fallthru
      _
    // Predicated region
    $region42: #{tpu_custom_call.1} parent=1 // pred_check
      _
    $region43: #{tpu_custom_call.1} parent=1 // pred_check_branch
      %98 = sbr.rel (0) target = $region45
    $region44: #{tpu_custom_call.1} parent=1 // pred_region
      %s100 = ssub.s32 96, 96
      %101 = vsyncadd [#allocation13], %s100
      %s103 = sshll.u32 [#allocation14], 4
      %s104 = int_to_ptr.vmem [resolvable:$true] %s103
      %106 = dma.hbm_to_vmem [thread:$0]  %s10, 96, %s104, [#allocation13]
    $region45: #{tpu_custom_call.1} parent=1 // pred_fallthru
      _
    // Predicated region
    $region46: #{tpu_custom_call.1} parent=1 // pred_check
      _
    $region47: #{tpu_custom_call.1} parent=1 // pred_check_branch
      %108 = sbr.rel (0) target = $region49
    $region48: #{tpu_custom_call.1} parent=1 // pred_region
      _
    $region49: #{tpu_custom_call.1} parent=1 // pred_fallthru
      _
    // Predicated region
    $region50: #{tpu_custom_call.1} parent=1 // pred_check
      _
    $region51: #{tpu_custom_call.1} parent=1 // pred_check_branch
      %110 = sbr.rel (0) target = $region53
    $region52: #{tpu_custom_call.1} parent=1 // pred_region
      _
    $region53: #{tpu_custom_call.1} parent=1 // pred_fallthru
      _
    // Predicated region
    $region54: #{tpu_custom_call.1} parent=1 // pred_check
      _
    $region55: #{tpu_custom_call.1} parent=1 // pred_check_branch
      %112 = sbr.rel (0) target = $region57
    $region56: #{tpu_custom_call.1} parent=1 // pred_region
      %s114 = ssub.s32 768, 768
      %115 = vsyncadd [#allocation16], %s114
      %s117 = sshll.u32 [#allocation15], 4
      %s118 = int_to_ptr.vmem [resolvable:$true] %s117
      %120 = dma.hbm_to_vmem [thread:$0]  %s13, 768, %s118, [#allocation16]
    $region57: #{tpu_custom_call.1} parent=1 // pred_fallthru
      _
    // Predicated region
    $region58: #{tpu_custom_call.1} parent=1 // pred_check
      _
    $region59: #{tpu_custom_call.1} parent=1 // pred_check_branch
      %122 = sbr.rel (0) target = $region61
    $region60: #{tpu_custom_call.1} parent=1 // pred_region
      %123 = dma.done [#allocation4], 1024
    $region61: #{tpu_custom_call.1} parent=1 // pred_fallthru
      _
    // Predicated region
    $region62: #{tpu_custom_call.1} parent=1 // pred_check
      _
    $region63: #{tpu_custom_call.1} parent=1 // pred_check_branch
      %125 = sbr.rel (0) target = $region65
    $region64: #{tpu_custom_call.1} parent=1 // pred_region
      %126 = dma.done [#allocation7], 32
    $region65: #{tpu_custom_call.1} parent=1 // pred_fallthru
      _
    // Predicated region
    $region66: #{tpu_custom_call.1} parent=1 // pred_check
      _
    $region67: #{tpu_custom_call.1} parent=1 // pred_check_branch
      %128 = sbr.rel (0) target = $region69
    $region68: #{tpu_custom_call.1} parent=1 // pred_region
      %129 = dma.done [#allocation7], 16
    $region69: #{tpu_custom_call.1} parent=1 // pred_fallthru
      _
    // Predicated region
    $region70: #{tpu_custom_call.1} parent=1 // pred_check
      _
    $region71: #{tpu_custom_call.1} parent=1 // pred_check_branch
      %131 = sbr.rel (0) target = $region73
    $region72: #{tpu_custom_call.1} parent=1 // pred_region
      %132 = dma.done [#allocation10], 16
    $region73: #{tpu_custom_call.1} parent=1 // pred_fallthru
      _
    // Predicated region
    $region74: #{tpu_custom_call.1} parent=1 // pred_check
      _
    $region75: #{tpu_custom_call.1} parent=1 // pred_check_branch
      %134 = sbr.rel (0) target = $region77
    $region76: #{tpu_custom_call.1} parent=1 // pred_region
      %135 = dma.done [#allocation10], 512
    $region77: #{tpu_custom_call.1} parent=1 // pred_fallthru
      _
    // Predicated region
    $region78: #{tpu_custom_call.1} parent=1 // pred_check
      _
    $region79: #{tpu_custom_call.1} parent=1 // pred_check_branch
      %137 = sbr.rel (0) target = $region81
    $region80: #{tpu_custom_call.1} parent=1 // pred_region
      %138 = dma.done [#allocation13], 49152
    $region81: #{tpu_custom_call.1} parent=1 // pred_fallthru
      _
    // Predicated region
    $region82: #{tpu_custom_call.1} parent=1 // pred_check
      _
    $region83: #{tpu_custom_call.1} parent=1 // pred_check_branch
      %140 = sbr.rel (0) target = $region85
    $region84: #{tpu_custom_call.1} parent=1 // pred_region
      %141 = dma.done [#allocation13], 96
    $region85: #{tpu_custom_call.1} parent=1 // pred_fallthru
      _
    // Predicated region
    $region86: #{tpu_custom_call.1} parent=1 // pred_check
      _
    $region87: #{tpu_custom_call.1} parent=1 // pred_check_branch
      %143 = sbr.rel (0) target = $region89
    $region88: #{tpu_custom_call.1} parent=1 // pred_region
      %144 = dma.done [#allocation16], 768
    $region89: #{tpu_custom_call.1} parent=1 // pred_fallthru
      _
    %v145 = vld [vmem:[#allocation3] sm:$0xff]
    %v146 = vld [vmem:[#allocation3 + $0x8] sm:$0xff]
    %v147 = vld [vmem:[#allocation3 + $0x10] sm:$0xff]
    %v148 = vld [vmem:[#allocation3 + $0x18] sm:$0xff]
    %v149 = vld [vmem:[#allocation3 + $0x20] sm:$0xff]
    %v150 = vld [vmem:[#allocation3 + $0x28] sm:$0xff]
    %v151 = vld [vmem:[#allocation3 + $0x30] sm:$0xff]
    %v152 = vld [vmem:[#allocation3 + $0x38] sm:$0xff]
    %v153 = vld [vmem:[#allocation6] sm:$0x3]
    %vm154 = vcmask 64512
    %v156 = vsel %vm154, %v153, 0
    %158 = vmatprep.subr.mxu0 %v146
    %159 = vmatpush1.msra.mxu0 %v145
    %160 = vmatprep.subr.mxu0 0.0
    %161 = vmatpush1.msra.mxu0 0.0
    %162 = vmatprep.subr.mxu0 0.0
    %163 = vmatpush1.msra.mxu0 0.0
    %164 = vmatprep.subr.mxu0 0.0
    %165 = vmatpush1.msra.mxu0 0.0
    %166 = vmatprep.subr.mxu0 0.0
    %167 = vmatpush1.msra.mxu0 0.0
    %168 = vmatprep.subr.mxu0 0.0
    %169 = vmatpush1.msra.mxu0 0.0
    %170 = vmatprep.subr.mxu0 0.0
    %171 = vmatpush1.msra.mxu0 0.0
    %172 = vmatprep.subr.mxu0 0.0
    %173 = vmatpush1.msra.mxu0 0.0
    %174 = vmatprep.subr.mxu0 0.0
    %175 = vmatpush1.msra.mxu0 0.0
    %176 = vmatprep.subr.mxu0 0.0
    %177 = vmatpush1.msra.mxu0 0.0
    %178 = vmatprep.subr.mxu0 0.0
    %179 = vmatpush1.msra.mxu0 0.0
    %180 = vmatprep.subr.mxu0 0.0
    %181 = vmatpush1.msra.mxu0 0.0
    %182 = vmatprep.subr.mxu0 0.0
    %183 = vmatpush1.msra.mxu0 0.0
    %184 = vmatprep.subr.mxu0 0.0
    %185 = vmatpush1.msra.mxu0 0.0
    %186 = vmatprep.subr.mxu0 0.0
    %187 = vmatpush1.msra.mxu0 0.0
    %188 = vmatprep.subr.mxu0 0.0
    %189 = vmatpush1.msra.mxu0 0.0
    %190 = vmatprep.subr.mxu0 0.0
    %191 = vmatpush1.msra.mxu0 0.0
    %192 = vmatprep.subr.mxu0 0.0
    %193 = vmatpush1.msra.mxu0 0.0
    %194 = vmatprep.subr.mxu0 0.0
    %195 = vmatpush1.msra.mxu0 0.0
    %196 = vmatprep.subr.mxu0 0.0
    %197 = vmatpush1.msra.mxu0 0.0
    %198 = vmatprep.subr.mxu0 0.0
    %199 = vmatpush1.msra.mxu0 0.0
    %200 = vmatprep.subr.mxu0 0.0
    %201 = vmatpush1.msra.mxu0 0.0
    %202 = vmatprep.subr.mxu0 0.0
    %203 = vmatpush1.msra.mxu0 0.0
    %204 = vmatprep.subr.mxu0 0.0
    %205 = vmatpush1.msra.mxu0 0.0
    %206 = vmatprep.subr.mxu0 0.0
    %207 = vmatpush1.msra.mxu0 0.0
    %208 = vmatprep.subr.mxu0 0.0
    %209 = vmatpush1.msra.mxu0 0.0
    %210 = vmatprep.subr.mxu0 0.0
    %211 = vmatpush1.msra.mxu0 0.0
    %212 = vmatprep.subr.mxu0 0.0
    %213 = vmatpush1.msra.mxu0 0.0
    %214 = vmatprep.subr.mxu0 0.0
    %215 = vmatpush1.msra.mxu0 0.0
    %216 = vmatprep.subr.mxu0 0.0
    %217 = vmatpush1.msra.mxu0 0.0
    %218 = vmatprep.subr.mxu0 0.0
    %219 = vmatpush1.msra.mxu0 0.0
    %220 = vmatprep.subr.mxu0 0.0
    %221 = vmatpush1.msra.mxu0 0.0
    %222 = vmatprep.mubr.f32.mxu0 0.0
    %223 = vmatmul.mubr.f32.gmra.mrb[0].mxu0 %v156
    %v224 = vpop.f32.mrb[0].mxu0
    %v225 = vadd.f32 0.0, %v224
    %v226 = vpop.f32.mrb[0].mxu0
    %v227 = vadd.f32 0.0, %v226
    %228 = vdwg.mxu0
    %229 = vmatprep.subr.mxu0 %v148
    %230 = vmatpush1.msra.mxu0 %v147
    %231 = vmatprep.subr.mxu0 0.0
    %232 = vmatpush1.msra.mxu0 0.0
    %233 = vmatprep.subr.mxu0 0.0
    %234 = vmatpush1.msra.mxu0 0.0
    %235 = vmatprep.subr.mxu0 0.0
    %236 = vmatpush1.msra.mxu0 0.0
    %237 = vmatprep.subr.mxu0 0.0
    %238 = vmatpush1.msra.mxu0 0.0
    %239 = vmatprep.subr.mxu0 0.0
    %240 = vmatpush1.msra.mxu0 0.0
    %241 = vmatprep.subr.mxu0 0.0
    %242 = vmatpush1.msra.mxu0 0.0
    %243 = vmatprep.subr.mxu0 0.0
    %244 = vmatpush1.msra.mxu0 0.0
    %245 = vmatprep.subr.mxu0 0.0
    %246 = vmatpush1.msra.mxu0 0.0
    %247 = vmatprep.subr.mxu0 0.0
    %248 = vmatpush1.msra.mxu0 0.0
    %249 = vmatprep.subr.mxu0 0.0
    %250 = vmatpush1.msra.mxu0 0.0
    %251 = vmatprep.subr.mxu0 0.0
    %252 = vmatpush1.msra.mxu0 0.0
    %253 = vmatprep.subr.mxu0 0.0
    %254 = vmatpush1.msra.mxu0 0.0
    %255 = vmatprep.subr.mxu0 0.0
    %256 = vmatpush1.msra.mxu0 0.0
    %257 = vmatprep.subr.mxu0 0.0
    %258 = vmatpush1.msra.mxu0 0.0
    %259 = vmatprep.subr.mxu0 0.0
    %260 = vmatpush1.msra.mxu0 0.0
    %261 = vmatprep.subr.mxu0 0.0
    %262 = vmatpush1.msra.mxu0 0.0
    %263 = vmatprep.subr.mxu0 0.0
    %264 = vmatpush1.msra.mxu0 0.0
    %265 = vmatprep.subr.mxu0 0.0
    %266 = vmatpush1.msra.mxu0 0.0
    %267 = vmatprep.subr.mxu0 0.0
    %268 = vmatpush1.msra.mxu0 0.0
    %269 = vmatprep.subr.mxu0 0.0
    %270 = vmatpush1.msra.mxu0 0.0
    %271 = vmatprep.subr.mxu0 0.0
    %272 = vmatpush1.msra.mxu0 0.0
    %273 = vmatprep.subr.mxu0 0.0
    %274 = vmatpush1.msra.mxu0 0.0
    %275 = vmatprep.subr.mxu0 0.0
    %276 = vmatpush1.msra.mxu0 0.0
    %277 = vmatprep.subr.mxu0 0.0
    %278 = vmatpush1.msra.mxu0 0.0
    %279 = vmatprep.subr.mxu0 0.0
    %280 = vmatpush1.msra.mxu0 0.0
    %281 = vmatprep.subr.mxu0 0.0
    %282 = vmatpush1.msra.mxu0 0.0
    %283 = vmatprep.subr.mxu0 0.0
    %284 = vmatpush1.msra.mxu0 0.0
    %285 = vmatprep.subr.mxu0 0.0
    %286 = vmatpush1.msra.mxu0 0.0
    %287 = vmatprep.subr.mxu0 0.0
    %288 = vmatpush1.msra.mxu0 0.0
    %289 = vmatprep.subr.mxu0 0.0
    %290 = vmatpush1.msra.mxu0 0.0
    %291 = vmatprep.subr.mxu0 0.0
    %292 = vmatpush1.msra.mxu0 0.0
    %293 = vmatprep.mubr.f32.mxu0 0.0
    %294 = vmatmul.mubr.f32.gmra.mrb[0].mxu0 %v156
    %v295 = vpop.f32.mrb[0].mxu0
    %v296 = vadd.f32 0.0, %v295
    %v297 = vpop.f32.mrb[0].mxu0
    %v298 = vadd.f32 0.0, %v297
    %299 = vdwg.mxu0
    %300 = vmatprep.subr.mxu0 %v150
    %301 = vmatpush1.msra.mxu0 %v149
    %302 = vmatprep.subr.mxu0 0.0
    %303 = vmatpush1.msra.mxu0 0.0
    %304 = vmatprep.subr.mxu0 0.0
    %305 = vmatpush1.msra.mxu0 0.0
    %306 = vmatprep.subr.mxu0 0.0
    %307 = vmatpush1.msra.mxu0 0.0
    %308 = vmatprep.subr.mxu0 0.0
    %309 = vmatpush1.msra.mxu0 0.0
    %310 = vmatprep.subr.mxu0 0.0
    %311 = vmatpush1.msra.mxu0 0.0
    %312 = vmatprep.subr.mxu0 0.0
    %313 = vmatpush1.msra.mxu0 0.0
    %314 = vmatprep.subr.mxu0 0.0
    %315 = vmatpush1.msra.mxu0 0.0
    %316 = vmatprep.subr.mxu0 0.0
    %317 = vmatpush1.msra.mxu0 0.0
    %318 = vmatprep.subr.mxu0 0.0
    %319 = vmatpush1.msra.mxu0 0.0
    %320 = vmatprep.subr.mxu0 0.0
    %321 = vmatpush1.msra.mxu0 0.0
    %322 = vmatprep.subr.mxu0 0.0
    %323 = vmatpush1.msra.mxu0 0.0
    %324 = vmatprep.subr.mxu0 0.0
    %325 = vmatpush1.msra.mxu0 0.0
    %326 = vmatprep.subr.mxu0 0.0
    %327 = vmatpush1.msra.mxu0 0.0
    %328 = vmatprep.subr.mxu0 0.0
    %329 = vmatpush1.msra.mxu0 0.0
    %330 = vmatprep.subr.mxu0 0.0
    %331 = vmatpush1.msra.mxu0 0.0
    %332 = vmatprep.subr.mxu0 0.0
    %333 = vmatpush1.msra.mxu0 0.0
    %334 = vmatprep.subr.mxu0 0.0
    %335 = vmatpush1.msra.mxu0 0.0
    %336 = vmatprep.subr.mxu0 0.0
    %337 = vmatpush1.msra.mxu0 0.0
    %338 = vmatprep.subr.mxu0 0.0
    %339 = vmatpush1.msra.mxu0 0.0
    %340 = vmatprep.subr.mxu0 0.0
    %341 = vmatpush1.msra.mxu0 0.0
    %342 = vmatprep.subr.mxu0 0.0
    %343 = vmatpush1.msra.mxu0 0.0
    %344 = vmatprep.subr.mxu0 0.0
    %345 = vmatpush1.msra.mxu0 0.0
    %346 = vmatprep.subr.mxu0 0.0
    %347 = vmatpush1.msra.mxu0 0.0
    %348 = vmatprep.subr.mxu0 0.0
    %349 = vmatpush1.msra.mxu0 0.0
    %350 = vmatprep.subr.mxu0 0.0
    %351 = vmatpush1.msra.mxu0 0.0
    %352 = vmatprep.subr.mxu0 0.0
    %353 = vmatpush1.msra.mxu0 0.0
    %354 = vmatprep.subr.mxu0 0.0
    %355 = vmatpush1.msra.mxu0 0.0
    %356 = vmatprep.subr.mxu0 0.0
    %357 = vmatpush1.msra.mxu0 0.0
    %358 = vmatprep.subr.mxu0 0.0
    %359 = vmatpush1.msra.mxu0 0.0
    %360 = vmatprep.subr.mxu0 0.0
    %361 = vmatpush1.msra.mxu0 0.0
    %362 = vmatprep.subr.mxu0 0.0
    %363 = vmatpush1.msra.mxu0 0.0
    %364 = vmatprep.mubr.f32.mxu0 0.0
    %365 = vmatmul.mubr.f32.gmra.mrb[0].mxu0 %v156
    %v366 = vpop.f32.mrb[0].mxu0
    %v367 = vadd.f32 0.0, %v366
    %v368 = vpop.f32.mrb[0].mxu0
    %v369 = vadd.f32 0.0, %v368
    %370 = vdwg.mxu0
    %371 = vmatprep.subr.mxu0 %v152
    %372 = vmatpush1.msra.mxu0 %v151
    %373 = vmatprep.subr.mxu0 0.0
    %374 = vmatpush1.msra.mxu0 0.0
    %375 = vmatprep.subr.mxu0 0.0
    %376 = vmatpush1.msra.mxu0 0.0
    %377 = vmatprep.subr.mxu0 0.0
    %378 = vmatpush1.msra.mxu0 0.0
    %379 = vmatprep.subr.mxu0 0.0
    %380 = vmatpush1.msra.mxu0 0.0
    %381 = vmatprep.subr.mxu0 0.0
    %382 = vmatpush1.msra.mxu0 0.0
    %383 = vmatprep.subr.mxu0 0.0
    %384 = vmatpush1.msra.mxu0 0.0
    %385 = vmatprep.subr.mxu0 0.0
    %386 = vmatpush1.msra.mxu0 0.0
    %387 = vmatprep.subr.mxu0 0.0
    %388 = vmatpush1.msra.mxu0 0.0
    %389 = vmatprep.subr.mxu0 0.0
    %390 = vmatpush1.msra.mxu0 0.0
    %391 = vmatprep.subr.mxu0 0.0
    %392 = vmatpush1.msra.mxu0 0.0
    %393 = vmatprep.subr.mxu0 0.0
    %394 = vmatpush1.msra.mxu0 0.0
    %395 = vmatprep.subr.mxu0 0.0
    %396 = vmatpush1.msra.mxu0 0.0
    %397 = vmatprep.subr.mxu0 0.0
    %398 = vmatpush1.msra.mxu0 0.0
    %399 = vmatprep.subr.mxu0 0.0
    %400 = vmatpush1.msra.mxu0 0.0
    %401 = vmatprep.subr.mxu0 0.0
    %402 = vmatpush1.msra.mxu0 0.0
    %403 = vmatprep.subr.mxu0 0.0
    %404 = vmatpush1.msra.mxu0 0.0
    %405 = vmatprep.subr.mxu0 0.0
    %406 = vmatpush1.msra.mxu0 0.0
    %407 = vmatprep.subr.mxu0 0.0
    %408 = vmatpush1.msra.mxu0 0.0
    %409 = vmatprep.subr.mxu0 0.0
    %410 = vmatpush1.msra.mxu0 0.0
    %411 = vmatprep.subr.mxu0 0.0
    %412 = vmatpush1.msra.mxu0 0.0
    %413 = vmatprep.subr.mxu0 0.0
    %414 = vmatpush1.msra.mxu0 0.0
    %415 = vmatprep.subr.mxu0 0.0
    %416 = vmatpush1.msra.mxu0 0.0
    %417 = vmatprep.subr.mxu0 0.0
    %418 = vmatpush1.msra.mxu0 0.0
    %419 = vmatprep.subr.mxu0 0.0
    %420 = vmatpush1.msra.mxu0 0.0
    %421 = vmatprep.subr.mxu0 0.0
    %422 = vmatpush1.msra.mxu0 0.0
    %423 = vmatprep.subr.mxu0 0.0
    %424 = vmatpush1.msra.mxu0 0.0
    %425 = vmatprep.subr.mxu0 0.0
    %426 = vmatpush1.msra.mxu0 0.0
    %427 = vmatprep.subr.mxu0 0.0
    %428 = vmatpush1.msra.mxu0 0.0
    %429 = vmatprep.subr.mxu0 0.0
    %430 = vmatpush1.msra.mxu0 0.0
    %431 = vmatprep.subr.mxu0 0.0
    %432 = vmatpush1.msra.mxu0 0.0
    %433 = vmatprep.subr.mxu0 0.0
    %434 = vmatpush1.msra.mxu0 0.0
    %435 = vmatprep.mubr.f32.mxu0 0.0
    %436 = vmatmul.mubr.f32.gmra.mrb[0].mxu0 %v156
    %v437 = vpop.f32.mrb[0].mxu0
    %v438 = vadd.f32 0.0, %v437
    %v439 = vpop.f32.mrb[0].mxu0
    %v440 = vadd.f32 0.0, %v439
    %441 = vdwg.mxu0
    %v442 = vld [vmem:[%s2] sm:$0xff]
    %v443 = vld [vmem:[%s2 + $0x8] sm:$0xff]
    %v444 = vld [vmem:[%s2 + $0x10] sm:$0xff]
    %v445 = vld [vmem:[%s2 + $0x18] sm:$0xff]
    %v446 = vld [vmem:[%s2 + $0x20] sm:$0xff]
    %v447 = vld [vmem:[%s2 + $0x28] sm:$0xff]
    %v448 = vld [vmem:[%s2 + $0x30] sm:$0xff]
    %v449 = vld [vmem:[%s2 + $0x38] sm:$0xff]
    %v450 = vld [vmem:[%s2 + $0x40] sm:$0xff]
    %v451 = vld [vmem:[%s2 + $0x48] sm:$0xff]
    %v452 = vld [vmem:[%s2 + $0x50] sm:$0xff]
    %v453 = vld [vmem:[%s2 + $0x58] sm:$0xff]
    %v454 = vld [vmem:[%s2 + $0x60] sm:$0xff]
    %v455 = vld [vmem:[%s2 + $0x68] sm:$0xff]
    %v456 = vld [vmem:[%s2 + $0x70] sm:$0xff]
    %v457 = vld [vmem:[%s2 + $0x78] sm:$0xff]
    %v458 = vld [vmem:[%s2 + $0x80] sm:$0xff]
    %v459 = vld [vmem:[%s2 + $0x88] sm:$0xff]
    %v460 = vld [vmem:[%s2 + $0x90] sm:$0xff]
    %v461 = vld [vmem:[%s2 + $0x98] sm:$0xff]
    %v462 = vld [vmem:[%s2 + $0xa0] sm:$0xff]
    %v463 = vld [vmem:[%s2 + $0xa8] sm:$0xff]
    %v464 = vld [vmem:[%s2 + $0xb0] sm:$0xff]
    %v465 = vld [vmem:[%s2 + $0xb8] sm:$0xff]
    %v466 = vld [vmem:[%s2 + $0xc0] sm:$0xff]
    %v467 = vld [vmem:[%s2 + $0xc8] sm:$0xff]
    %v468 = vld [vmem:[%s2 + $0xd0] sm:$0xff]
    %v469 = vld [vmem:[%s2 + $0xd8] sm:$0xff]
    %v470 = vld [vmem:[%s2 + $0xe0] sm:$0xff]
    %v471 = vld [vmem:[%s2 + $0xe8] sm:$0xff]
    %v472 = vld [vmem:[%s2 + $0xf0] sm:$0xff]
    %v473 = vld [vmem:[%s2 + $0xf8] sm:$0xff]
    %v474 = vld [vmem:[%s2 + $0x100] sm:$0xff]
    %v475 = vld [vmem:[%s2 + $0x108] sm:$0xff]
    %v476 = vld [vmem:[%s2 + $0x110] sm:$0xff]
    %v477 = vld [vmem:[%s2 + $0x118] sm:$0xff]
    %v478 = vld [vmem:[%s2 + $0x120] sm:$0xff]
    %v479 = vld [vmem:[%s2 + $0x128] sm:$0xff]
    %v480 = vld [vmem:[%s2 + $0x130] sm:$0xff]
    %v481 = vld [vmem:[%s2 + $0x138] sm:$0xff]
    %v482 = vld [vmem:[%s2 + $0x140] sm:$0xff]
    %v483 = vld [vmem:[%s2 + $0x148] sm:$0xff]
    %v484 = vld [vmem:[%s2 + $0x150] sm:$0xff]
    %v485 = vld [vmem:[%s2 + $0x158] sm:$0xff]
    %v486 = vld [vmem:[%s2 + $0x160] sm:$0xff]
    %v487 = vld [vmem:[%s2 + $0x168] sm:$0xff]
    %v488 = vld [vmem:[%s2 + $0x170] sm:$0xff]
    %v489 = vld [vmem:[%s2 + $0x178] sm:$0xff]
    %v490 = vld [vmem:[%s2 + $0x180] sm:$0xff]
    %v491 = vld [vmem:[%s2 + $0x188] sm:$0xff]
    %v492 = vld [vmem:[%s2 + $0x190] sm:$0xff]
    %v493 = vld [vmem:[%s2 + $0x198] sm:$0xff]
    %v494 = vld [vmem:[%s2 + $0x1a0] sm:$0xff]
    %v495 = vld [vmem:[%s2 + $0x1a8] sm:$0xff]
    %v496 = vld [vmem:[%s2 + $0x1b0] sm:$0xff]
    %v497 = vld [vmem:[%s2 + $0x1b8] sm:$0xff]
    %v498 = vld [vmem:[%s2 + $0x1c0] sm:$0xff]
    %v499 = vld [vmem:[%s2 + $0x1c8] sm:$0xff]
    %v500 = vld [vmem:[%s2 + $0x1d0] sm:$0xff]
    %v501 = vld [vmem:[%s2 + $0x1d8] sm:$0xff]
    %v502 = vld [vmem:[%s2 + $0x1e0] sm:$0xff]
    %v503 = vld [vmem:[%s2 + $0x1e8] sm:$0xff]
    %v504 = vld [vmem:[%s2 + $0x1f0] sm:$0xff]
    %v505 = vld [vmem:[%s2 + $0x1f8] sm:$0xff]
    %v506 = vld [vmem:[%s2 + $0x200] sm:$0xff]
    %v507 = vld [vmem:[%s2 + $0x208] sm:$0xff]
    %v508 = vld [vmem:[%s2 + $0x210] sm:$0xff]
    %v509 = vld [vmem:[%s2 + $0x218] sm:$0xff]
    %v510 = vld [vmem:[%s2 + $0x220] sm:$0xff]
    %v511 = vld [vmem:[%s2 + $0x228] sm:$0xff]
    %v512 = vld [vmem:[%s2 + $0x230] sm:$0xff]
    %v513 = vld [vmem:[%s2 + $0x238] sm:$0xff]
    %v514 = vld [vmem:[%s2 + $0x240] sm:$0xff]
    %v515 = vld [vmem:[%s2 + $0x248] sm:$0xff]
    %v516 = vld [vmem:[%s2 + $0x250] sm:$0xff]
    %v517 = vld [vmem:[%s2 + $0x258] sm:$0xff]
    %v518 = vld [vmem:[%s2 + $0x260] sm:$0xff]
    %v519 = vld [vmem:[%s2 + $0x268] sm:$0xff]
    %v520 = vld [vmem:[%s2 + $0x270] sm:$0xff]
    %v521 = vld [vmem:[%s2 + $0x278] sm:$0xff]
    %v522 = vld [vmem:[%s2 + $0x280] sm:$0xff]
    %v523 = vld [vmem:[%s2 + $0x288] sm:$0xff]
    %v524 = vld [vmem:[%s2 + $0x290] sm:$0xff]
    %v525 = vld [vmem:[%s2 + $0x298] sm:$0xff]
    %v526 = vld [vmem:[%s2 + $0x2a0] sm:$0xff]
    %v527 = vld [vmem:[%s2 + $0x2a8] sm:$0xff]
    %v528 = vld [vmem:[%s2 + $0x2b0] sm:$0xff]
    %v529 = vld [vmem:[%s2 + $0x2b8] sm:$0xff]
    %v530 = vld [vmem:[%s2 + $0x2c0] sm:$0xff]
    %v531 = vld [vmem:[%s2 + $0x2c8] sm:$0xff]
    %v532 = vld [vmem:[%s2 + $0x2d0] sm:$0xff]
    %v533 = vld [vmem:[%s2 + $0x2d8] sm:$0xff]
    %v534 = vld [vmem:[%s2 + $0x2e0] sm:$0xff]
    %v535 = vld [vmem:[%s2 + $0x2e8] sm:$0xff]
    %v536 = vld [vmem:[%s2 + $0x2f0] sm:$0xff]
    %v537 = vld [vmem:[%s2 + $0x2f8] sm:$0xff]
    %v538 = vld [vmem:[%s2 + $0x300] sm:$0xff]
    %v539 = vld [vmem:[%s2 + $0x308] sm:$0xff]
    %v540 = vld [vmem:[%s2 + $0x310] sm:$0xff]
    %v541 = vld [vmem:[%s2 + $0x318] sm:$0xff]
    %v542 = vld [vmem:[%s2 + $0x320] sm:$0xff]
    %v543 = vld [vmem:[%s2 + $0x328] sm:$0xff]
    %v544 = vld [vmem:[%s2 + $0x330] sm:$0xff]
    %v545 = vld [vmem:[%s2 + $0x338] sm:$0xff]
    %v546 = vld [vmem:[%s2 + $0x340] sm:$0xff]
    %v547 = vld [vmem:[%s2 + $0x348] sm:$0xff]
    %v548 = vld [vmem:[%s2 + $0x350] sm:$0xff]
    %v549 = vld [vmem:[%s2 + $0x358] sm:$0xff]
    %v550 = vld [vmem:[%s2 + $0x360] sm:$0xff]
    %v551 = vld [vmem:[%s2 + $0x368] sm:$0xff]
    %v552 = vld [vmem:[%s2 + $0x370] sm:$0xff]
    %v553 = vld [vmem:[%s2 + $0x378] sm:$0xff]
    %v554 = vld [vmem:[%s2 + $0x380] sm:$0xff]
    %v555 = vld [vmem:[%s2 + $0x388] sm:$0xff]
    %v556 = vld [vmem:[%s2 + $0x390] sm:$0xff]
    %v557 = vld [vmem:[%s2 + $0x398] sm:$0xff]
    %v558 = vld [vmem:[%s2 + $0x3a0] sm:$0xff]
    %v559 = vld [vmem:[%s2 + $0x3a8] sm:$0xff]
    %v560 = vld [vmem:[%s2 + $0x3b0] sm:$0xff]
    %v561 = vld [vmem:[%s2 + $0x3b8] sm:$0xff]
    %v562 = vld [vmem:[%s2 + $0x3c0] sm:$0xff]
    %v563 = vld [vmem:[%s2 + $0x3c8] sm:$0xff]
    %v564 = vld [vmem:[%s2 + $0x3d0] sm:$0xff]
    %v565 = vld [vmem:[%s2 + $0x3d8] sm:$0xff]
    %v566 = vld [vmem:[%s2 + $0x3e0] sm:$0xff]
    %v567 = vld [vmem:[%s2 + $0x3e8] sm:$0xff]
    %v568 = vld [vmem:[%s2 + $0x3f0] sm:$0xff]
    %v569 = vld [vmem:[%s2 + $0x3f8] sm:$0xff]
    %570 = vmatprep.subr.mxu0 0.0
    %571 = vmatpush1.msra.mxu0 %v442
    %572 = vmatprep.subr.mxu0 0.0
    %573 = vmatpush1.msra.mxu0 %v443
    %574 = vmatprep.subr.mxu0 0.0
    %575 = vmatpush1.msra.mxu0 %v444
    %576 = vmatprep.subr.mxu0 0.0
    %577 = vmatpush1.msra.mxu0 %v445
    %578 = vmatprep.subr.mxu0 0.0
    %579 = vmatpush1.msra.mxu0 %v446
    %580 = vmatprep.subr.mxu0 0.0
    %581 = vmatpush1.msra.mxu0 %v447
    %582 = vmatprep.subr.mxu0 0.0
    %583 = vmatpush1.msra.mxu0 %v448
    %584 = vmatprep.subr.mxu0 0.0
    %585 = vmatpush1.msra.mxu0 %v449
    %586 = vmatprep.subr.mxu0 0.0
    %587 = vmatpush1.msra.mxu0 %v450
    %588 = vmatprep.subr.mxu0 0.0
    %589 = vmatpush1.msra.mxu0 %v451
    %590 = vmatprep.subr.mxu0 0.0
    %591 = vmatpush1.msra.mxu0 %v452
    %592 = vmatprep.subr.mxu0 0.0
    %593 = vmatpush1.msra.mxu0 %v453
    %594 = vmatprep.subr.mxu0 0.0
    %595 = vmatpush1.msra.mxu0 %v454
    %596 = vmatprep.subr.mxu0 0.0
    %597 = vmatpush1.msra.mxu0 %v455
    %598 = vmatprep.subr.mxu0 0.0
    %599 = vmatpush1.msra.mxu0 %v456
    %600 = vmatprep.subr.mxu0 0.0
    %601 = vmatpush1.msra.mxu0 %v457
    %602 = vmatprep.subr.mxu0 0.0
    %603 = vmatpush1.msra.mxu0 %v458
    %604 = vmatprep.subr.mxu0 0.0
    %605 = vmatpush1.msra.mxu0 %v459
    %606 = vmatprep.subr.mxu0 0.0
    %607 = vmatpush1.msra.mxu0 %v460
    %608 = vmatprep.subr.mxu0 0.0
    %609 = vmatpush1.msra.mxu0 %v461
    %610 = vmatprep.subr.mxu0 0.0
    %611 = vmatpush1.msra.mxu0 %v462
    %612 = vmatprep.subr.mxu0 0.0
    %613 = vmatpush1.msra.mxu0 %v463
    %614 = vmatprep.subr.mxu0 0.0
    %615 = vmatpush1.msra.mxu0 %v464
    %616 = vmatprep.subr.mxu0 0.0
    %617 = vmatpush1.msra.mxu0 %v465
    %618 = vmatprep.subr.mxu0 0.0
    %619 = vmatpush1.msra.mxu0 %v466
    %620 = vmatprep.subr.mxu0 0.0
    %621 = vmatpush1.msra.mxu0 %v467
    %622 = vmatprep.subr.mxu0 0.0
    %623 = vmatpush1.msra.mxu0 %v468
    %624 = vmatprep.subr.mxu0 0.0
    %625 = vmatpush1.msra.mxu0 %v469
    %626 = vmatprep.subr.mxu0 0.0
    %627 = vmatpush1.msra.mxu0 %v470
    %628 = vmatprep.subr.mxu0 0.0
    %629 = vmatpush1.msra.mxu0 %v471
    %630 = vmatprep.subr.mxu0 0.0
    %631 = vmatpush1.msra.mxu0 %v472
    %632 = vmatprep.subr.mxu0 0.0
    %633 = vmatpush1.msra.mxu0 %v473
    %634 = vmatprep.mubr.f32.mxu0 %v227
    %635 = vmatmul.mubr.f32.gmra.mrb[0].mxu0 %v225
    %v636 = vpop.f32.mrb[0].mxu0
    %v637 = vadd.f32 0.0, %v636
    %v638 = vpop.f32.mrb[0].mxu0
    %639 = vdwg.mxu0
    %640 = vmatprep.subr.mxu0 0.0
    %641 = vmatpush1.msra.mxu0 %v474
    %642 = vmatprep.subr.mxu0 0.0
    %643 = vmatpush1.msra.mxu0 %v475
    %644 = vmatprep.subr.mxu0 0.0
    %645 = vmatpush1.msra.mxu0 %v476
    %646 = vmatprep.subr.mxu0 0.0
    %647 = vmatpush1.msra.mxu0 %v477
    %648 = vmatprep.subr.mxu0 0.0
    %649 = vmatpush1.msra.mxu0 %v478
    %650 = vmatprep.subr.mxu0 0.0
    %651 = vmatpush1.msra.mxu0 %v479
    %652 = vmatprep.subr.mxu0 0.0
    %653 = vmatpush1.msra.mxu0 %v480
    %654 = vmatprep.subr.mxu0 0.0
    %655 = vmatpush1.msra.mxu0 %v481
    %656 = vmatprep.subr.mxu0 0.0
    %657 = vmatpush1.msra.mxu0 %v482
    %658 = vmatprep.subr.mxu0 0.0
    %659 = vmatpush1.msra.mxu0 %v483
    %660 = vmatprep.subr.mxu0 0.0
    %661 = vmatpush1.msra.mxu0 %v484
    %662 = vmatprep.subr.mxu0 0.0
    %663 = vmatpush1.msra.mxu0 %v485
    %664 = vmatprep.subr.mxu0 0.0
    %665 = vmatpush1.msra.mxu0 %v486
    %666 = vmatprep.subr.mxu0 0.0
    %667 = vmatpush1.msra.mxu0 %v487
    %668 = vmatprep.subr.mxu0 0.0
    %669 = vmatpush1.msra.mxu0 %v488
    %670 = vmatprep.subr.mxu0 0.0
    %671 = vmatpush1.msra.mxu0 %v489
    %672 = vmatprep.subr.mxu0 0.0
    %673 = vmatpush1.msra.mxu0 %v490
    %674 = vmatprep.subr.mxu0 0.0
    %675 = vmatpush1.msra.mxu0 %v491
    %676 = vmatprep.subr.mxu0 0.0
    %677 = vmatpush1.msra.mxu0 %v492
    %678 = vmatprep.subr.mxu0 0.0
    %679 = vmatpush1.msra.mxu0 %v493
    %680 = vmatprep.subr.mxu0 0.0
    %681 = vmatpush1.msra.mxu0 %v494
    %682 = vmatprep.subr.mxu0 0.0
    %683 = vmatpush1.msra.mxu0 %v495
    %684 = vmatprep.subr.mxu0 0.0
    %685 = vmatpush1.msra.mxu0 %v496
    %686 = vmatprep.subr.mxu0 0.0
    %687 = vmatpush1.msra.mxu0 %v497
    %688 = vmatprep.subr.mxu0 0.0
    %689 = vmatpush1.msra.mxu0 %v498
    %690 = vmatprep.subr.mxu0 0.0
    %691 = vmatpush1.msra.mxu0 %v499
    %692 = vmatprep.subr.mxu0 0.0
    %693 = vmatpush1.msra.mxu0 %v500
    %694 = vmatprep.subr.mxu0 0.0
    %695 = vmatpush1.msra.mxu0 %v501
    %696 = vmatprep.subr.mxu0 0.0
    %697 = vmatpush1.msra.mxu0 %v502
    %698 = vmatprep.subr.mxu0 0.0
    %699 = vmatpush1.msra.mxu0 %v503
    %700 = vmatprep.subr.mxu0 0.0
    %701 = vmatpush1.msra.mxu0 %v504
    %702 = vmatprep.subr.mxu0 0.0
    %703 = vmatpush1.msra.mxu0 %v505
    %704 = vmatprep.mubr.f32.mxu0 %v298
    %705 = vmatmul.mubr.f32.gmra.mrb[0].mxu0 %v296
    %v706 = vpop.f32.mrb[0].mxu0
    %v707 = vadd.f32 %v637, %v706
    %v708 = vpop.f32.mrb[0].mxu0
    %709 = vdwg.mxu0
    %710 = vmatprep.subr.mxu0 0.0
    %711 = vmatpush1.msra.mxu0 %v506
    %712 = vmatprep.subr.mxu0 0.0
    %713 = vmatpush1.msra.mxu0 %v507
    %714 = vmatprep.subr.mxu0 0.0
    %715 = vmatpush1.msra.mxu0 %v508
    %716 = vmatprep.subr.mxu0 0.0
    %717 = vmatpush1.msra.mxu0 %v509
    %718 = vmatprep.subr.mxu0 0.0
    %719 = vmatpush1.msra.mxu0 %v510
    %720 = vmatprep.subr.mxu0 0.0
    %721 = vmatpush1.msra.mxu0 %v511
    %722 = vmatprep.subr.mxu0 0.0
    %723 = vmatpush1.msra.mxu0 %v512
    %724 = vmatprep.subr.mxu0 0.0
    %725 = vmatpush1.msra.mxu0 %v513
    %726 = vmatprep.subr.mxu0 0.0
    %727 = vmatpush1.msra.mxu0 %v514
    %728 = vmatprep.subr.mxu0 0.0
    %729 = vmatpush1.msra.mxu0 %v515
    %730 = vmatprep.subr.mxu0 0.0
    %731 = vmatpush1.msra.mxu0 %v516
    %732 = vmatprep.subr.mxu0 0.0
    %733 = vmatpush1.msra.mxu0 %v517
    %734 = vmatprep.subr.mxu0 0.0
    %735 = vmatpush1.msra.mxu0 %v518
    %736 = vmatprep.subr.mxu0 0.0
    %737 = vmatpush1.msra.mxu0 %v519
    %738 = vmatprep.subr.mxu0 0.0
    %739 = vmatpush1.msra.mxu0 %v520
    %740 = vmatprep.subr.mxu0 0.0
    %741 = vmatpush1.msra.mxu0 %v521
    %742 = vmatprep.subr.mxu0 0.0
    %743 = vmatpush1.msra.mxu0 %v522
    %744 = vmatprep.subr.mxu0 0.0
    %745 = vmatpush1.msra.mxu0 %v523
    %746 = vmatprep.subr.mxu0 0.0
    %747 = vmatpush1.msra.mxu0 %v524
    %748 = vmatprep.subr.mxu0 0.0
    %749 = vmatpush1.msra.mxu0 %v525
    %750 = vmatprep.subr.mxu0 0.0
    %751 = vmatpush1.msra.mxu0 %v526
    %752 = vmatprep.subr.mxu0 0.0
    %753 = vmatpush1.msra.mxu0 %v527
    %754 = vmatprep.subr.mxu0 0.0
    %755 = vmatpush1.msra.mxu0 %v528
    %756 = vmatprep.subr.mxu0 0.0
    %757 = vmatpush1.msra.mxu0 %v529
    %758 = vmatprep.subr.mxu0 0.0
    %759 = vmatpush1.msra.mxu0 %v530
    %760 = vmatprep.subr.mxu0 0.0
    %761 = vmatpush1.msra.mxu0 %v531
    %762 = vmatprep.subr.mxu0 0.0
    %763 = vmatpush1.msra.mxu0 %v532
    %764 = vmatprep.subr.mxu0 0.0
    %765 = vmatpush1.msra.mxu0 %v533
    %766 = vmatprep.subr.mxu0 0.0
    %767 = vmatpush1.msra.mxu0 %v534
    %768 = vmatprep.subr.mxu0 0.0
    %769 = vmatpush1.msra.mxu0 %v535
    %770 = vmatprep.subr.mxu0 0.0
    %771 = vmatpush1.msra.mxu0 %v536
    %772 = vmatprep.subr.mxu0 0.0
    %773 = vmatpush1.msra.mxu0 %v537
    %774 = vmatprep.mubr.f32.mxu0 %v369
    %775 = vmatmul.mubr.f32.gmra.mrb[0].mxu0 %v367
    %v776 = vpop.f32.mrb[0].mxu0
    %v777 = vadd.f32 %v707, %v776
    %v778 = vpop.f32.mrb[0].mxu0
    %779 = vdwg.mxu0
    %780 = vmatprep.subr.mxu0 0.0
    %781 = vmatpush1.msra.mxu0 %v538
    %782 = vmatprep.subr.mxu0 0.0
    %783 = vmatpush1.msra.mxu0 %v539
    %784 = vmatprep.subr.mxu0 0.0
    %785 = vmatpush1.msra.mxu0 %v540
    %786 = vmatprep.subr.mxu0 0.0
    %787 = vmatpush1.msra.mxu0 %v541
    %788 = vmatprep.subr.mxu0 0.0
    %789 = vmatpush1.msra.mxu0 %v542
    %790 = vmatprep.subr.mxu0 0.0
    %791 = vmatpush1.msra.mxu0 %v543
    %792 = vmatprep.subr.mxu0 0.0
    %793 = vmatpush1.msra.mxu0 %v544
    %794 = vmatprep.subr.mxu0 0.0
    %795 = vmatpush1.msra.mxu0 %v545
    %796 = vmatprep.subr.mxu0 0.0
    %797 = vmatpush1.msra.mxu0 %v546
    %798 = vmatprep.subr.mxu0 0.0
    %799 = vmatpush1.msra.mxu0 %v547
    %800 = vmatprep.subr.mxu0 0.0
    %801 = vmatpush1.msra.mxu0 %v548
    %802 = vmatprep.subr.mxu0 0.0
    %803 = vmatpush1.msra.mxu0 %v549
    %804 = vmatprep.subr.mxu0 0.0
    %805 = vmatpush1.msra.mxu0 %v550
    %806 = vmatprep.subr.mxu0 0.0
    %807 = vmatpush1.msra.mxu0 %v551
    %808 = vmatprep.subr.mxu0 0.0
    %809 = vmatpush1.msra.mxu0 %v552
    %810 = vmatprep.subr.mxu0 0.0
    %811 = vmatpush1.msra.mxu0 %v553
    %812 = vmatprep.subr.mxu0 0.0
    %813 = vmatpush1.msra.mxu0 %v554
    %814 = vmatprep.subr.mxu0 0.0
    %815 = vmatpush1.msra.mxu0 %v555
    %816 = vmatprep.subr.mxu0 0.0
    %817 = vmatpush1.msra.mxu0 %v556
    %818 = vmatprep.subr.mxu0 0.0
    %819 = vmatpush1.msra.mxu0 %v557
    %820 = vmatprep.subr.mxu0 0.0
    %821 = vmatpush1.msra.mxu0 %v558
    %822 = vmatprep.subr.mxu0 0.0
    %823 = vmatpush1.msra.mxu0 %v559
    %824 = vmatprep.subr.mxu0 0.0
    %825 = vmatpush1.msra.mxu0 %v560
    %826 = vmatprep.subr.mxu0 0.0
    %827 = vmatpush1.msra.mxu0 %v561
    %828 = vmatprep.subr.mxu0 0.0
    %829 = vmatpush1.msra.mxu0 %v562
    %830 = vmatprep.subr.mxu0 0.0
    %831 = vmatpush1.msra.mxu0 %v563
    %832 = vmatprep.subr.mxu0 0.0
    %833 = vmatpush1.msra.mxu0 %v564
    %834 = vmatprep.subr.mxu0 0.0
    %835 = vmatpush1.msra.mxu0 %v565
    %836 = vmatprep.subr.mxu0 0.0
    %837 = vmatpush1.msra.mxu0 %v566
    %838 = vmatprep.subr.mxu0 0.0
    %839 = vmatpush1.msra.mxu0 %v567
    %840 = vmatprep.subr.mxu0 0.0
    %841 = vmatpush1.msra.mxu0 %v568
    %842 = vmatprep.subr.mxu0 0.0
    %843 = vmatpush1.msra.mxu0 %v569
    %844 = vmatprep.mubr.f32.mxu0 %v440
    %845 = vmatmul.mubr.f32.gmra.mrb[0].mxu0 %v438
    %v846 = vpop.f32.mrb[0].mxu0
    %v847 = vadd.f32 %v777, %v846
    %v848 = vpop.f32.mrb[0].mxu0
    %849 = vdwg.mxu0
    %v850 = vld [vmem:[%s3] sm:$0xf]
    %v851 = vld [vmem:[#allocation2] sm:$0x1]
    %v853 = vlaneseq
    %v854 = vshrl.u32 %v853, 7
    %v855 = vsub.s32 0, %v854
    %v856 = vrot.slane %v851, %v855
    %vm858 = vcmask 31744
    %v860 = vsel %vm858, %v847, 0
    %vm862 = vcmask 1043456
    %v864 = vsel %vm862, %v850, 0
    %866 = vmatprep.subr.mxu0 0.0
    %867 = vmatpush1.msra.mxu0 %v864
    %868 = vmatprep.subr.mxu0 0.0
    %869 = vmatpush1.msra.mxu0 0.0
    %870 = vmatprep.subr.mxu0 0.0
    %871 = vmatpush1.msra.mxu0 0.0
    %872 = vmatprep.subr.mxu0 0.0
    %873 = vmatpush1.msra.mxu0 0.0
    %874 = vmatprep.subr.mxu0 0.0
    %875 = vmatpush1.msra.mxu0 0.0
    %876 = vmatprep.subr.mxu0 0.0
    %877 = vmatpush1.msra.mxu0 0.0
    %878 = vmatprep.subr.mxu0 0.0
    %879 = vmatpush1.msra.mxu0 0.0
    %880 = vmatprep.subr.mxu0 0.0
    %881 = vmatpush1.msra.mxu0 0.0
    %882 = vmatprep.subr.mxu0 0.0
    %883 = vmatpush1.msra.mxu0 0.0
    %884 = vmatprep.subr.mxu0 0.0
    %885 = vmatpush1.msra.mxu0 0.0
    %886 = vmatprep.subr.mxu0 0.0
    %887 = vmatpush1.msra.mxu0 0.0
    %888 = vmatprep.subr.mxu0 0.0
    %889 = vmatpush1.msra.mxu0 0.0
    %890 = vmatprep.subr.mxu0 0.0
    %891 = vmatpush1.msra.mxu0 0.0
    %892 = vmatprep.subr.mxu0 0.0
    %893 = vmatpush1.msra.mxu0 0.0
    %894 = vmatprep.subr.mxu0 0.0
    %895 = vmatpush1.msra.mxu0 0.0
    %896 = vmatprep.subr.mxu0 0.0
    %897 = vmatpush1.msra.mxu0 0.0
    %898 = vmatprep.subr.mxu0 0.0
    %899 = vmatpush1.msra.mxu0 0.0
    %900 = vmatprep.subr.mxu0 0.0
    %901 = vmatpush1.msra.mxu0 0.0
    %902 = vmatprep.subr.mxu0 0.0
    %903 = vmatpush1.msra.mxu0 0.0
    %904 = vmatprep.subr.mxu0 0.0
    %905 = vmatpush1.msra.mxu0 0.0
    %906 = vmatprep.subr.mxu0 0.0
    %907 = vmatpush1.msra.mxu0 0.0
    %908 = vmatprep.subr.mxu0 0.0
    %909 = vmatpush1.msra.mxu0 0.0
    %910 = vmatprep.subr.mxu0 0.0
    %911 = vmatpush1.msra.mxu0 0.0
    %912 = vmatprep.subr.mxu0 0.0
    %913 = vmatpush1.msra.mxu0 0.0
    %914 = vmatprep.subr.mxu0 0.0
    %915 = vmatpush1.msra.mxu0 0.0
    %916 = vmatprep.subr.mxu0 0.0
    %917 = vmatpush1.msra.mxu0 0.0
    %918 = vmatprep.subr.mxu0 0.0
    %919 = vmatpush1.msra.mxu0 0.0
    %920 = vmatprep.subr.mxu0 0.0
    %921 = vmatpush1.msra.mxu0 0.0
    %922 = vmatprep.subr.mxu0 0.0
    %923 = vmatpush1.msra.mxu0 0.0
    %924 = vmatprep.subr.mxu0 0.0
    %925 = vmatpush1.msra.mxu0 0.0
    %926 = vmatprep.subr.mxu0 0.0
    %927 = vmatpush1.msra.mxu0 0.0
    %928 = vmatprep.subr.mxu0 0.0
    %929 = vmatpush1.msra.mxu0 0.0
    %930 = vmatprep.mubr.f32.mxu0 0.0
    %931 = vmatmul.mubr.f32.gmra.mrb[0].mxu0 %v860
    %v932 = vpop.f32.mrb[0].mxu0
    %v933 = vadd.f32 %v856, %v932
    %v934 = vpop.f32.mrb[0].mxu0
    %935 = vdwg.mxu0
    %v936 = vmax.f32 %v933, 0.0
    %v937 = vld [vmem:[#allocation8] sm:$0x1]
    %v938 = vld [vmem:[#allocation9] sm:$0x1]
    %v940 = vlaneseq
    %v941 = vshrl.u32 %v940, 7
    %v942 = vsub.s32 0, %v941
    %v943 = vrot.slane %v938, %v942
    %vm945 = vcmask 7168
    %v947 = vsel %vm945, %v936, 0
    %vm949 = vcmask 1040384
    %v951 = vsel %vm949, %v937, 0
    %953 = vmatprep.subr.mxu0 0.0
    %954 = vmatpush1.msra.mxu0 %v951
    %955 = vmatprep.subr.mxu0 0.0
    %956 = vmatpush1.msra.mxu0 0.0
    %957 = vmatprep.subr.mxu0 0.0
    %958 = vmatpush1.msra.mxu0 0.0
    %959 = vmatprep.subr.mxu0 0.0
    %960 = vmatpush1.msra.mxu0 0.0
    %961 = vmatprep.subr.mxu0 0.0
    %962 = vmatpush1.msra.mxu0 0.0
    %963 = vmatprep.subr.mxu0 0.0
    %964 = vmatpush1.msra.mxu0 0.0
    %965 = vmatprep.subr.mxu0 0.0
    %966 = vmatpush1.msra.mxu0 0.0
    %967 = vmatprep.subr.mxu0 0.0
    %968 = vmatpush1.msra.mxu0 0.0
    %969 = vmatprep.subr.mxu0 0.0
    %970 = vmatpush1.msra.mxu0 0.0
    %971 = vmatprep.subr.mxu0 0.0
    %972 = vmatpush1.msra.mxu0 0.0
    %973 = vmatprep.subr.mxu0 0.0
    %974 = vmatpush1.msra.mxu0 0.0
    %975 = vmatprep.subr.mxu0 0.0
    %976 = vmatpush1.msra.mxu0 0.0
    %977 = vmatprep.subr.mxu0 0.0
    %978 = vmatpush1.msra.mxu0 0.0
    %979 = vmatprep.subr.mxu0 0.0
    %980 = vmatpush1.msra.mxu0 0.0
    %981 = vmatprep.subr.mxu0 0.0
    %982 = vmatpush1.msra.mxu0 0.0
    %983 = vmatprep.subr.mxu0 0.0
    %984 = vmatpush1.msra.mxu0 0.0
    %985 = vmatprep.subr.mxu0 0.0
    %986 = vmatpush1.msra.mxu0 0.0
    %987 = vmatprep.subr.mxu0 0.0
    %988 = vmatpush1.msra.mxu0 0.0
    %989 = vmatprep.subr.mxu0 0.0
    %990 = vmatpush1.msra.mxu0 0.0
    %991 = vmatprep.subr.mxu0 0.0
    %992 = vmatpush1.msra.mxu0 0.0
    %993 = vmatprep.subr.mxu0 0.0
    %994 = vmatpush1.msra.mxu0 0.0
    %995 = vmatprep.subr.mxu0 0.0
    %996 = vmatpush1.msra.mxu0 0.0
    %997 = vmatprep.subr.mxu0 0.0
    %998 = vmatpush1.msra.mxu0 0.0
    %999 = vmatprep.subr.mxu0 0.0
    %1000 = vmatpush1.msra.mxu0 0.0
    %1001 = vmatprep.subr.mxu0 0.0
    %1002 = vmatpush1.msra.mxu0 0.0
    %1003 = vmatprep.subr.mxu0 0.0
    %1004 = vmatpush1.msra.mxu0 0.0
    %1005 = vmatprep.subr.mxu0 0.0
    %1006 = vmatpush1.msra.mxu0 0.0
    %1007 = vmatprep.subr.mxu0 0.0
    %1008 = vmatpush1.msra.mxu0 0.0
    %1009 = vmatprep.subr.mxu0 0.0
    %1010 = vmatpush1.msra.mxu0 0.0
    %1011 = vmatprep.subr.mxu0 0.0
    %1012 = vmatpush1.msra.mxu0 0.0
    %1013 = vmatprep.subr.mxu0 0.0
    %1014 = vmatpush1.msra.mxu0 0.0
    %1015 = vmatprep.subr.mxu0 0.0
    %1016 = vmatpush1.msra.mxu0 0.0
    %1017 = vmatprep.mubr.f32.mxu0 0.0
    %1018 = vmatmul.mubr.f32.gmra.mrb[0].mxu0 %v947
    %v1019 = vpop.f32.mrb[0].mxu0
    %v1020 = vadd.f32 %v943, %v1019
    %v1021 = vpop.f32.mrb[0].mxu0
    %1022 = vdwg.mxu0
    %v1023 = vxor.u32 %v1020, 2147483648
    %v1024 = vmul.f32 %v1023, 1.442695
    %v1025 = vpow.pop %v1024
    %v1026 = vadd.f32 %v1025, 1.0
    %v1027 = vrcp.pop %v1026
    %v1028 = vmul.f32 1.0, %v1027
    %v1029 = vld [vmem:[%s7] sm:$0xff]
    %vm1030 = vcmask 15360
    %v1032 = vsel %vm1030, %v1029, 0
    %vm1034 = vcmask 1041408
    %v1036 = vsel %vm1034, %v1028, 0
    %1038 = vmatprep.subr.mxu0 0.0
    %1039 = vmatpush1.msra.mxu0 %v1036
    %1040 = vmatprep.subr.mxu0 0.0
    %1041 = vmatpush1.msra.mxu0 0.0
    %1042 = vmatprep.subr.mxu0 0.0
    %1043 = vmatpush1.msra.mxu0 0.0
    %1044 = vmatprep.subr.mxu0 0.0
    %1045 = vmatpush1.msra.mxu0 0.0
    %1046 = vmatprep.subr.mxu0 0.0
    %1047 = vmatpush1.msra.mxu0 0.0
    %1048 = vmatprep.subr.mxu0 0.0
    %1049 = vmatpush1.msra.mxu0 0.0
    %1050 = vmatprep.subr.mxu0 0.0
    %1051 = vmatpush1.msra.mxu0 0.0
    %1052 = vmatprep.subr.mxu0 0.0
    %1053 = vmatpush1.msra.mxu0 0.0
    %1054 = vmatprep.subr.mxu0 0.0
    %1055 = vmatpush1.msra.mxu0 0.0
    %1056 = vmatprep.subr.mxu0 0.0
    %1057 = vmatpush1.msra.mxu0 0.0
    %1058 = vmatprep.subr.mxu0 0.0
    %1059 = vmatpush1.msra.mxu0 0.0
    %1060 = vmatprep.subr.mxu0 0.0
    %1061 = vmatpush1.msra.mxu0 0.0
    %1062 = vmatprep.subr.mxu0 0.0
    %1063 = vmatpush1.msra.mxu0 0.0
    %1064 = vmatprep.subr.mxu0 0.0
    %1065 = vmatpush1.msra.mxu0 0.0
    %1066 = vmatprep.subr.mxu0 0.0
    %1067 = vmatpush1.msra.mxu0 0.0
    %1068 = vmatprep.subr.mxu0 0.0
    %1069 = vmatpush1.msra.mxu0 0.0
    %1070 = vmatprep.subr.mxu0 0.0
    %1071 = vmatpush1.msra.mxu0 0.0
    %1072 = vmatprep.subr.mxu0 0.0
    %1073 = vmatpush1.msra.mxu0 0.0
    %1074 = vmatprep.subr.mxu0 0.0
    %1075 = vmatpush1.msra.mxu0 0.0
    %1076 = vmatprep.subr.mxu0 0.0
    %1077 = vmatpush1.msra.mxu0 0.0
    %1078 = vmatprep.subr.mxu0 0.0
    %1079 = vmatpush1.msra.mxu0 0.0
    %1080 = vmatprep.subr.mxu0 0.0
    %1081 = vmatpush1.msra.mxu0 0.0
    %1082 = vmatprep.subr.mxu0 0.0
    %1083 = vmatpush1.msra.mxu0 0.0
    %1084 = vmatprep.subr.mxu0 0.0
    %1085 = vmatpush1.msra.mxu0 0.0
    %1086 = vmatprep.subr.mxu0 0.0
    %1087 = vmatpush1.msra.mxu0 0.0
    %1088 = vmatprep.subr.mxu0 0.0
    %1089 = vmatpush1.msra.mxu0 0.0
    %1090 = vmatprep.subr.mxu0 0.0
    %1091 = vmatpush1.msra.mxu0 0.0
    %1092 = vmatprep.subr.mxu0 0.0
    %1093 = vmatpush1.msra.mxu0 0.0
    %1094 = vmatprep.subr.mxu0 0.0
    %1095 = vmatpush1.msra.mxu0 0.0
    %1096 = vmatprep.subr.mxu0 0.0
    %1097 = vmatpush1.msra.mxu0 0.0
    %1098 = vmatprep.subr.mxu0 0.0
    %1099 = vmatpush1.msra.mxu0 0.0
    %1100 = vmatprep.subr.mxu0 0.0
    %1101 = vmatpush1.msra.mxu0 0.0
    %1102 = vmatprep.mubr.f32.mxu0 0.0
    %1103 = vmatmul.mubr.f32.gmra.mrb[0].mxu0 %v1032
    %v1104 = vpop.f32.mrb[0].mxu0
    %v1105 = vadd.f32 0.0, %v1104
    %v1106 = vpop.f32.mrb[0].mxu0
    %1107 = vdwg.mxu0
    %v1108 = vld [vmem:[#allocation11] sm:$0xff]
    %v1109 = vld [vmem:[#allocation11 + $0x8] sm:$0xff]
    %v1110 = vld [vmem:[#allocation11 + $0x10] sm:$0xff]
    %v1111 = vld [vmem:[#allocation11 + $0x18] sm:$0xff]
    %v1116 = vcombine.high %v1108, %v1108
    %v1117 = vcombine.high %v1109, %v1109
    %v1118 = vcombine.high %v1110, %v1110
    %v1119 = vcombine.high %v1111, %v1111
    %v1121 = vsel %vm858, %v1105, 0
    %v1123 = vsel %vm862, %v1108, 0
    %v1125 = vsel %vm862, %v1116, 0
    %v1127 = vsel %vm862, %v1109, 0
    %v1129 = vsel %vm862, %v1117, 0
    %v1131 = vsel %vm862, %v1110, 0
    %v1133 = vsel %vm862, %v1118, 0
    %v1135 = vsel %vm862, %v1111, 0
    %v1137 = vsel %vm862, %v1119, 0
    %1139 = vmatprep.subr.mxu0 %v1125
    %1140 = vmatpush1.msra.mxu0 %v1123
    %1141 = vmatprep.subr.mxu0 0.0
    %1142 = vmatpush1.msra.mxu0 0.0
    %1143 = vmatprep.subr.mxu0 0.0
    %1144 = vmatpush1.msra.mxu0 0.0
    %1145 = vmatprep.subr.mxu0 0.0
    %1146 = vmatpush1.msra.mxu0 0.0
    %1147 = vmatprep.subr.mxu0 0.0
    %1148 = vmatpush1.msra.mxu0 0.0
    %1149 = vmatprep.subr.mxu0 0.0
    %1150 = vmatpush1.msra.mxu0 0.0
    %1151 = vmatprep.subr.mxu0 0.0
    %1152 = vmatpush1.msra.mxu0 0.0
    %1153 = vmatprep.subr.mxu0 0.0
    %1154 = vmatpush1.msra.mxu0 0.0
    %1155 = vmatprep.subr.mxu0 0.0
    %1156 = vmatpush1.msra.mxu0 0.0
    %1157 = vmatprep.subr.mxu0 0.0
    %1158 = vmatpush1.msra.mxu0 0.0
    %1159 = vmatprep.subr.mxu0 0.0
    %1160 = vmatpush1.msra.mxu0 0.0
    %1161 = vmatprep.subr.mxu0 0.0
    %1162 = vmatpush1.msra.mxu0 0.0
    %1163 = vmatprep.subr.mxu0 0.0
    %1164 = vmatpush1.msra.mxu0 0.0
    %1165 = vmatprep.subr.mxu0 0.0
    %1166 = vmatpush1.msra.mxu0 0.0
    %1167 = vmatprep.subr.mxu0 0.0
    %1168 = vmatpush1.msra.mxu0 0.0
    %1169 = vmatprep.subr.mxu0 0.0
    %1170 = vmatpush1.msra.mxu0 0.0
    %1171 = vmatprep.subr.mxu0 0.0
    %1172 = vmatpush1.msra.mxu0 0.0
    %1173 = vmatprep.subr.mxu0 0.0
    %1174 = vmatpush1.msra.mxu0 0.0
    %1175 = vmatprep.subr.mxu0 0.0
    %1176 = vmatpush1.msra.mxu0 0.0
    %1177 = vmatprep.subr.mxu0 0.0
    %1178 = vmatpush1.msra.mxu0 0.0
    %1179 = vmatprep.subr.mxu0 0.0
    %1180 = vmatpush1.msra.mxu0 0.0
    %1181 = vmatprep.subr.mxu0 0.0
    %1182 = vmatpush1.msra.mxu0 0.0
    %1183 = vmatprep.subr.mxu0 0.0
    %1184 = vmatpush1.msra.mxu0 0.0
    %1185 = vmatprep.subr.mxu0 0.0
    %1186 = vmatpush1.msra.mxu0 0.0
    %1187 = vmatprep.subr.mxu0 0.0
    %1188 = vmatpush1.msra.mxu0 0.0
    %1189 = vmatprep.subr.mxu0 0.0
    %1190 = vmatpush1.msra.mxu0 0.0
    %1191 = vmatprep.subr.mxu0 0.0
    %1192 = vmatpush1.msra.mxu0 0.0
    %1193 = vmatprep.subr.mxu0 0.0
    %1194 = vmatpush1.msra.mxu0 0.0
    %1195 = vmatprep.subr.mxu0 0.0
    %1196 = vmatpush1.msra.mxu0 0.0
    %1197 = vmatprep.subr.mxu0 0.0
    %1198 = vmatpush1.msra.mxu0 0.0
    %1199 = vmatprep.subr.mxu0 0.0
    %1200 = vmatpush1.msra.mxu0 0.0
    %1201 = vmatprep.subr.mxu0 0.0
    %1202 = vmatpush1.msra.mxu0 0.0
    %1203 = vmatprep.mubr.f32.mxu0 0.0
    %1204 = vmatmul.mubr.f32.gmra.mrb[0].mxu0 %v1121
    %v1205 = vpop.f32.mrb[0].mxu0
    %v1206 = vadd.f32 0.0, %v1205
    %v1207 = vpop.f32.mrb[0].mxu0
    %v1208 = vadd.f32 0.0, %v1207
    %1209 = vdwg.mxu0
    %1210 = vmatprep.subr.mxu0 %v1129
    %1211 = vmatpush1.msra.mxu0 %v1127
    %1212 = vmatprep.subr.mxu0 0.0
    %1213 = vmatpush1.msra.mxu0 0.0
    %1214 = vmatprep.subr.mxu0 0.0
    %1215 = vmatpush1.msra.mxu0 0.0
    %1216 = vmatprep.subr.mxu0 0.0
    %1217 = vmatpush1.msra.mxu0 0.0
    %1218 = vmatprep.subr.mxu0 0.0
    %1219 = vmatpush1.msra.mxu0 0.0
    %1220 = vmatprep.subr.mxu0 0.0
    %1221 = vmatpush1.msra.mxu0 0.0
    %1222 = vmatprep.subr.mxu0 0.0
    %1223 = vmatpush1.msra.mxu0 0.0
    %1224 = vmatprep.subr.mxu0 0.0
    %1225 = vmatpush1.msra.mxu0 0.0
    %1226 = vmatprep.subr.mxu0 0.0
    %1227 = vmatpush1.msra.mxu0 0.0
    %1228 = vmatprep.subr.mxu0 0.0
    %1229 = vmatpush1.msra.mxu0 0.0
    %1230 = vmatprep.subr.mxu0 0.0
    %1231 = vmatpush1.msra.mxu0 0.0
    %1232 = vmatprep.subr.mxu0 0.0
    %1233 = vmatpush1.msra.mxu0 0.0
    %1234 = vmatprep.subr.mxu0 0.0
    %1235 = vmatpush1.msra.mxu0 0.0
    %1236 = vmatprep.subr.mxu0 0.0
    %1237 = vmatpush1.msra.mxu0 0.0
    %1238 = vmatprep.subr.mxu0 0.0
    %1239 = vmatpush1.msra.mxu0 0.0
    %1240 = vmatprep.subr.mxu0 0.0
    %1241 = vmatpush1.msra.mxu0 0.0
    %1242 = vmatprep.subr.mxu0 0.0
    %1243 = vmatpush1.msra.mxu0 0.0
    %1244 = vmatprep.subr.mxu0 0.0
    %1245 = vmatpush1.msra.mxu0 0.0
    %1246 = vmatprep.subr.mxu0 0.0
    %1247 = vmatpush1.msra.mxu0 0.0
    %1248 = vmatprep.subr.mxu0 0.0
    %1249 = vmatpush1.msra.mxu0 0.0
    %1250 = vmatprep.subr.mxu0 0.0
    %1251 = vmatpush1.msra.mxu0 0.0
    %1252 = vmatprep.subr.mxu0 0.0
    %1253 = vmatpush1.msra.mxu0 0.0
    %1254 = vmatprep.subr.mxu0 0.0
    %1255 = vmatpush1.msra.mxu0 0.0
    %1256 = vmatprep.subr.mxu0 0.0
    %1257 = vmatpush1.msra.mxu0 0.0
    %1258 = vmatprep.subr.mxu0 0.0
    %1259 = vmatpush1.msra.mxu0 0.0
    %1260 = vmatprep.subr.mxu0 0.0
    %1261 = vmatpush1.msra.mxu0 0.0
    %1262 = vmatprep.subr.mxu0 0.0
    %1263 = vmatpush1.msra.mxu0 0.0
    %1264 = vmatprep.subr.mxu0 0.0
    %1265 = vmatpush1.msra.mxu0 0.0
    %1266 = vmatprep.subr.mxu0 0.0
    %1267 = vmatpush1.msra.mxu0 0.0
    %1268 = vmatprep.subr.mxu0 0.0
    %1269 = vmatpush1.msra.mxu0 0.0
    %1270 = vmatprep.subr.mxu0 0.0
    %1271 = vmatpush1.msra.mxu0 0.0
    %1272 = vmatprep.subr.mxu0 0.0
    %1273 = vmatpush1.msra.mxu0 0.0
    %1274 = vmatprep.mubr.f32.mxu0 0.0
    %1275 = vmatmul.mubr.f32.gmra.mrb[0].mxu0 %v1121
    %v1276 = vpop.f32.mrb[0].mxu0
    %v1277 = vadd.f32 0.0, %v1276
    %v1278 = vpop.f32.mrb[0].mxu0
    %v1279 = vadd.f32 0.0, %v1278
    %1280 = vdwg.mxu0
    %1281 = vmatprep.subr.mxu0 %v1133
    %1282 = vmatpush1.msra.mxu0 %v1131
    %1283 = vmatprep.subr.mxu0 0.0
    %1284 = vmatpush1.msra.mxu0 0.0
    %1285 = vmatprep.subr.mxu0 0.0
    %1286 = vmatpush1.msra.mxu0 0.0
    %1287 = vmatprep.subr.mxu0 0.0
    %1288 = vmatpush1.msra.mxu0 0.0
    %1289 = vmatprep.subr.mxu0 0.0
    %1290 = vmatpush1.msra.mxu0 0.0
    %1291 = vmatprep.subr.mxu0 0.0
    %1292 = vmatpush1.msra.mxu0 0.0
    %1293 = vmatprep.subr.mxu0 0.0
    %1294 = vmatpush1.msra.mxu0 0.0
    %1295 = vmatprep.subr.mxu0 0.0
    %1296 = vmatpush1.msra.mxu0 0.0
    %1297 = vmatprep.subr.mxu0 0.0
    %1298 = vmatpush1.msra.mxu0 0.0
    %1299 = vmatprep.subr.mxu0 0.0
    %1300 = vmatpush1.msra.mxu0 0.0
    %1301 = vmatprep.subr.mxu0 0.0
    %1302 = vmatpush1.msra.mxu0 0.0
    %1303 = vmatprep.subr.mxu0 0.0
    %1304 = vmatpush1.msra.mxu0 0.0
    %1305 = vmatprep.subr.mxu0 0.0
    %1306 = vmatpush1.msra.mxu0 0.0
    %1307 = vmatprep.subr.mxu0 0.0
    %1308 = vmatpush1.msra.mxu0 0.0
    %1309 = vmatprep.subr.mxu0 0.0
    %1310 = vmatpush1.msra.mxu0 0.0
    %1311 = vmatprep.subr.mxu0 0.0
    %1312 = vmatpush1.msra.mxu0 0.0
    %1313 = vmatprep.subr.mxu0 0.0
    %1314 = vmatpush1.msra.mxu0 0.0
    %1315 = vmatprep.subr.mxu0 0.0
    %1316 = vmatpush1.msra.mxu0 0.0
    %1317 = vmatprep.subr.mxu0 0.0
    %1318 = vmatpush1.msra.mxu0 0.0
    %1319 = vmatprep.subr.mxu0 0.0
    %1320 = vmatpush1.msra.mxu0 0.0
    %1321 = vmatprep.subr.mxu0 0.0
    %1322 = vmatpush1.msra.mxu0 0.0
    %1323 = vmatprep.subr.mxu0 0.0
    %1324 = vmatpush1.msra.mxu0 0.0
    %1325 = vmatprep.subr.mxu0 0.0
    %1326 = vmatpush1.msra.mxu0 0.0
    %1327 = vmatprep.subr.mxu0 0.0
    %1328 = vmatpush1.msra.mxu0 0.0
    %1329 = vmatprep.subr.mxu0 0.0
    %1330 = vmatpush1.msra.mxu0 0.0
    %1331 = vmatprep.subr.mxu0 0.0
    %1332 = vmatpush1.msra.mxu0 0.0
    %1333 = vmatprep.subr.mxu0 0.0
    %1334 = vmatpush1.msra.mxu0 0.0
    %1335 = vmatprep.subr.mxu0 0.0
    %1336 = vmatpush1.msra.mxu0 0.0
    %1337 = vmatprep.subr.mxu0 0.0
    %1338 = vmatpush1.msra.mxu0 0.0
    %1339 = vmatprep.subr.mxu0 0.0
    %1340 = vmatpush1.msra.mxu0 0.0
    %1341 = vmatprep.subr.mxu0 0.0
    %1342 = vmatpush1.msra.mxu0 0.0
    %1343 = vmatprep.subr.mxu0 0.0
    %1344 = vmatpush1.msra.mxu0 0.0
    %1345 = vmatprep.mubr.f32.mxu0 0.0
    %1346 = vmatmul.mubr.f32.gmra.mrb[0].mxu0 %v1121
    %v1347 = vpop.f32.mrb[0].mxu0
    %v1348 = vadd.f32 0.0, %v1347
    %v1349 = vpop.f32.mrb[0].mxu0
    %v1350 = vadd.f32 0.0, %v1349
    %1351 = vdwg.mxu0
    %1352 = vmatprep.subr.mxu0 %v1137
    %1353 = vmatpush1.msra.mxu0 %v1135
    %1354 = vmatprep.subr.mxu0 0.0
    %1355 = vmatpush1.msra.mxu0 0.0
    %1356 = vmatprep.subr.mxu0 0.0
    %1357 = vmatpush1.msra.mxu0 0.0
    %1358 = vmatprep.subr.mxu0 0.0
    %1359 = vmatpush1.msra.mxu0 0.0
    %1360 = vmatprep.subr.mxu0 0.0
    %1361 = vmatpush1.msra.mxu0 0.0
    %1362 = vmatprep.subr.mxu0 0.0
    %1363 = vmatpush1.msra.mxu0 0.0
    %1364 = vmatprep.subr.mxu0 0.0
    %1365 = vmatpush1.msra.mxu0 0.0
    %1366 = vmatprep.subr.mxu0 0.0
    %1367 = vmatpush1.msra.mxu0 0.0
    %1368 = vmatprep.subr.mxu0 0.0
    %1369 = vmatpush1.msra.mxu0 0.0
    %1370 = vmatprep.subr.mxu0 0.0
    %1371 = vmatpush1.msra.mxu0 0.0
    %1372 = vmatprep.subr.mxu0 0.0
    %1373 = vmatpush1.msra.mxu0 0.0
    %1374 = vmatprep.subr.mxu0 0.0
    %1375 = vmatpush1.msra.mxu0 0.0
    %1376 = vmatprep.subr.mxu0 0.0
    %1377 = vmatpush1.msra.mxu0 0.0
    %1378 = vmatprep.subr.mxu0 0.0
    %1379 = vmatpush1.msra.mxu0 0.0
    %1380 = vmatprep.subr.mxu0 0.0
    %1381 = vmatpush1.msra.mxu0 0.0
    %1382 = vmatprep.subr.mxu0 0.0
    %1383 = vmatpush1.msra.mxu0 0.0
    %1384 = vmatprep.subr.mxu0 0.0
    %1385 = vmatpush1.msra.mxu0 0.0
    %1386 = vmatprep.subr.mxu0 0.0
    %1387 = vmatpush1.msra.mxu0 0.0
    %1388 = vmatprep.subr.mxu0 0.0
    %1389 = vmatpush1.msra.mxu0 0.0
    %1390 = vmatprep.subr.mxu0 0.0
    %1391 = vmatpush1.msra.mxu0 0.0
    %1392 = vmatprep.subr.mxu0 0.0
    %1393 = vmatpush1.msra.mxu0 0.0
    %1394 = vmatprep.subr.mxu0 0.0
    %1395 = vmatpush1.msra.mxu0 0.0
    %1396 = vmatprep.subr.mxu0 0.0
    %1397 = vmatpush1.msra.mxu0 0.0
    %1398 = vmatprep.subr.mxu0 0.0
    %1399 = vmatpush1.msra.mxu0 0.0
    %1400 = vmatprep.subr.mxu0 0.0
    %1401 = vmatpush1.msra.mxu0 0.0
    %1402 = vmatprep.subr.mxu0 0.0
    %1403 = vmatpush1.msra.mxu0 0.0
    %1404 = vmatprep.subr.mxu0 0.0
    %1405 = vmatpush1.msra.mxu0 0.0
    %1406 = vmatprep.subr.mxu0 0.0
    %1407 = vmatpush1.msra.mxu0 0.0
    %1408 = vmatprep.subr.mxu0 0.0
    %1409 = vmatpush1.msra.mxu0 0.0
    %1410 = vmatprep.subr.mxu0 0.0
    %1411 = vmatpush1.msra.mxu0 0.0
    %1412 = vmatprep.subr.mxu0 0.0
    %1413 = vmatpush1.msra.mxu0 0.0
    %1414 = vmatprep.subr.mxu0 0.0
    %1415 = vmatpush1.msra.mxu0 0.0
    %1416 = vmatprep.mubr.f32.mxu0 0.0
    %1417 = vmatmul.mubr.f32.gmra.mrb[0].mxu0 %v1121
    %v1418 = vpop.f32.mrb[0].mxu0
    %v1419 = vadd.f32 0.0, %v1418
    %v1420 = vpop.f32.mrb[0].mxu0
    %v1421 = vadd.f32 0.0, %v1420
    %1422 = vdwg.mxu0
    %v1423 = vmul.f32 %v145, %v1206
    %v1424 = vmul.f32 %v146, %v1208
    %v1425 = vmul.f32 %v147, %v1277
    %v1426 = vmul.f32 %v148, %v1279
    %v1427 = vmul.f32 %v149, %v1348
    %v1428 = vmul.f32 %v150, %v1350
    %v1429 = vmul.f32 %v151, %v1419
    %v1430 = vmul.f32 %v152, %v1421
    %v1431 = vpack.c.bf16 %v1423, %v1423
    %v1432 = vpack.c.bf16 %v1424, %v1424
    %v1433 = vpack.c.bf16 %v1425, %v1425
    %v1434 = vpack.c.bf16 %v1426, %v1426
    %v1435 = vpack.c.bf16 %v1427, %v1427
    %v1436 = vpack.c.bf16 %v1428, %v1428
    %v1437 = vpack.c.bf16 %v1429, %v1429
    %v1438 = vpack.c.bf16 %v1430, %v1430
    %v1439 = vld [vmem:[#allocation12] sm:$0xff]
    %v1440 = vld [vmem:[#allocation12 + $0x8] sm:$0xff]
    %v1441 = vld [vmem:[#allocation12 + $0x10] sm:$0xff]
    %v1442 = vld [vmem:[#allocation12 + $0x18] sm:$0xff]
    %v1443 = vld [vmem:[#allocation12 + $0x20] sm:$0xff]
    %v1444 = vld [vmem:[#allocation12 + $0x28] sm:$0xff]
    %v1445 = vld [vmem:[#allocation12 + $0x30] sm:$0xff]
    %v1446 = vld [vmem:[#allocation12 + $0x38] sm:$0xff]
    %v1447 = vld [vmem:[#allocation12 + $0x40] sm:$0xff]
    %v1448 = vld [vmem:[#allocation12 + $0x48] sm:$0xff]
    %v1449 = vld [vmem:[#allocation12 + $0x50] sm:$0xff]
    %v1450 = vld [vmem:[#allocation12 + $0x58] sm:$0xff]
    %v1451 = vld [vmem:[#allocation12 + $0x60] sm:$0xff]
    %v1452 = vld [vmem:[#allocation12 + $0x68] sm:$0xff]
    %v1453 = vld [vmem:[#allocation12 + $0x70] sm:$0xff]
    %v1454 = vld [vmem:[#allocation12 + $0x78] sm:$0xff]
    %v1455 = vld [vmem:[#allocation12 + $0x80] sm:$0xff]
    %v1456 = vld [vmem:[#allocation12 + $0x88] sm:$0xff]
    %v1457 = vld [vmem:[#allocation12 + $0x90] sm:$0xff]
    %v1458 = vld [vmem:[#allocation12 + $0x98] sm:$0xff]
    %v1459 = vld [vmem:[#allocation12 + $0xa0] sm:$0xff]
    %v1460 = vld [vmem:[#allocation12 + $0xa8] sm:$0xff]
    %v1461 = vld [vmem:[#allocation12 + $0xb0] sm:$0xff]
    %v1462 = vld [vmem:[#allocation12 + $0xb8] sm:$0xff]
    %v1463 = vld [vmem:[#allocation12 + $0xc0] sm:$0xff]
    %v1464 = vld [vmem:[#allocation12 + $0xc8] sm:$0xff]
    %v1465 = vld [vmem:[#allocation12 + $0xd0] sm:$0xff]
    %v1466 = vld [vmem:[#allocation12 + $0xd8] sm:$0xff]
    %v1467 = vld [vmem:[#allocation12 + $0xe0] sm:$0xff]
    %v1468 = vld [vmem:[#allocation12 + $0xe8] sm:$0xff]
    %v1469 = vld [vmem:[#allocation12 + $0xf0] sm:$0xff]
    %v1470 = vld [vmem:[#allocation12 + $0xf8] sm:$0xff]
    %v1471 = vld [vmem:[#allocation12 + $0x100] sm:$0xff]
    %v1472 = vld [vmem:[#allocation12 + $0x108] sm:$0xff]
    %v1473 = vld [vmem:[#allocation12 + $0x110] sm:$0xff]
    %v1474 = vld [vmem:[#allocation12 + $0x118] sm:$0xff]
    %v1475 = vld [vmem:[#allocation12 + $0x120] sm:$0xff]
    %v1476 = vld [vmem:[#allocation12 + $0x128] sm:$0xff]
    %v1477 = vld [vmem:[#allocation12 + $0x130] sm:$0xff]
    %v1478 = vld [vmem:[#allocation12 + $0x138] sm:$0xff]
    %v1479 = vld [vmem:[#allocation12 + $0x140] sm:$0xff]
    %v1480 = vld [vmem:[#allocation12 + $0x148] sm:$0xff]
    %v1481 = vld [vmem:[#allocation12 + $0x150] sm:$0xff]
    %v1482 = vld [vmem:[#allocation12 + $0x158] sm:$0xff]
    %v1483 = vld [vmem:[#allocation12 + $0x160] sm:$0xff]
    %v1484 = vld [vmem:[#allocation12 + $0x168] sm:$0xff]
    %v1485 = vld [vmem:[#allocation12 + $0x170] sm:$0xff]
    %v1486 = vld [vmem:[#allocation12 + $0x178] sm:$0xff]
    %v1487 = vld [vmem:[#allocation12 + $0x180] sm:$0xff]
    %v1488 = vld [vmem:[#allocation12 + $0x188] sm:$0xff]
    %v1489 = vld [vmem:[#allocation12 + $0x190] sm:$0xff]
    %v1490 = vld [vmem:[#allocation12 + $0x198] sm:$0xff]
    %v1491 = vld [vmem:[#allocation12 + $0x1a0] sm:$0xff]
    %v1492 = vld [vmem:[#allocation12 + $0x1a8] sm:$0xff]
    %v1493 = vld [vmem:[#allocation12 + $0x1b0] sm:$0xff]
    %v1494 = vld [vmem:[#allocation12 + $0x1b8] sm:$0xff]
    %v1495 = vld [vmem:[#allocation12 + $0x1c0] sm:$0xff]
    %v1496 = vld [vmem:[#allocation12 + $0x1c8] sm:$0xff]
    %v1497 = vld [vmem:[#allocation12 + $0x1d0] sm:$0xff]
    %v1498 = vld [vmem:[#allocation12 + $0x1d8] sm:$0xff]
    %v1499 = vld [vmem:[#allocation12 + $0x1e0] sm:$0xff]
    %v1500 = vld [vmem:[#allocation12 + $0x1e8] sm:$0xff]
    %v1501 = vld [vmem:[#allocation12 + $0x1f0] sm:$0xff]
    %v1502 = vld [vmem:[#allocation12 + $0x1f8] sm:$0xff]
    %v1503 = vld [vmem:[#allocation12 + $0x200] sm:$0xff]
    %v1504 = vld [vmem:[#allocation12 + $0x208] sm:$0xff]
    %v1505 = vld [vmem:[#allocation12 + $0x210] sm:$0xff]
    %v1506 = vld [vmem:[#allocation12 + $0x218] sm:$0xff]
    %v1507 = vld [vmem:[#allocation12 + $0x220] sm:$0xff]
    %v1508 = vld [vmem:[#allocation12 + $0x228] sm:$0xff]
    %v1509 = vld [vmem:[#allocation12 + $0x230] sm:$0xff]
    %v1510 = vld [vmem:[#allocation12 + $0x238] sm:$0xff]
    %v1511 = vld [vmem:[#allocation12 + $0x240] sm:$0xff]
    %v1512 = vld [vmem:[#allocation12 + $0x248] sm:$0xff]
    %v1513 = vld [vmem:[#allocation12 + $0x250] sm:$0xff]
    %v1514 = vld [vmem:[#allocation12 + $0x258] sm:$0xff]
    %v1515 = vld [vmem:[#allocation12 + $0x260] sm:$0xff]
    %v1516 = vld [vmem:[#allocation12 + $0x268] sm:$0xff]
    %v1517 = vld [vmem:[#allocation12 + $0x270] sm:$0xff]
    %v1518 = vld [vmem:[#allocation12 + $0x278] sm:$0xff]
    %v1519 = vld [vmem:[#allocation12 + $0x280] sm:$0xff]
    %v1520 = vld [vmem:[#allocation12 + $0x288] sm:$0xff]
    %v1521 = vld [vmem:[#allocation12 + $0x290] sm:$0xff]
    %v1522 = vld [vmem:[#allocation12 + $0x298] sm:$0xff]
    %v1523 = vld [vmem:[#allocation12 + $0x2a0] sm:$0xff]
    %v1524 = vld [vmem:[#allocation12 + $0x2a8] sm:$0xff]
    %v1525 = vld [vmem:[#allocation12 + $0x2b0] sm:$0xff]
    %v1526 = vld [vmem:[#allocation12 + $0x2b8] sm:$0xff]
    %v1527 = vld [vmem:[#allocation12 + $0x2c0] sm:$0xff]
    %v1528 = vld [vmem:[#allocation12 + $0x2c8] sm:$0xff]
    %v1529 = vld [vmem:[#allocation12 + $0x2d0] sm:$0xff]
    %v1530 = vld [vmem:[#allocation12 + $0x2d8] sm:$0xff]
    %v1531 = vld [vmem:[#allocation12 + $0x2e0] sm:$0xff]
    %v1532 = vld [vmem:[#allocation12 + $0x2e8] sm:$0xff]
    %v1533 = vld [vmem:[#allocation12 + $0x2f0] sm:$0xff]
    %v1534 = vld [vmem:[#allocation12 + $0x2f8] sm:$0xff]
    %v1535 = vld [vmem:[#allocation12 + $0x300] sm:$0xff]
    %v1536 = vld [vmem:[#allocation12 + $0x308] sm:$0xff]
    %v1537 = vld [vmem:[#allocation12 + $0x310] sm:$0xff]
    %v1538 = vld [vmem:[#allocation12 + $0x318] sm:$0xff]
    %v1539 = vld [vmem:[#allocation12 + $0x320] sm:$0xff]
    %v1540 = vld [vmem:[#allocation12 + $0x328] sm:$0xff]
    %v1541 = vld [vmem:[#allocation12 + $0x330] sm:$0xff]
    %v1542 = vld [vmem:[#allocation12 + $0x338] sm:$0xff]
    %v1543 = vld [vmem:[#allocation12 + $0x340] sm:$0xff]
    %v1544 = vld [vmem:[#allocation12 + $0x348] sm:$0xff]
    %v1545 = vld [vmem:[#allocation12 + $0x350] sm:$0xff]
    %v1546 = vld [vmem:[#allocation12 + $0x358] sm:$0xff]
    %v1547 = vld [vmem:[#allocation12 + $0x360] sm:$0xff]
    %v1548 = vld [vmem:[#allocation12 + $0x368] sm:$0xff]
    %v1549 = vld [vmem:[#allocation12 + $0x370] sm:$0xff]
    %v1550 = vld [vmem:[#allocation12 + $0x378] sm:$0xff]
    %v1551 = vld [vmem:[#allocation12 + $0x380] sm:$0xff]
    %v1552 = vld [vmem:[#allocation12 + $0x388] sm:$0xff]
    %v1553 = vld [vmem:[#allocation12 + $0x390] sm:$0xff]
    %v1554 = vld [vmem:[#allocation12 + $0x398] sm:$0xff]
    %v1555 = vld [vmem:[#allocation12 + $0x3a0] sm:$0xff]
    %v1556 = vld [vmem:[#allocation12 + $0x3a8] sm:$0xff]
    %v1557 = vld [vmem:[#allocation12 + $0x3b0] sm:$0xff]
    %v1558 = vld [vmem:[#allocation12 + $0x3b8] sm:$0xff]
    %v1559 = vld [vmem:[#allocation12 + $0x3c0] sm:$0xff]
    %v1560 = vld [vmem:[#allocation12 + $0x3c8] sm:$0xff]
    %v1561 = vld [vmem:[#allocation12 + $0x3d0] sm:$0xff]
    %v1562 = vld [vmem:[#allocation12 + $0x3d8] sm:$0xff]
    %v1563 = vld [vmem:[#allocation12 + $0x3e0] sm:$0xff]
    %v1564 = vld [vmem:[#allocation12 + $0x3e8] sm:$0xff]
    %v1565 = vld [vmem:[#allocation12 + $0x3f0] sm:$0xff]
    %v1566 = vld [vmem:[#allocation12 + $0x3f8] sm:$0xff]
    %v1567 = vld [vmem:[#allocation12 + $0x400] sm:$0xff]
    %v1568 = vld [vmem:[#allocation12 + $0x408] sm:$0xff]
    %v1569 = vld [vmem:[#allocation12 + $0x410] sm:$0xff]
    %v1570 = vld [vmem:[#allocation12 + $0x418] sm:$0xff]
    %v1571 = vld [vmem:[#allocation12 + $0x420] sm:$0xff]
    %v1572 = vld [vmem:[#allocation12 + $0x428] sm:$0xff]
    %v1573 = vld [vmem:[#allocation12 + $0x430] sm:$0xff]
    %v1574 = vld [vmem:[#allocation12 + $0x438] sm:$0xff]
    %v1575 = vld [vmem:[#allocation12 + $0x440] sm:$0xff]
    %v1576 = vld [vmem:[#allocation12 + $0x448] sm:$0xff]
    %v1577 = vld [vmem:[#allocation12 + $0x450] sm:$0xff]
    %v1578 = vld [vmem:[#allocation12 + $0x458] sm:$0xff]
    %v1579 = vld [vmem:[#allocation12 + $0x460] sm:$0xff]
    %v1580 = vld [vmem:[#allocation12 + $0x468] sm:$0xff]
    %v1581 = vld [vmem:[#allocation12 + $0x470] sm:$0xff]
    %v1582 = vld [vmem:[#allocation12 + $0x478] sm:$0xff]
    %v1583 = vld [vmem:[#allocation12 + $0x480] sm:$0xff]
    %v1584 = vld [vmem:[#allocation12 + $0x488] sm:$0xff]
    %v1585 = vld [vmem:[#allocation12 + $0x490] sm:$0xff]
    %v1586 = vld [vmem:[#allocation12 + $0x498] sm:$0xff]
    %v1587 = vld [vmem:[#allocation12 + $0x4a0] sm:$0xff]
    %v1588 = vld [vmem:[#allocation12 + $0x4a8] sm:$0xff]
    %v1589 = vld [vmem:[#allocation12 + $0x4b0] sm:$0xff]
    %v1590 = vld [vmem:[#allocation12 + $0x4b8] sm:$0xff]
    %v1591 = vld [vmem:[#allocation12 + $0x4c0] sm:$0xff]
    %v1592 = vld [vmem:[#allocation12 + $0x4c8] sm:$0xff]
    %v1593 = vld [vmem:[#allocation12 + $0x4d0] sm:$0xff]
    %v1594 = vld [vmem:[#allocation12 + $0x4d8] sm:$0xff]
    %v1595 = vld [vmem:[#allocation12 + $0x4e0] sm:$0xff]
    %v1596 = vld [vmem:[#allocation12 + $0x4e8] sm:$0xff]
    %v1597 = vld [vmem:[#allocation12 + $0x4f0] sm:$0xff]
    %v1598 = vld [vmem:[#allocation12 + $0x4f8] sm:$0xff]
    %v1599 = vld [vmem:[#allocation12 + $0x500] sm:$0xff]
    %v1600 = vld [vmem:[#allocation12 + $0x508] sm:$0xff]
    %v1601 = vld [vmem:[#allocation12 + $0x510] sm:$0xff]
    %v1602 = vld [vmem:[#allocation12 + $0x518] sm:$0xff]
    %v1603 = vld [vmem:[#allocation12 + $0x520] sm:$0xff]
    %v1604 = vld [vmem:[#allocation12 + $0x528] sm:$0xff]
    %v1605 = vld [vmem:[#allocation12 + $0x530] sm:$0xff]
    %v1606 = vld [vmem:[#allocation12 + $0x538] sm:$0xff]
    %v1607 = vld [vmem:[#allocation12 + $0x540] sm:$0xff]
    %v1608 = vld [vmem:[#allocation12 + $0x548] sm:$0xff]
    %v1609 = vld [vmem:[#allocation12 + $0x550] sm:$0xff]
    %v1610 = vld [vmem:[#allocation12 + $0x558] sm:$0xff]
    %v1611 = vld [vmem:[#allocation12 + $0x560] sm:$0xff]
    %v1612 = vld [vmem:[#allocation12 + $0x568] sm:$0xff]
    %v1613 = vld [vmem:[#allocation12 + $0x570] sm:$0xff]
    %v1614 = vld [vmem:[#allocation12 + $0x578] sm:$0xff]
    %v1615 = vld [vmem:[#allocation12 + $0x580] sm:$0xff]
    %v1616 = vld [vmem:[#allocation12 + $0x588] sm:$0xff]
    %v1617 = vld [vmem:[#allocation12 + $0x590] sm:$0xff]
    %v1618 = vld [vmem:[#allocation12 + $0x598] sm:$0xff]
    %v1619 = vld [vmem:[#allocation12 + $0x5a0] sm:$0xff]
    %v1620 = vld [vmem:[#allocation12 + $0x5a8] sm:$0xff]
    %v1621 = vld [vmem:[#allocation12 + $0x5b0] sm:$0xff]
    %v1622 = vld [vmem:[#allocation12 + $0x5b8] sm:$0xff]
    %v1623 = vld [vmem:[#allocation12 + $0x5c0] sm:$0xff]
    %v1624 = vld [vmem:[#allocation12 + $0x5c8] sm:$0xff]
    %v1625 = vld [vmem:[#allocation12 + $0x5d0] sm:$0xff]
    %v1626 = vld [vmem:[#allocation12 + $0x5d8] sm:$0xff]
    %v1627 = vld [vmem:[#allocation12 + $0x5e0] sm:$0xff]
    %v1628 = vld [vmem:[#allocation12 + $0x5e8] sm:$0xff]
    %v1629 = vld [vmem:[#allocation12 + $0x5f0] sm:$0xff]
    %v1630 = vld [vmem:[#allocation12 + $0x5f8] sm:$0xff]
    %v1631 = vld [vmem:[#allocation12 + $0x600] sm:$0xff]
    %v1632 = vld [vmem:[#allocation12 + $0x608] sm:$0xff]
    %v1633 = vld [vmem:[#allocation12 + $0x610] sm:$0xff]
    %v1634 = vld [vmem:[#allocation12 + $0x618] sm:$0xff]
    %v1635 = vld [vmem:[#allocation12 + $0x620] sm:$0xff]
    %v1636 = vld [vmem:[#allocation12 + $0x628] sm:$0xff]
    %v1637 = vld [vmem:[#allocation12 + $0x630] sm:$0xff]
    %v1638 = vld [vmem:[#allocation12 + $0x638] sm:$0xff]
    %v1639 = vld [vmem:[#allocation12 + $0x640] sm:$0xff]
    %v1640 = vld [vmem:[#allocation12 + $0x648] sm:$0xff]
    %v1641 = vld [vmem:[#allocation12 + $0x650] sm:$0xff]
    %v1642 = vld [vmem:[#allocation12 + $0x658] sm:$0xff]
    %v1643 = vld [vmem:[#allocation12 + $0x660] sm:$0xff]
    %v1644 = vld [vmem:[#allocation12 + $0x668] sm:$0xff]
    %v1645 = vld [vmem:[#allocation12 + $0x670] sm:$0xff]
    %v1646 = vld [vmem:[#allocation12 + $0x678] sm:$0xff]
    %v1647 = vld [vmem:[#allocation12 + $0x680] sm:$0xff]
    %v1648 = vld [vmem:[#allocation12 + $0x688] sm:$0xff]
    %v1649 = vld [vmem:[#allocation12 + $0x690] sm:$0xff]
    %v1650 = vld [vmem:[#allocation12 + $0x698] sm:$0xff]
    %v1651 = vld [vmem:[#allocation12 + $0x6a0] sm:$0xff]
    %v1652 = vld [vmem:[#allocation12 + $0x6a8] sm:$0xff]
    %v1653 = vld [vmem:[#allocation12 + $0x6b0] sm:$0xff]
    %v1654 = vld [vmem:[#allocation12 + $0x6b8] sm:$0xff]
    %v1655 = vld [vmem:[#allocation12 + $0x6c0] sm:$0xff]
    %v1656 = vld [vmem:[#allocation12 + $0x6c8] sm:$0xff]
    %v1657 = vld [vmem:[#allocation12 + $0x6d0] sm:$0xff]
    %v1658 = vld [vmem:[#allocation12 + $0x6d8] sm:$0xff]
    %v1659 = vld [vmem:[#allocation12 + $0x6e0] sm:$0xff]
    %v1660 = vld [vmem:[#allocation12 + $0x6e8] sm:$0xff]
    %v1661 = vld [vmem:[#allocation12 + $0x6f0] sm:$0xff]
    %v1662 = vld [vmem:[#allocation12 + $0x6f8] sm:$0xff]
    %v1663 = vld [vmem:[#allocation12 + $0x700] sm:$0xff]
    %v1664 = vld [vmem:[#allocation12 + $0x708] sm:$0xff]
    %v1665 = vld [vmem:[#allocation12 + $0x710] sm:$0xff]
    %v1666 = vld [vmem:[#allocation12 + $0x718] sm:$0xff]
    %v1667 = vld [vmem:[#allocation12 + $0x720] sm:$0xff]
    %v1668 = vld [vmem:[#allocation12 + $0x728] sm:$0xff]
    %v1669 = vld [vmem:[#allocation12 + $0x730] sm:$0xff]
    %v1670 = vld [vmem:[#allocation12 + $0x738] sm:$0xff]
    %v1671 = vld [vmem:[#allocation12 + $0x740] sm:$0xff]
    %v1672 = vld [vmem:[#allocation12 + $0x748] sm:$0xff]
    %v1673 = vld [vmem:[#allocation12 + $0x750] sm:$0xff]
    %v1674 = vld [vmem:[#allocation12 + $0x758] sm:$0xff]
    %v1675 = vld [vmem:[#allocation12 + $0x760] sm:$0xff]
    %v1676 = vld [vmem:[#allocation12 + $0x768] sm:$0xff]
    %v1677 = vld [vmem:[#allocation12 + $0x770] sm:$0xff]
    %v1678 = vld [vmem:[#allocation12 + $0x778] sm:$0xff]
    %v1679 = vld [vmem:[#allocation12 + $0x780] sm:$0xff]
    %v1680 = vld [vmem:[#allocation12 + $0x788] sm:$0xff]
    %v1681 = vld [vmem:[#allocation12 + $0x790] sm:$0xff]
    %v1682 = vld [vmem:[#allocation12 + $0x798] sm:$0xff]
    %v1683 = vld [vmem:[#allocation12 + $0x7a0] sm:$0xff]
    %v1684 = vld [vmem:[#allocation12 + $0x7a8] sm:$0xff]
    %v1685 = vld [vmem:[#allocation12 + $0x7b0] sm:$0xff]
    %v1686 = vld [vmem:[#allocation12 + $0x7b8] sm:$0xff]
    %v1687 = vld [vmem:[#allocation12 + $0x7c0] sm:$0xff]
    %v1688 = vld [vmem:[#allocation12 + $0x7c8] sm:$0xff]
    %v1689 = vld [vmem:[#allocation12 + $0x7d0] sm:$0xff]
    %v1690 = vld [vmem:[#allocation12 + $0x7d8] sm:$0xff]
    %v1691 = vld [vmem:[#allocation12 + $0x7e0] sm:$0xff]
    %v1692 = vld [vmem:[#allocation12 + $0x7e8] sm:$0xff]
    %v1693 = vld [vmem:[#allocation12 + $0x7f0] sm:$0xff]
    %v1694 = vld [vmem:[#allocation12 + $0x7f8] sm:$0xff]
    %v1695 = vld [vmem:[#allocation12 + $0x800] sm:$0xff]
    %v1696 = vld [vmem:[#allocation12 + $0x808] sm:$0xff]
    %v1697 = vld [vmem:[#allocation12 + $0x810] sm:$0xff]
    %v1698 = vld [vmem:[#allocation12 + $0x818] sm:$0xff]
    %v1699 = vld [vmem:[#allocation12 + $0x820] sm:$0xff]
    %v1700 = vld [vmem:[#allocation12 + $0x828] sm:$0xff]
    %v1701 = vld [vmem:[#allocation12 + $0x830] sm:$0xff]
    %v1702 = vld [vmem:[#allocation12 + $0x838] sm:$0xff]
    %v1703 = vld [vmem:[#allocation12 + $0x840] sm:$0xff]
    %v1704 = vld [vmem:[#allocation12 + $0x848] sm:$0xff]
    %v1705 = vld [vmem:[#allocation12 + $0x850] sm:$0xff]
    %v1706 = vld [vmem:[#allocation12 + $0x858] sm:$0xff]
    %v1707 = vld [vmem:[#allocation12 + $0x860] sm:$0xff]
    %v1708 = vld [vmem:[#allocation12 + $0x868] sm:$0xff]
    %v1709 = vld [vmem:[#allocation12 + $0x870] sm:$0xff]
    %v1710 = vld [vmem:[#allocation12 + $0x878] sm:$0xff]
    %v1711 = vld [vmem:[#allocation12 + $0x880] sm:$0xff]
    %v1712 = vld [vmem:[#allocation12 + $0x888] sm:$0xff]
    %v1713 = vld [vmem:[#allocation12 + $0x890] sm:$0xff]
    %v1714 = vld [vmem:[#allocation12 + $0x898] sm:$0xff]
    %v1715 = vld [vmem:[#allocation12 + $0x8a0] sm:$0xff]
    %v1716 = vld [vmem:[#allocation12 + $0x8a8] sm:$0xff]
    %v1717 = vld [vmem:[#allocation12 + $0x8b0] sm:$0xff]
    %v1718 = vld [vmem:[#allocation12 + $0x8b8] sm:$0xff]
    %v1719 = vld [vmem:[#allocation12 + $0x8c0] sm:$0xff]
    %v1720 = vld [vmem:[#allocation12 + $0x8c8] sm:$0xff]
    %v1721 = vld [vmem:[#allocation12 + $0x8d0] sm:$0xff]
    %v1722 = vld [vmem:[#allocation12 + $0x8d8] sm:$0xff]
    %v1723 = vld [vmem:[#allocation12 + $0x8e0] sm:$0xff]
    %v1724 = vld [vmem:[#allocation12 + $0x8e8] sm:$0xff]
    %v1725 = vld [vmem:[#allocation12 + $0x8f0] sm:$0xff]
    %v1726 = vld [vmem:[#allocation12 + $0x8f8] sm:$0xff]
    %v1727 = vld [vmem:[#allocation12 + $0x900] sm:$0xff]
    %v1728 = vld [vmem:[#allocation12 + $0x908] sm:$0xff]
    %v1729 = vld [vmem:[#allocation12 + $0x910] sm:$0xff]
    %v1730 = vld [vmem:[#allocation12 + $0x918] sm:$0xff]
    %v1731 = vld [vmem:[#allocation12 + $0x920] sm:$0xff]
    %v1732 = vld [vmem:[#allocation12 + $0x928] sm:$0xff]
    %v1733 = vld [vmem:[#allocation12 + $0x930] sm:$0xff]
    %v1734 = vld [vmem:[#allocation12 + $0x938] sm:$0xff]
    %v1735 = vld [vmem:[#allocation12 + $0x940] sm:$0xff]
    %v1736 = vld [vmem:[#allocation12 + $0x948] sm:$0xff]
    %v1737 = vld [vmem:[#allocation12 + $0x950] sm:$0xff]
    %v1738 = vld [vmem:[#allocation12 + $0x958] sm:$0xff]
    %v1739 = vld [vmem:[#allocation12 + $0x960] sm:$0xff]
    %v1740 = vld [vmem:[#allocation12 + $0x968] sm:$0xff]
    %v1741 = vld [vmem:[#allocation12 + $0x970] sm:$0xff]
    %v1742 = vld [vmem:[#allocation12 + $0x978] sm:$0xff]
    %v1743 = vld [vmem:[#allocation12 + $0x980] sm:$0xff]
    %v1744 = vld [vmem:[#allocation12 + $0x988] sm:$0xff]
    %v1745 = vld [vmem:[#allocation12 + $0x990] sm:$0xff]
    %v1746 = vld [vmem:[#allocation12 + $0x998] sm:$0xff]
    %v1747 = vld [vmem:[#allocation12 + $0x9a0] sm:$0xff]
    %v1748 = vld [vmem:[#allocation12 + $0x9a8] sm:$0xff]
    %v1749 = vld [vmem:[#allocation12 + $0x9b0] sm:$0xff]
    %v1750 = vld [vmem:[#allocation12 + $0x9b8] sm:$0xff]
    %v1751 = vld [vmem:[#allocation12 + $0x9c0] sm:$0xff]
    %v1752 = vld [vmem:[#allocation12 + $0x9c8] sm:$0xff]
    %v1753 = vld [vmem:[#allocation12 + $0x9d0] sm:$0xff]
    %v1754 = vld [vmem:[#allocation12 + $0x9d8] sm:$0xff]
    %v1755 = vld [vmem:[#allocation12 + $0x9e0] sm:$0xff]
    %v1756 = vld [vmem:[#allocation12 + $0x9e8] sm:$0xff]
    %v1757 = vld [vmem:[#allocation12 + $0x9f0] sm:$0xff]
    %v1758 = vld [vmem:[#allocation12 + $0x9f8] sm:$0xff]
    %v1759 = vld [vmem:[#allocation12 + $0xa00] sm:$0xff]
    %v1760 = vld [vmem:[#allocation12 + $0xa08] sm:$0xff]
    %v1761 = vld [vmem:[#allocation12 + $0xa10] sm:$0xff]
    %v1762 = vld [vmem:[#allocation12 + $0xa18] sm:$0xff]
    %v1763 = vld [vmem:[#allocation12 + $0xa20] sm:$0xff]
    %v1764 = vld [vmem:[#allocation12 + $0xa28] sm:$0xff]
    %v1765 = vld [vmem:[#allocation12 + $0xa30] sm:$0xff]
    %v1766 = vld [vmem:[#allocation12 + $0xa38] sm:$0xff]
    %v1767 = vld [vmem:[#allocation12 + $0xa40] sm:$0xff]
    %v1768 = vld [vmem:[#allocation12 + $0xa48] sm:$0xff]
    %v1769 = vld [vmem:[#allocation12 + $0xa50] sm:$0xff]
    %v1770 = vld [vmem:[#allocation12 + $0xa58] sm:$0xff]
    %v1771 = vld [vmem:[#allocation12 + $0xa60] sm:$0xff]
    %v1772 = vld [vmem:[#allocation12 + $0xa68] sm:$0xff]
    %v1773 = vld [vmem:[#allocation12 + $0xa70] sm:$0xff]
    %v1774 = vld [vmem:[#allocation12 + $0xa78] sm:$0xff]
    %v1775 = vld [vmem:[#allocation12 + $0xa80] sm:$0xff]
    %v1776 = vld [vmem:[#allocation12 + $0xa88] sm:$0xff]
    %v1777 = vld [vmem:[#allocation12 + $0xa90] sm:$0xff]
    %v1778 = vld [vmem:[#allocation12 + $0xa98] sm:$0xff]
    %v1779 = vld [vmem:[#allocation12 + $0xaa0] sm:$0xff]
    %v1780 = vld [vmem:[#allocation12 + $0xaa8] sm:$0xff]
    %v1781 = vld [vmem:[#allocation12 + $0xab0] sm:$0xff]
    %v1782 = vld [vmem:[#allocation12 + $0xab8] sm:$0xff]
    %v1783 = vld [vmem:[#allocation12 + $0xac0] sm:$0xff]
    %v1784 = vld [vmem:[#allocation12 + $0xac8] sm:$0xff]
    %v1785 = vld [vmem:[#allocation12 + $0xad0] sm:$0xff]
    %v1786 = vld [vmem:[#allocation12 + $0xad8] sm:$0xff]
    %v1787 = vld [vmem:[#allocation12 + $0xae0] sm:$0xff]
    %v1788 = vld [vmem:[#allocation12 + $0xae8] sm:$0xff]
    %v1789 = vld [vmem:[#allocation12 + $0xaf0] sm:$0xff]
    %v1790 = vld [vmem:[#allocation12 + $0xaf8] sm:$0xff]
    %v1791 = vld [vmem:[#allocation12 + $0xb00] sm:$0xff]
    %v1792 = vld [vmem:[#allocation12 + $0xb08] sm:$0xff]
    %v1793 = vld [vmem:[#allocation12 + $0xb10] sm:$0xff]
    %v1794 = vld [vmem:[#allocation12 + $0xb18] sm:$0xff]
    %v1795 = vld [vmem:[#allocation12 + $0xb20] sm:$0xff]
    %v1796 = vld [vmem:[#allocation12 + $0xb28] sm:$0xff]
    %v1797 = vld [vmem:[#allocation12 + $0xb30] sm:$0xff]
    %v1798 = vld [vmem:[#allocation12 + $0xb38] sm:$0xff]
    %v1799 = vld [vmem:[#allocation12 + $0xb40] sm:$0xff]
    %v1800 = vld [vmem:[#allocation12 + $0xb48] sm:$0xff]
    %v1801 = vld [vmem:[#allocation12 + $0xb50] sm:$0xff]
    %v1802 = vld [vmem:[#allocation12 + $0xb58] sm:$0xff]
    %v1803 = vld [vmem:[#allocation12 + $0xb60] sm:$0xff]
    %v1804 = vld [vmem:[#allocation12 + $0xb68] sm:$0xff]
    %v1805 = vld [vmem:[#allocation12 + $0xb70] sm:$0xff]
    %v1806 = vld [vmem:[#allocation12 + $0xb78] sm:$0xff]
    %v1807 = vld [vmem:[#allocation12 + $0xb80] sm:$0xff]
    %v1808 = vld [vmem:[#allocation12 + $0xb88] sm:$0xff]
    %v1809 = vld [vmem:[#allocation12 + $0xb90] sm:$0xff]
    %v1810 = vld [vmem:[#allocation12 + $0xb98] sm:$0xff]
    %v1811 = vld [vmem:[#allocation12 + $0xba0] sm:$0xff]
    %v1812 = vld [vmem:[#allocation12 + $0xba8] sm:$0xff]
    %v1813 = vld [vmem:[#allocation12 + $0xbb0] sm:$0xff]
    %v1814 = vld [vmem:[#allocation12 + $0xbb8] sm:$0xff]
    %v1815 = vld [vmem:[#allocation12 + $0xbc0] sm:$0xff]
    %v1816 = vld [vmem:[#allocation12 + $0xbc8] sm:$0xff]
    %v1817 = vld [vmem:[#allocation12 + $0xbd0] sm:$0xff]
    %v1818 = vld [vmem:[#allocation12 + $0xbd8] sm:$0xff]
    %v1819 = vld [vmem:[#allocation12 + $0xbe0] sm:$0xff]
    %v1820 = vld [vmem:[#allocation12 + $0xbe8] sm:$0xff]
    %v1821 = vld [vmem:[#allocation12 + $0xbf0] sm:$0xff]
    %v1822 = vld [vmem:[#allocation12 + $0xbf8] sm:$0xff]
    %v1823 = vld [vmem:[#allocation14] sm:$0x3f]
    %v1825 = vlaneseq
    %v1826 = vshrl.u32 %v1825, 7
    %v1827 = vsub.s32 0, %v1826
    %v1828 = vrot.slane %v1823, %v1827
    %v1829 = vlaneseq
    %v1830 = vshrl.u32 %v1829, 7
    %v1831 = vsub.s32 1, %v1830
    %v1832 = vrot.slane %v1823, %v1831
    %v1833 = vlaneseq
    %v1834 = vshrl.u32 %v1833, 7
    %v1835 = vsub.s32 2, %v1834
    %v1836 = vrot.slane %v1823, %v1835
    %v1837 = vlaneseq
    %v1838 = vshrl.u32 %v1837, 7
    %v1839 = vsub.s32 3, %v1838
    %v1840 = vrot.slane %v1823, %v1839
    %v1841 = vlaneseq
    %v1842 = vshrl.u32 %v1841, 7
    %v1843 = vsub.s32 4, %v1842
    %v1844 = vrot.slane %v1823, %v1843
    %v1845 = vlaneseq
    %v1846 = vshrl.u32 %v1845, 7
    %v1847 = vsub.s32 5, %v1846
    %v1848 = vrot.slane %v1823, %v1847
    %v2239 = vunpack.c.l.b16 %v1439
    %v2240 = vunpack.c.h.b16 %v1439
    %v2241 = vunpack.c.l.b16 %v1440
    %v2242 = vunpack.c.h.b16 %v1440
    %v2243 = vunpack.c.l.b16 %v1441
    %v2244 = vunpack.c.h.b16 %v1441
    %v2245 = vunpack.c.l.b16 %v1442
    %v2246 = vunpack.c.h.b16 %v1442
    %v2247 = vunpack.c.l.b16 %v1443
    %v2248 = vunpack.c.h.b16 %v1443
    %v2249 = vunpack.c.l.b16 %v1444
    %v2250 = vunpack.c.h.b16 %v1444
    %v2251 = vunpack.c.l.b16 %v1445
    %v2252 = vunpack.c.h.b16 %v1445
    %v2253 = vunpack.c.l.b16 %v1446
    %v2254 = vunpack.c.h.b16 %v1446
    %v2255 = vunpack.c.l.b16 %v1447
    %v2256 = vunpack.c.h.b16 %v1447
    %v2257 = vunpack.c.l.b16 %v1448
    %v2258 = vunpack.c.h.b16 %v1448
    %v2259 = vunpack.c.l.b16 %v1449
    %v2260 = vunpack.c.h.b16 %v1449
    %v2261 = vunpack.c.l.b16 %v1450
    %v2262 = vunpack.c.h.b16 %v1450
    %v2263 = vunpack.c.l.b16 %v1451
    %v2264 = vunpack.c.h.b16 %v1451
    %v2265 = vunpack.c.l.b16 %v1452
    %v2266 = vunpack.c.h.b16 %v1452
    %v2267 = vunpack.c.l.b16 %v1453
    %v2268 = vunpack.c.h.b16 %v1453
    %v2269 = vunpack.c.l.b16 %v1454
    %v2270 = vunpack.c.h.b16 %v1454
    %v2271 = vunpack.c.l.b16 %v1455
    %v2272 = vunpack.c.h.b16 %v1455
    %v2273 = vunpack.c.l.b16 %v1456
    %v2274 = vunpack.c.h.b16 %v1456
    %v2275 = vunpack.c.l.b16 %v1457
    %v2276 = vunpack.c.h.b16 %v1457
    %v2277 = vunpack.c.l.b16 %v1458
    %v2278 = vunpack.c.h.b16 %v1458
    %v2279 = vunpack.c.l.b16 %v1459
    %v2280 = vunpack.c.h.b16 %v1459
    %v2281 = vunpack.c.l.b16 %v1460
    %v2282 = vunpack.c.h.b16 %v1460
    %v2283 = vunpack.c.l.b16 %v1461
    %v2284 = vunpack.c.h.b16 %v1461
    %v2285 = vunpack.c.l.b16 %v1462
    %v2286 = vunpack.c.h.b16 %v1462
    %v2287 = vunpack.c.l.b16 %v1463
    %v2288 = vunpack.c.h.b16 %v1463
    %v2289 = vunpack.c.l.b16 %v1464
    %v2290 = vunpack.c.h.b16 %v1464
    %v2291 = vunpack.c.l.b16 %v1465
    %v2292 = vunpack.c.h.b16 %v1465
    %v2293 = vunpack.c.l.b16 %v1466
    %v2294 = vunpack.c.h.b16 %v1466
    %v2295 = vunpack.c.l.b16 %v1467
    %v2296 = vunpack.c.h.b16 %v1467
    %v2297 = vunpack.c.l.b16 %v1468
    %v2298 = vunpack.c.h.b16 %v1468
    %v2299 = vunpack.c.l.b16 %v1469
    %v2300 = vunpack.c.h.b16 %v1469
    %v2301 = vunpack.c.l.b16 %v1470
    %v2302 = vunpack.c.h.b16 %v1470
    %v2303 = vunpack.c.l.b16 %v1471
    %v2304 = vunpack.c.h.b16 %v1471
    %v2305 = vunpack.c.l.b16 %v1472
    %v2306 = vunpack.c.h.b16 %v1472
    %v2307 = vunpack.c.l.b16 %v1473
    %v2308 = vunpack.c.h.b16 %v1473
    %v2309 = vunpack.c.l.b16 %v1474
    %v2310 = vunpack.c.h.b16 %v1474
    %v2311 = vunpack.c.l.b16 %v1475
    %v2312 = vunpack.c.h.b16 %v1475
    %v2313 = vunpack.c.l.b16 %v1476
    %v2314 = vunpack.c.h.b16 %v1476
    %v2315 = vunpack.c.l.b16 %v1477
    %v2316 = vunpack.c.h.b16 %v1477
    %v2317 = vunpack.c.l.b16 %v1478
    %v2318 = vunpack.c.h.b16 %v1478
    %v2319 = vunpack.c.l.b16 %v1479
    %v2320 = vunpack.c.h.b16 %v1479
    %v2321 = vunpack.c.l.b16 %v1480
    %v2322 = vunpack.c.h.b16 %v1480
    %v2323 = vunpack.c.l.b16 %v1481
    %v2324 = vunpack.c.h.b16 %v1481
    %v2325 = vunpack.c.l.b16 %v1482
    %v2326 = vunpack.c.h.b16 %v1482
    %v2327 = vunpack.c.l.b16 %v1483
    %v2328 = vunpack.c.h.b16 %v1483
    %v2329 = vunpack.c.l.b16 %v1484
    %v2330 = vunpack.c.h.b16 %v1484
    %v2331 = vunpack.c.l.b16 %v1485
    %v2332 = vunpack.c.h.b16 %v1485
    %v2333 = vunpack.c.l.b16 %v1486
    %v2334 = vunpack.c.h.b16 %v1486
    %v2335 = vunpack.c.l.b16 %v1487
    %v2336 = vunpack.c.h.b16 %v1487
    %v2337 = vunpack.c.l.b16 %v1488
    %v2338 = vunpack.c.h.b16 %v1488
    %v2339 = vunpack.c.l.b16 %v1489
    %v2340 = vunpack.c.h.b16 %v1489
    %v2341 = vunpack.c.l.b16 %v1490
    %v2342 = vunpack.c.h.b16 %v1490
    %v2343 = vunpack.c.l.b16 %v1491
    %v2344 = vunpack.c.h.b16 %v1491
    %v2345 = vunpack.c.l.b16 %v1492
    %v2346 = vunpack.c.h.b16 %v1492
    %v2347 = vunpack.c.l.b16 %v1493
    %v2348 = vunpack.c.h.b16 %v1493
    %v2349 = vunpack.c.l.b16 %v1494
    %v2350 = vunpack.c.h.b16 %v1494
    %v2351 = vunpack.c.l.b16 %v1495
    %v2352 = vunpack.c.h.b16 %v1495
    %v2353 = vunpack.c.l.b16 %v1496
    %v2354 = vunpack.c.h.b16 %v1496
    %v2355 = vunpack.c.l.b16 %v1497
    %v2356 = vunpack.c.h.b16 %v1497
    %v2357 = vunpack.c.l.b16 %v1498
    %v2358 = vunpack.c.h.b16 %v1498
    %v2359 = vunpack.c.l.b16 %v1499
    %v2360 = vunpack.c.h.b16 %v1499
    %v2361 = vunpack.c.l.b16 %v1500
    %v2362 = vunpack.c.h.b16 %v1500
    %v2363 = vunpack.c.l.b16 %v1501
    %v2364 = vunpack.c.h.b16 %v1501
    %v2365 = vunpack.c.l.b16 %v1502
    %v2366 = vunpack.c.h.b16 %v1502
    %v2367 = vunpack.c.l.b16 %v1503
    %v2368 = vunpack.c.h.b16 %v1503
    %v2369 = vunpack.c.l.b16 %v1504
    %v2370 = vunpack.c.h.b16 %v1504
    %v2371 = vunpack.c.l.b16 %v1505
    %v2372 = vunpack.c.h.b16 %v1505
    %v2373 = vunpack.c.l.b16 %v1506
    %v2374 = vunpack.c.h.b16 %v1506
    %v2375 = vunpack.c.l.b16 %v1507
    %v2376 = vunpack.c.h.b16 %v1507
    %v2377 = vunpack.c.l.b16 %v1508
    %v2378 = vunpack.c.h.b16 %v1508
    %v2379 = vunpack.c.l.b16 %v1509
    %v2380 = vunpack.c.h.b16 %v1509
    %v2381 = vunpack.c.l.b16 %v1510
    %v2382 = vunpack.c.h.b16 %v1510
    %v2383 = vunpack.c.l.b16 %v1511
    %v2384 = vunpack.c.h.b16 %v1511
    %v2385 = vunpack.c.l.b16 %v1512
    %v2386 = vunpack.c.h.b16 %v1512
    %v2387 = vunpack.c.l.b16 %v1513
    %v2388 = vunpack.c.h.b16 %v1513
    %v2389 = vunpack.c.l.b16 %v1514
    %v2390 = vunpack.c.h.b16 %v1514
    %v2391 = vunpack.c.l.b16 %v1515
    %v2392 = vunpack.c.h.b16 %v1515
    %v2393 = vunpack.c.l.b16 %v1516
    %v2394 = vunpack.c.h.b16 %v1516
    %v2395 = vunpack.c.l.b16 %v1517
    %v2396 = vunpack.c.h.b16 %v1517
    %v2397 = vunpack.c.l.b16 %v1518
    %v2398 = vunpack.c.h.b16 %v1518
    %v2399 = vunpack.c.l.b16 %v1519
    %v2400 = vunpack.c.h.b16 %v1519
    %v2401 = vunpack.c.l.b16 %v1520
    %v2402 = vunpack.c.h.b16 %v1520
    %v2403 = vunpack.c.l.b16 %v1521
    %v2404 = vunpack.c.h.b16 %v1521
    %v2405 = vunpack.c.l.b16 %v1522
    %v2406 = vunpack.c.h.b16 %v1522
    %v2407 = vunpack.c.l.b16 %v1523
    %v2408 = vunpack.c.h.b16 %v1523
    %v2409 = vunpack.c.l.b16 %v1524
    %v2410 = vunpack.c.h.b16 %v1524
    %v2411 = vunpack.c.l.b16 %v1525
    %v2412 = vunpack.c.h.b16 %v1525
    %v2413 = vunpack.c.l.b16 %v1526
    %v2414 = vunpack.c.h.b16 %v1526
    %v2415 = vunpack.c.l.b16 %v1527
    %v2416 = vunpack.c.h.b16 %v1527
    %v2417 = vunpack.c.l.b16 %v1528
    %v2418 = vunpack.c.h.b16 %v1528
    %v2419 = vunpack.c.l.b16 %v1529
    %v2420 = vunpack.c.h.b16 %v1529
    %v2421 = vunpack.c.l.b16 %v1530
    %v2422 = vunpack.c.h.b16 %v1530
    %v2423 = vunpack.c.l.b16 %v1531
    %v2424 = vunpack.c.h.b16 %v1531
    %v2425 = vunpack.c.l.b16 %v1532
    %v2426 = vunpack.c.h.b16 %v1532
    %v2427 = vunpack.c.l.b16 %v1533
    %v2428 = vunpack.c.h.b16 %v1533
    %v2429 = vunpack.c.l.b16 %v1534
    %v2430 = vunpack.c.h.b16 %v1534
    %v2431 = vunpack.c.l.b16 %v1535
    %v2432 = vunpack.c.h.b16 %v1535
    %v2433 = vunpack.c.l.b16 %v1536
    %v2434 = vunpack.c.h.b16 %v1536
    %v2435 = vunpack.c.l.b16 %v1537
    %v2436 = vunpack.c.h.b16 %v1537
    %v2437 = vunpack.c.l.b16 %v1538
    %v2438 = vunpack.c.h.b16 %v1538
    %v2439 = vunpack.c.l.b16 %v1539
    %v2440 = vunpack.c.h.b16 %v1539
    %v2441 = vunpack.c.l.b16 %v1540
    %v2442 = vunpack.c.h.b16 %v1540
    %v2443 = vunpack.c.l.b16 %v1541
    %v2444 = vunpack.c.h.b16 %v1541
    %v2445 = vunpack.c.l.b16 %v1542
    %v2446 = vunpack.c.h.b16 %v1542
    %v2447 = vunpack.c.l.b16 %v1543
    %v2448 = vunpack.c.h.b16 %v1543
    %v2449 = vunpack.c.l.b16 %v1544
    %v2450 = vunpack.c.h.b16 %v1544
    %v2451 = vunpack.c.l.b16 %v1545
    %v2452 = vunpack.c.h.b16 %v1545
    %v2453 = vunpack.c.l.b16 %v1546
    %v2454 = vunpack.c.h.b16 %v1546
    %v2455 = vunpack.c.l.b16 %v1547
    %v2456 = vunpack.c.h.b16 %v1547
    %v2457 = vunpack.c.l.b16 %v1548
    %v2458 = vunpack.c.h.b16 %v1548
    %v2459 = vunpack.c.l.b16 %v1549
    %v2460 = vunpack.c.h.b16 %v1549
    %v2461 = vunpack.c.l.b16 %v1550
    %v2462 = vunpack.c.h.b16 %v1550
    %v2463 = vunpack.c.l.b16 %v1551
    %v2464 = vunpack.c.h.b16 %v1551
    %v2465 = vunpack.c.l.b16 %v1552
    %v2466 = vunpack.c.h.b16 %v1552
    %v2467 = vunpack.c.l.b16 %v1553
    %v2468 = vunpack.c.h.b16 %v1553
    %v2469 = vunpack.c.l.b16 %v1554
    %v2470 = vunpack.c.h.b16 %v1554
    %v2471 = vunpack.c.l.b16 %v1555
    %v2472 = vunpack.c.h.b16 %v1555
    %v2473 = vunpack.c.l.b16 %v1556
    %v2474 = vunpack.c.h.b16 %v1556
    %v2475 = vunpack.c.l.b16 %v1557
    %v2476 = vunpack.c.h.b16 %v1557
    %v2477 = vunpack.c.l.b16 %v1558
    %v2478 = vunpack.c.h.b16 %v1558
    %v2479 = vunpack.c.l.b16 %v1559
    %v2480 = vunpack.c.h.b16 %v1559
    %v2481 = vunpack.c.l.b16 %v1560
    %v2482 = vunpack.c.h.b16 %v1560
    %v2483 = vunpack.c.l.b16 %v1561
    %v2484 = vunpack.c.h.b16 %v1561
    %v2485 = vunpack.c.l.b16 %v1562
    %v2486 = vunpack.c.h.b16 %v1562
    %v2487 = vunpack.c.l.b16 %v1563
    %v2488 = vunpack.c.h.b16 %v1563
    %v2489 = vunpack.c.l.b16 %v1564
    %v2490 = vunpack.c.h.b16 %v1564
    %v2491 = vunpack.c.l.b16 %v1565
    %v2492 = vunpack.c.h.b16 %v1565
    %v2493 = vunpack.c.l.b16 %v1566
    %v2494 = vunpack.c.h.b16 %v1566
    %v2495 = vunpack.c.l.b16 %v1567
    %v2496 = vunpack.c.h.b16 %v1567
    %v2497 = vunpack.c.l.b16 %v1568
    %v2498 = vunpack.c.h.b16 %v1568
    %v2499 = vunpack.c.l.b16 %v1569
    %v2500 = vunpack.c.h.b16 %v1569
    %v2501 = vunpack.c.l.b16 %v1570
    %v2502 = vunpack.c.h.b16 %v1570
    %v2503 = vunpack.c.l.b16 %v1571
    %v2504 = vunpack.c.h.b16 %v1571
    %v2505 = vunpack.c.l.b16 %v1572
    %v2506 = vunpack.c.h.b16 %v1572
    %v2507 = vunpack.c.l.b16 %v1573
    %v2508 = vunpack.c.h.b16 %v1573
    %v2509 = vunpack.c.l.b16 %v1574
    %v2510 = vunpack.c.h.b16 %v1574
    %v2511 = vunpack.c.l.b16 %v1575
    %v2512 = vunpack.c.h.b16 %v1575
    %v2513 = vunpack.c.l.b16 %v1576
    %v2514 = vunpack.c.h.b16 %v1576
    %v2515 = vunpack.c.l.b16 %v1577
    %v2516 = vunpack.c.h.b16 %v1577
    %v2517 = vunpack.c.l.b16 %v1578
    %v2518 = vunpack.c.h.b16 %v1578
    %v2519 = vunpack.c.l.b16 %v1579
    %v2520 = vunpack.c.h.b16 %v1579
    %v2521 = vunpack.c.l.b16 %v1580
    %v2522 = vunpack.c.h.b16 %v1580
    %v2523 = vunpack.c.l.b16 %v1581
    %v2524 = vunpack.c.h.b16 %v1581
    %v2525 = vunpack.c.l.b16 %v1582
    %v2526 = vunpack.c.h.b16 %v1582
    %v2527 = vunpack.c.l.b16 %v1583
    %v2528 = vunpack.c.h.b16 %v1583
    %v2529 = vunpack.c.l.b16 %v1584
    %v2530 = vunpack.c.h.b16 %v1584
    %v2531 = vunpack.c.l.b16 %v1585
    %v2532 = vunpack.c.h.b16 %v1585
    %v2533 = vunpack.c.l.b16 %v1586
    %v2534 = vunpack.c.h.b16 %v1586
    %v2535 = vunpack.c.l.b16 %v1587
    %v2536 = vunpack.c.h.b16 %v1587
    %v2537 = vunpack.c.l.b16 %v1588
    %v2538 = vunpack.c.h.b16 %v1588
    %v2539 = vunpack.c.l.b16 %v1589
    %v2540 = vunpack.c.h.b16 %v1589
    %v2541 = vunpack.c.l.b16 %v1590
    %v2542 = vunpack.c.h.b16 %v1590
    %v2543 = vunpack.c.l.b16 %v1591
    %v2544 = vunpack.c.h.b16 %v1591
    %v2545 = vunpack.c.l.b16 %v1592
    %v2546 = vunpack.c.h.b16 %v1592
    %v2547 = vunpack.c.l.b16 %v1593
    %v2548 = vunpack.c.h.b16 %v1593
    %v2549 = vunpack.c.l.b16 %v1594
    %v2550 = vunpack.c.h.b16 %v1594
    %v2551 = vunpack.c.l.b16 %v1595
    %v2552 = vunpack.c.h.b16 %v1595
    %v2553 = vunpack.c.l.b16 %v1596
    %v2554 = vunpack.c.h.b16 %v1596
    %v2555 = vunpack.c.l.b16 %v1597
    %v2556 = vunpack.c.h.b16 %v1597
    %v2557 = vunpack.c.l.b16 %v1598
    %v2558 = vunpack.c.h.b16 %v1598
    %v2559 = vunpack.c.l.b16 %v1599
    %v2560 = vunpack.c.h.b16 %v1599
    %v2561 = vunpack.c.l.b16 %v1600
    %v2562 = vunpack.c.h.b16 %v1600
    %v2563 = vunpack.c.l.b16 %v1601
    %v2564 = vunpack.c.h.b16 %v1601
    %v2565 = vunpack.c.l.b16 %v1602
    %v2566 = vunpack.c.h.b16 %v1602
    %v2567 = vunpack.c.l.b16 %v1603
    %v2568 = vunpack.c.h.b16 %v1603
    %v2569 = vunpack.c.l.b16 %v1604
    %v2570 = vunpack.c.h.b16 %v1604
    %v2571 = vunpack.c.l.b16 %v1605
    %v2572 = vunpack.c.h.b16 %v1605
    %v2573 = vunpack.c.l.b16 %v1606
    %v2574 = vunpack.c.h.b16 %v1606
    %v2575 = vunpack.c.l.b16 %v1607
    %v2576 = vunpack.c.h.b16 %v1607
    %v2577 = vunpack.c.l.b16 %v1608
    %v2578 = vunpack.c.h.b16 %v1608
    %v2579 = vunpack.c.l.b16 %v1609
    %v2580 = vunpack.c.h.b16 %v1609
    %v2581 = vunpack.c.l.b16 %v1610
    %v2582 = vunpack.c.h.b16 %v1610
    %v2583 = vunpack.c.l.b16 %v1611
    %v2584 = vunpack.c.h.b16 %v1611
    %v2585 = vunpack.c.l.b16 %v1612
    %v2586 = vunpack.c.h.b16 %v1612
    %v2587 = vunpack.c.l.b16 %v1613
    %v2588 = vunpack.c.h.b16 %v1613
    %v2589 = vunpack.c.l.b16 %v1614
    %v2590 = vunpack.c.h.b16 %v1614
    %v2591 = vunpack.c.l.b16 %v1615
    %v2592 = vunpack.c.h.b16 %v1615
    %v2593 = vunpack.c.l.b16 %v1616
    %v2594 = vunpack.c.h.b16 %v1616
    %v2595 = vunpack.c.l.b16 %v1617
    %v2596 = vunpack.c.h.b16 %v1617
    %v2597 = vunpack.c.l.b16 %v1618
    %v2598 = vunpack.c.h.b16 %v1618
    %v2599 = vunpack.c.l.b16 %v1619
    %v2600 = vunpack.c.h.b16 %v1619
    %v2601 = vunpack.c.l.b16 %v1620
    %v2602 = vunpack.c.h.b16 %v1620
    %v2603 = vunpack.c.l.b16 %v1621
    %v2604 = vunpack.c.h.b16 %v1621
    %v2605 = vunpack.c.l.b16 %v1622
    %v2606 = vunpack.c.h.b16 %v1622
    %v2607 = vunpack.c.l.b16 %v1623
    %v2608 = vunpack.c.h.b16 %v1623
    %v2609 = vunpack.c.l.b16 %v1624
    %v2610 = vunpack.c.h.b16 %v1624
    %v2611 = vunpack.c.l.b16 %v1625
    %v2612 = vunpack.c.h.b16 %v1625
    %v2613 = vunpack.c.l.b16 %v1626
    %v2614 = vunpack.c.h.b16 %v1626
    %v2615 = vunpack.c.l.b16 %v1627
    %v2616 = vunpack.c.h.b16 %v1627
    %v2617 = vunpack.c.l.b16 %v1628
    %v2618 = vunpack.c.h.b16 %v1628
    %v2619 = vunpack.c.l.b16 %v1629
    %v2620 = vunpack.c.h.b16 %v1629
    %v2621 = vunpack.c.l.b16 %v1630
    %v2622 = vunpack.c.h.b16 %v1630
    %v2623 = vunpack.c.l.b16 %v1631
    %v2624 = vunpack.c.h.b16 %v1631
    %v2625 = vunpack.c.l.b16 %v1632
    %v2626 = vunpack.c.h.b16 %v1632
    %v2627 = vunpack.c.l.b16 %v1633
    %v2628 = vunpack.c.h.b16 %v1633
    %v2629 = vunpack.c.l.b16 %v1634
    %v2630 = vunpack.c.h.b16 %v1634
    %v2631 = vunpack.c.l.b16 %v1635
    %v2632 = vunpack.c.h.b16 %v1635
    %v2633 = vunpack.c.l.b16 %v1636
    %v2634 = vunpack.c.h.b16 %v1636
    %v2635 = vunpack.c.l.b16 %v1637
    %v2636 = vunpack.c.h.b16 %v1637
    %v2637 = vunpack.c.l.b16 %v1638
    %v2638 = vunpack.c.h.b16 %v1638
    %v2639 = vunpack.c.l.b16 %v1639
    %v2640 = vunpack.c.h.b16 %v1639
    %v2641 = vunpack.c.l.b16 %v1640
    %v2642 = vunpack.c.h.b16 %v1640
    %v2643 = vunpack.c.l.b16 %v1641
    %v2644 = vunpack.c.h.b16 %v1641
    %v2645 = vunpack.c.l.b16 %v1642
    %v2646 = vunpack.c.h.b16 %v1642
    %v2647 = vunpack.c.l.b16 %v1643
    %v2648 = vunpack.c.h.b16 %v1643
    %v2649 = vunpack.c.l.b16 %v1644
    %v2650 = vunpack.c.h.b16 %v1644
    %v2651 = vunpack.c.l.b16 %v1645
    %v2652 = vunpack.c.h.b16 %v1645
    %v2653 = vunpack.c.l.b16 %v1646
    %v2654 = vunpack.c.h.b16 %v1646
    %v2655 = vunpack.c.l.b16 %v1647
    %v2656 = vunpack.c.h.b16 %v1647
    %v2657 = vunpack.c.l.b16 %v1648
    %v2658 = vunpack.c.h.b16 %v1648
    %v2659 = vunpack.c.l.b16 %v1649
    %v2660 = vunpack.c.h.b16 %v1649
    %v2661 = vunpack.c.l.b16 %v1650
    %v2662 = vunpack.c.h.b16 %v1650
    %v2663 = vunpack.c.l.b16 %v1651
    %v2664 = vunpack.c.h.b16 %v1651
    %v2665 = vunpack.c.l.b16 %v1652
    %v2666 = vunpack.c.h.b16 %v1652
    %v2667 = vunpack.c.l.b16 %v1653
    %v2668 = vunpack.c.h.b16 %v1653
    %v2669 = vunpack.c.l.b16 %v1654
    %v2670 = vunpack.c.h.b16 %v1654
    %v2671 = vunpack.c.l.b16 %v1655
    %v2672 = vunpack.c.h.b16 %v1655
    %v2673 = vunpack.c.l.b16 %v1656
    %v2674 = vunpack.c.h.b16 %v1656
    %v2675 = vunpack.c.l.b16 %v1657
    %v2676 = vunpack.c.h.b16 %v1657
    %v2677 = vunpack.c.l.b16 %v1658
    %v2678 = vunpack.c.h.b16 %v1658
    %v2679 = vunpack.c.l.b16 %v1659
    %v2680 = vunpack.c.h.b16 %v1659
    %v2681 = vunpack.c.l.b16 %v1660
    %v2682 = vunpack.c.h.b16 %v1660
    %v2683 = vunpack.c.l.b16 %v1661
    %v2684 = vunpack.c.h.b16 %v1661
    %v2685 = vunpack.c.l.b16 %v1662
    %v2686 = vunpack.c.h.b16 %v1662
    %v2687 = vunpack.c.l.b16 %v1663
    %v2688 = vunpack.c.h.b16 %v1663
    %v2689 = vunpack.c.l.b16 %v1664
    %v2690 = vunpack.c.h.b16 %v1664
    %v2691 = vunpack.c.l.b16 %v1665
    %v2692 = vunpack.c.h.b16 %v1665
    %v2693 = vunpack.c.l.b16 %v1666
    %v2694 = vunpack.c.h.b16 %v1666
    %v2695 = vunpack.c.l.b16 %v1667
    %v2696 = vunpack.c.h.b16 %v1667
    %v2697 = vunpack.c.l.b16 %v1668
    %v2698 = vunpack.c.h.b16 %v1668
    %v2699 = vunpack.c.l.b16 %v1669
    %v2700 = vunpack.c.h.b16 %v1669
    %v2701 = vunpack.c.l.b16 %v1670
    %v2702 = vunpack.c.h.b16 %v1670
    %v2703 = vunpack.c.l.b16 %v1671
    %v2704 = vunpack.c.h.b16 %v1671
    %v2705 = vunpack.c.l.b16 %v1672
    %v2706 = vunpack.c.h.b16 %v1672
    %v2707 = vunpack.c.l.b16 %v1673
    %v2708 = vunpack.c.h.b16 %v1673
    %v2709 = vunpack.c.l.b16 %v1674
    %v2710 = vunpack.c.h.b16 %v1674
    %v2711 = vunpack.c.l.b16 %v1675
    %v2712 = vunpack.c.h.b16 %v1675
    %v2713 = vunpack.c.l.b16 %v1676
    %v2714 = vunpack.c.h.b16 %v1676
    %v2715 = vunpack.c.l.b16 %v1677
    %v2716 = vunpack.c.h.b16 %v1677
    %v2717 = vunpack.c.l.b16 %v1678
    %v2718 = vunpack.c.h.b16 %v1678
    %v2719 = vunpack.c.l.b16 %v1679
    %v2720 = vunpack.c.h.b16 %v1679
    %v2721 = vunpack.c.l.b16 %v1680
    %v2722 = vunpack.c.h.b16 %v1680
    %v2723 = vunpack.c.l.b16 %v1681
    %v2724 = vunpack.c.h.b16 %v1681
    %v2725 = vunpack.c.l.b16 %v1682
    %v2726 = vunpack.c.h.b16 %v1682
    %v2727 = vunpack.c.l.b16 %v1683
    %v2728 = vunpack.c.h.b16 %v1683
    %v2729 = vunpack.c.l.b16 %v1684
    %v2730 = vunpack.c.h.b16 %v1684
    %v2731 = vunpack.c.l.b16 %v1685
    %v2732 = vunpack.c.h.b16 %v1685
    %v2733 = vunpack.c.l.b16 %v1686
    %v2734 = vunpack.c.h.b16 %v1686
    %v2735 = vunpack.c.l.b16 %v1687
    %v2736 = vunpack.c.h.b16 %v1687
    %v2737 = vunpack.c.l.b16 %v1688
    %v2738 = vunpack.c.h.b16 %v1688
    %v2739 = vunpack.c.l.b16 %v1689
    %v2740 = vunpack.c.h.b16 %v1689
    %v2741 = vunpack.c.l.b16 %v1690
    %v2742 = vunpack.c.h.b16 %v1690
    %v2743 = vunpack.c.l.b16 %v1691
    %v2744 = vunpack.c.h.b16 %v1691
    %v2745 = vunpack.c.l.b16 %v1692
    %v2746 = vunpack.c.h.b16 %v1692
    %v2747 = vunpack.c.l.b16 %v1693
    %v2748 = vunpack.c.h.b16 %v1693
    %v2749 = vunpack.c.l.b16 %v1694
    %v2750 = vunpack.c.h.b16 %v1694
    %v2751 = vunpack.c.l.b16 %v1695
    %v2752 = vunpack.c.h.b16 %v1695
    %v2753 = vunpack.c.l.b16 %v1696
    %v2754 = vunpack.c.h.b16 %v1696
    %v2755 = vunpack.c.l.b16 %v1697
    %v2756 = vunpack.c.h.b16 %v1697
    %v2757 = vunpack.c.l.b16 %v1698
    %v2758 = vunpack.c.h.b16 %v1698
    %v2759 = vunpack.c.l.b16 %v1699
    %v2760 = vunpack.c.h.b16 %v1699
    %v2761 = vunpack.c.l.b16 %v1700
    %v2762 = vunpack.c.h.b16 %v1700
    %v2763 = vunpack.c.l.b16 %v1701
    %v2764 = vunpack.c.h.b16 %v1701
    %v2765 = vunpack.c.l.b16 %v1702
    %v2766 = vunpack.c.h.b16 %v1702
    %v2767 = vunpack.c.l.b16 %v1703
    %v2768 = vunpack.c.h.b16 %v1703
    %v2769 = vunpack.c.l.b16 %v1704
    %v2770 = vunpack.c.h.b16 %v1704
    %v2771 = vunpack.c.l.b16 %v1705
    %v2772 = vunpack.c.h.b16 %v1705
    %v2773 = vunpack.c.l.b16 %v1706
    %v2774 = vunpack.c.h.b16 %v1706
    %v2775 = vunpack.c.l.b16 %v1707
    %v2776 = vunpack.c.h.b16 %v1707
    %v2777 = vunpack.c.l.b16 %v1708
    %v2778 = vunpack.c.h.b16 %v1708
    %v2779 = vunpack.c.l.b16 %v1709
    %v2780 = vunpack.c.h.b16 %v1709
    %v2781 = vunpack.c.l.b16 %v1710
    %v2782 = vunpack.c.h.b16 %v1710
    %v2783 = vunpack.c.l.b16 %v1711
    %v2784 = vunpack.c.h.b16 %v1711
    %v2785 = vunpack.c.l.b16 %v1712
    %v2786 = vunpack.c.h.b16 %v1712
    %v2787 = vunpack.c.l.b16 %v1713
    %v2788 = vunpack.c.h.b16 %v1713
    %v2789 = vunpack.c.l.b16 %v1714
    %v2790 = vunpack.c.h.b16 %v1714
    %v2791 = vunpack.c.l.b16 %v1715
    %v2792 = vunpack.c.h.b16 %v1715
    %v2793 = vunpack.c.l.b16 %v1716
    %v2794 = vunpack.c.h.b16 %v1716
    %v2795 = vunpack.c.l.b16 %v1717
    %v2796 = vunpack.c.h.b16 %v1717
    %v2797 = vunpack.c.l.b16 %v1718
    %v2798 = vunpack.c.h.b16 %v1718
    %v2799 = vunpack.c.l.b16 %v1719
    %v2800 = vunpack.c.h.b16 %v1719
    %v2801 = vunpack.c.l.b16 %v1720
    %v2802 = vunpack.c.h.b16 %v1720
    %v2803 = vunpack.c.l.b16 %v1721
    %v2804 = vunpack.c.h.b16 %v1721
    %v2805 = vunpack.c.l.b16 %v1722
    %v2806 = vunpack.c.h.b16 %v1722
    %v2807 = vunpack.c.l.b16 %v1723
    %v2808 = vunpack.c.h.b16 %v1723
    %v2809 = vunpack.c.l.b16 %v1724
    %v2810 = vunpack.c.h.b16 %v1724
    %v2811 = vunpack.c.l.b16 %v1725
    %v2812 = vunpack.c.h.b16 %v1725
    %v2813 = vunpack.c.l.b16 %v1726
    %v2814 = vunpack.c.h.b16 %v1726
    %v2815 = vunpack.c.l.b16 %v1727
    %v2816 = vunpack.c.h.b16 %v1727
    %v2817 = vunpack.c.l.b16 %v1728
    %v2818 = vunpack.c.h.b16 %v1728
    %v2819 = vunpack.c.l.b16 %v1729
    %v2820 = vunpack.c.h.b16 %v1729
    %v2821 = vunpack.c.l.b16 %v1730
    %v2822 = vunpack.c.h.b16 %v1730
    %v2823 = vunpack.c.l.b16 %v1731
    %v2824 = vunpack.c.h.b16 %v1731
    %v2825 = vunpack.c.l.b16 %v1732
    %v2826 = vunpack.c.h.b16 %v1732
    %v2827 = vunpack.c.l.b16 %v1733
    %v2828 = vunpack.c.h.b16 %v1733
    %v2829 = vunpack.c.l.b16 %v1734
    %v2830 = vunpack.c.h.b16 %v1734
    %v2831 = vunpack.c.l.b16 %v1735
    %v2832 = vunpack.c.h.b16 %v1735
    %v2833 = vunpack.c.l.b16 %v1736
    %v2834 = vunpack.c.h.b16 %v1736
    %v2835 = vunpack.c.l.b16 %v1737
    %v2836 = vunpack.c.h.b16 %v1737
    %v2837 = vunpack.c.l.b16 %v1738
    %v2838 = vunpack.c.h.b16 %v1738
    %v2839 = vunpack.c.l.b16 %v1739
    %v2840 = vunpack.c.h.b16 %v1739
    %v2841 = vunpack.c.l.b16 %v1740
    %v2842 = vunpack.c.h.b16 %v1740
    %v2843 = vunpack.c.l.b16 %v1741
    %v2844 = vunpack.c.h.b16 %v1741
    %v2845 = vunpack.c.l.b16 %v1742
    %v2846 = vunpack.c.h.b16 %v1742
    %v2847 = vunpack.c.l.b16 %v1743
    %v2848 = vunpack.c.h.b16 %v1743
    %v2849 = vunpack.c.l.b16 %v1744
    %v2850 = vunpack.c.h.b16 %v1744
    %v2851 = vunpack.c.l.b16 %v1745
    %v2852 = vunpack.c.h.b16 %v1745
    %v2853 = vunpack.c.l.b16 %v1746
    %v2854 = vunpack.c.h.b16 %v1746
    %v2855 = vunpack.c.l.b16 %v1747
    %v2856 = vunpack.c.h.b16 %v1747
    %v2857 = vunpack.c.l.b16 %v1748
    %v2858 = vunpack.c.h.b16 %v1748
    %v2859 = vunpack.c.l.b16 %v1749
    %v2860 = vunpack.c.h.b16 %v1749
    %v2861 = vunpack.c.l.b16 %v1750
    %v2862 = vunpack.c.h.b16 %v1750
    %v2863 = vunpack.c.l.b16 %v1751
    %v2864 = vunpack.c.h.b16 %v1751
    %v2865 = vunpack.c.l.b16 %v1752
    %v2866 = vunpack.c.h.b16 %v1752
    %v2867 = vunpack.c.l.b16 %v1753
    %v2868 = vunpack.c.h.b16 %v1753
    %v2869 = vunpack.c.l.b16 %v1754
    %v2870 = vunpack.c.h.b16 %v1754
    %v2871 = vunpack.c.l.b16 %v1755
    %v2872 = vunpack.c.h.b16 %v1755
    %v2873 = vunpack.c.l.b16 %v1756
    %v2874 = vunpack.c.h.b16 %v1756
    %v2875 = vunpack.c.l.b16 %v1757
    %v2876 = vunpack.c.h.b16 %v1757
    %v2877 = vunpack.c.l.b16 %v1758
    %v2878 = vunpack.c.h.b16 %v1758
    %v2879 = vunpack.c.l.b16 %v1759
    %v2880 = vunpack.c.h.b16 %v1759
    %v2881 = vunpack.c.l.b16 %v1760
    %v2882 = vunpack.c.h.b16 %v1760
    %v2883 = vunpack.c.l.b16 %v1761
    %v2884 = vunpack.c.h.b16 %v1761
    %v2885 = vunpack.c.l.b16 %v1762
    %v2886 = vunpack.c.h.b16 %v1762
    %v2887 = vunpack.c.l.b16 %v1763
    %v2888 = vunpack.c.h.b16 %v1763
    %v2889 = vunpack.c.l.b16 %v1764
    %v2890 = vunpack.c.h.b16 %v1764
    %v2891 = vunpack.c.l.b16 %v1765
    %v2892 = vunpack.c.h.b16 %v1765
    %v2893 = vunpack.c.l.b16 %v1766
    %v2894 = vunpack.c.h.b16 %v1766
    %v2895 = vunpack.c.l.b16 %v1767
    %v2896 = vunpack.c.h.b16 %v1767
    %v2897 = vunpack.c.l.b16 %v1768
    %v2898 = vunpack.c.h.b16 %v1768
    %v2899 = vunpack.c.l.b16 %v1769
    %v2900 = vunpack.c.h.b16 %v1769
    %v2901 = vunpack.c.l.b16 %v1770
    %v2902 = vunpack.c.h.b16 %v1770
    %v2903 = vunpack.c.l.b16 %v1771
    %v2904 = vunpack.c.h.b16 %v1771
    %v2905 = vunpack.c.l.b16 %v1772
    %v2906 = vunpack.c.h.b16 %v1772
    %v2907 = vunpack.c.l.b16 %v1773
    %v2908 = vunpack.c.h.b16 %v1773
    %v2909 = vunpack.c.l.b16 %v1774
    %v2910 = vunpack.c.h.b16 %v1774
    %v2911 = vunpack.c.l.b16 %v1775
    %v2912 = vunpack.c.h.b16 %v1775
    %v2913 = vunpack.c.l.b16 %v1776
    %v2914 = vunpack.c.h.b16 %v1776
    %v2915 = vunpack.c.l.b16 %v1777
    %v2916 = vunpack.c.h.b16 %v1777
    %v2917 = vunpack.c.l.b16 %v1778
    %v2918 = vunpack.c.h.b16 %v1778
    %v2919 = vunpack.c.l.b16 %v1779
    %v2920 = vunpack.c.h.b16 %v1779
    %v2921 = vunpack.c.l.b16 %v1780
    %v2922 = vunpack.c.h.b16 %v1780
    %v2923 = vunpack.c.l.b16 %v1781
    %v2924 = vunpack.c.h.b16 %v1781
    %v2925 = vunpack.c.l.b16 %v1782
    %v2926 = vunpack.c.h.b16 %v1782
    %v2927 = vunpack.c.l.b16 %v1783
    %v2928 = vunpack.c.h.b16 %v1783
    %v2929 = vunpack.c.l.b16 %v1784
    %v2930 = vunpack.c.h.b16 %v1784
    %v2931 = vunpack.c.l.b16 %v1785
    %v2932 = vunpack.c.h.b16 %v1785
    %v2933 = vunpack.c.l.b16 %v1786
    %v2934 = vunpack.c.h.b16 %v1786
    %v2935 = vunpack.c.l.b16 %v1787
    %v2936 = vunpack.c.h.b16 %v1787
    %v2937 = vunpack.c.l.b16 %v1788
    %v2938 = vunpack.c.h.b16 %v1788
    %v2939 = vunpack.c.l.b16 %v1789
    %v2940 = vunpack.c.h.b16 %v1789
    %v2941 = vunpack.c.l.b16 %v1790
    %v2942 = vunpack.c.h.b16 %v1790
    %v2943 = vunpack.c.l.b16 %v1791
    %v2944 = vunpack.c.h.b16 %v1791
    %v2945 = vunpack.c.l.b16 %v1792
    %v2946 = vunpack.c.h.b16 %v1792
    %v2947 = vunpack.c.l.b16 %v1793
    %v2948 = vunpack.c.h.b16 %v1793
    %v2949 = vunpack.c.l.b16 %v1794
    %v2950 = vunpack.c.h.b16 %v1794
    %v2951 = vunpack.c.l.b16 %v1795
    %v2952 = vunpack.c.h.b16 %v1795
    %v2953 = vunpack.c.l.b16 %v1796
    %v2954 = vunpack.c.h.b16 %v1796
    %v2955 = vunpack.c.l.b16 %v1797
    %v2956 = vunpack.c.h.b16 %v1797
    %v2957 = vunpack.c.l.b16 %v1798
    %v2958 = vunpack.c.h.b16 %v1798
    %v2959 = vunpack.c.l.b16 %v1799
    %v2960 = vunpack.c.h.b16 %v1799
    %v2961 = vunpack.c.l.b16 %v1800
    %v2962 = vunpack.c.h.b16 %v1800
    %v2963 = vunpack.c.l.b16 %v1801
    %v2964 = vunpack.c.h.b16 %v1801
    %v2965 = vunpack.c.l.b16 %v1802
    %v2966 = vunpack.c.h.b16 %v1802
    %v2967 = vunpack.c.l.b16 %v1803
    %v2968 = vunpack.c.h.b16 %v1803
    %v2969 = vunpack.c.l.b16 %v1804
    %v2970 = vunpack.c.h.b16 %v1804
    %v2971 = vunpack.c.l.b16 %v1805
    %v2972 = vunpack.c.h.b16 %v1805
    %v2973 = vunpack.c.l.b16 %v1806
    %v2974 = vunpack.c.h.b16 %v1806
    %v2975 = vunpack.c.l.b16 %v1807
    %v2976 = vunpack.c.h.b16 %v1807
    %v2977 = vunpack.c.l.b16 %v1808
    %v2978 = vunpack.c.h.b16 %v1808
    %v2979 = vunpack.c.l.b16 %v1809
    %v2980 = vunpack.c.h.b16 %v1809
    %v2981 = vunpack.c.l.b16 %v1810
    %v2982 = vunpack.c.h.b16 %v1810
    %v2983 = vunpack.c.l.b16 %v1811
    %v2984 = vunpack.c.h.b16 %v1811
    %v2985 = vunpack.c.l.b16 %v1812
    %v2986 = vunpack.c.h.b16 %v1812
    %v2987 = vunpack.c.l.b16 %v1813
    %v2988 = vunpack.c.h.b16 %v1813
    %v2989 = vunpack.c.l.b16 %v1814
    %v2990 = vunpack.c.h.b16 %v1814
    %v2991 = vunpack.c.l.b16 %v1815
    %v2992 = vunpack.c.h.b16 %v1815
    %v2993 = vunpack.c.l.b16 %v1816
    %v2994 = vunpack.c.h.b16 %v1816
    %v2995 = vunpack.c.l.b16 %v1817
    %v2996 = vunpack.c.h.b16 %v1817
    %v2997 = vunpack.c.l.b16 %v1818
    %v2998 = vunpack.c.h.b16 %v1818
    %v2999 = vunpack.c.l.b16 %v1819
    %v3000 = vunpack.c.h.b16 %v1819
    %v3001 = vunpack.c.l.b16 %v1820
    %v3002 = vunpack.c.h.b16 %v1820
    %v3003 = vunpack.c.l.b16 %v1821
    %v3004 = vunpack.c.h.b16 %v1821
    %v3005 = vunpack.c.l.b16 %v1822
    %v3006 = vunpack.c.h.b16 %v1822
    %v3007 = vpack.c.b16 %v2245, %v2239
    %v3008 = vpack.c.b16 %v2246, %v2240
    %v3009 = vpack.c.b16 %v2247, %v2241
    %v3010 = vpack.c.b16 %v2248, %v2242
    %v3011 = vpack.c.b16 %v2249, %v2243
    %v3012 = vpack.c.b16 %v2250, %v2244
    %v3013 = vpack.c.b16 %v2257, %v2251
    %v3014 = vpack.c.b16 %v2258, %v2252
    %v3015 = vpack.c.b16 %v2259, %v2253
    %v3016 = vpack.c.b16 %v2260, %v2254
    %v3017 = vpack.c.b16 %v2261, %v2255
    %v3018 = vpack.c.b16 %v2262, %v2256
    %v3019 = vpack.c.b16 %v2269, %v2263
    %v3020 = vpack.c.b16 %v2270, %v2264
    %v3021 = vpack.c.b16 %v2271, %v2265
    %v3022 = vpack.c.b16 %v2272, %v2266
    %v3023 = vpack.c.b16 %v2273, %v2267
    %v3024 = vpack.c.b16 %v2274, %v2268
    %v3025 = vpack.c.b16 %v2281, %v2275
    %v3026 = vpack.c.b16 %v2282, %v2276
    %v3027 = vpack.c.b16 %v2283, %v2277
    %v3028 = vpack.c.b16 %v2284, %v2278
    %v3029 = vpack.c.b16 %v2285, %v2279
    %v3030 = vpack.c.b16 %v2286, %v2280
    %v3031 = vpack.c.b16 %v2293, %v2287
    %v3032 = vpack.c.b16 %v2294, %v2288
    %v3033 = vpack.c.b16 %v2295, %v2289
    %v3034 = vpack.c.b16 %v2296, %v2290
    %v3035 = vpack.c.b16 %v2297, %v2291
    %v3036 = vpack.c.b16 %v2298, %v2292
    %v3037 = vpack.c.b16 %v2305, %v2299
    %v3038 = vpack.c.b16 %v2306, %v2300
    %v3039 = vpack.c.b16 %v2307, %v2301
    %v3040 = vpack.c.b16 %v2308, %v2302
    %v3041 = vpack.c.b16 %v2309, %v2303
    %v3042 = vpack.c.b16 %v2310, %v2304
    %v3043 = vpack.c.b16 %v2317, %v2311
    %v3044 = vpack.c.b16 %v2318, %v2312
    %v3045 = vpack.c.b16 %v2319, %v2313
    %v3046 = vpack.c.b16 %v2320, %v2314
    %v3047 = vpack.c.b16 %v2321, %v2315
    %v3048 = vpack.c.b16 %v2322, %v2316
    %v3049 = vpack.c.b16 %v2329, %v2323
    %v3050 = vpack.c.b16 %v2330, %v2324
    %v3051 = vpack.c.b16 %v2331, %v2325
    %v3052 = vpack.c.b16 %v2332, %v2326
    %v3053 = vpack.c.b16 %v2333, %v2327
    %v3054 = vpack.c.b16 %v2334, %v2328
    %v3055 = vpack.c.b16 %v2341, %v2335
    %v3056 = vpack.c.b16 %v2342, %v2336
    %v3057 = vpack.c.b16 %v2343, %v2337
    %v3058 = vpack.c.b16 %v2344, %v2338
    %v3059 = vpack.c.b16 %v2345, %v2339
    %v3060 = vpack.c.b16 %v2346, %v2340
    %v3061 = vpack.c.b16 %v2353, %v2347
    %v3062 = vpack.c.b16 %v2354, %v2348
    %v3063 = vpack.c.b16 %v2355, %v2349
    %v3064 = vpack.c.b16 %v2356, %v2350
    %v3065 = vpack.c.b16 %v2357, %v2351
    %v3066 = vpack.c.b16 %v2358, %v2352
    %v3067 = vpack.c.b16 %v2365, %v2359
    %v3068 = vpack.c.b16 %v2366, %v2360
    %v3069 = vpack.c.b16 %v2367, %v2361
    %v3070 = vpack.c.b16 %v2368, %v2362
    %v3071 = vpack.c.b16 %v2369, %v2363
    %v3072 = vpack.c.b16 %v2370, %v2364
    %v3073 = vpack.c.b16 %v2377, %v2371
    %v3074 = vpack.c.b16 %v2378, %v2372
    %v3075 = vpack.c.b16 %v2379, %v2373
    %v3076 = vpack.c.b16 %v2380, %v2374
    %v3077 = vpack.c.b16 %v2381, %v2375
    %v3078 = vpack.c.b16 %v2382, %v2376
    %v3079 = vpack.c.b16 %v2389, %v2383
    %v3080 = vpack.c.b16 %v2390, %v2384
    %v3081 = vpack.c.b16 %v2391, %v2385
    %v3082 = vpack.c.b16 %v2392, %v2386
    %v3083 = vpack.c.b16 %v2393, %v2387
    %v3084 = vpack.c.b16 %v2394, %v2388
    %v3085 = vpack.c.b16 %v2401, %v2395
    %v3086 = vpack.c.b16 %v2402, %v2396
    %v3087 = vpack.c.b16 %v2403, %v2397
    %v3088 = vpack.c.b16 %v2404, %v2398
    %v3089 = vpack.c.b16 %v2405, %v2399
    %v3090 = vpack.c.b16 %v2406, %v2400
    %v3091 = vpack.c.b16 %v2413, %v2407
    %v3092 = vpack.c.b16 %v2414, %v2408
    %v3093 = vpack.c.b16 %v2415, %v2409
    %v3094 = vpack.c.b16 %v2416, %v2410
    %v3095 = vpack.c.b16 %v2417, %v2411
    %v3096 = vpack.c.b16 %v2418, %v2412
    %v3097 = vpack.c.b16 %v2425, %v2419
    %v3098 = vpack.c.b16 %v2426, %v2420
    %v3099 = vpack.c.b16 %v2427, %v2421
    %v3100 = vpack.c.b16 %v2428, %v2422
    %v3101 = vpack.c.b16 %v2429, %v2423
    %v3102 = vpack.c.b16 %v2430, %v2424
    %v3103 = vpack.c.b16 %v2437, %v2431
    %v3104 = vpack.c.b16 %v2438, %v2432
    %v3105 = vpack.c.b16 %v2439, %v2433
    %v3106 = vpack.c.b16 %v2440, %v2434
    %v3107 = vpack.c.b16 %v2441, %v2435
    %v3108 = vpack.c.b16 %v2442, %v2436
    %v3109 = vpack.c.b16 %v2449, %v2443
    %v3110 = vpack.c.b16 %v2450, %v2444
    %v3111 = vpack.c.b16 %v2451, %v2445
    %v3112 = vpack.c.b16 %v2452, %v2446
    %v3113 = vpack.c.b16 %v2453, %v2447
    %v3114 = vpack.c.b16 %v2454, %v2448
    %v3115 = vpack.c.b16 %v2461, %v2455
    %v3116 = vpack.c.b16 %v2462, %v2456
    %v3117 = vpack.c.b16 %v2463, %v2457
    %v3118 = vpack.c.b16 %v2464, %v2458
    %v3119 = vpack.c.b16 %v2465, %v2459
    %v3120 = vpack.c.b16 %v2466, %v2460
    %v3121 = vpack.c.b16 %v2473, %v2467
    %v3122 = vpack.c.b16 %v2474, %v2468
    %v3123 = vpack.c.b16 %v2475, %v2469
    %v3124 = vpack.c.b16 %v2476, %v2470
    %v3125 = vpack.c.b16 %v2477, %v2471
    %v3126 = vpack.c.b16 %v2478, %v2472
    %v3127 = vpack.c.b16 %v2485, %v2479
    %v3128 = vpack.c.b16 %v2486, %v2480
    %v3129 = vpack.c.b16 %v2487, %v2481
    %v3130 = vpack.c.b16 %v2488, %v2482
    %v3131 = vpack.c.b16 %v2489, %v2483
    %v3132 = vpack.c.b16 %v2490, %v2484
    %v3133 = vpack.c.b16 %v2497, %v2491
    %v3134 = vpack.c.b16 %v2498, %v2492
    %v3135 = vpack.c.b16 %v2499, %v2493
    %v3136 = vpack.c.b16 %v2500, %v2494
    %v3137 = vpack.c.b16 %v2501, %v2495
    %v3138 = vpack.c.b16 %v2502, %v2496
    %v3139 = vpack.c.b16 %v2509, %v2503
    %v3140 = vpack.c.b16 %v2510, %v2504
    %v3141 = vpack.c.b16 %v2511, %v2505
    %v3142 = vpack.c.b16 %v2512, %v2506
    %v3143 = vpack.c.b16 %v2513, %v2507
    %v3144 = vpack.c.b16 %v2514, %v2508
    %v3145 = vpack.c.b16 %v2521, %v2515
    %v3146 = vpack.c.b16 %v2522, %v2516
    %v3147 = vpack.c.b16 %v2523, %v2517
    %v3148 = vpack.c.b16 %v2524, %v2518
    %v3149 = vpack.c.b16 %v2525, %v2519
    %v3150 = vpack.c.b16 %v2526, %v2520
    %v3151 = vpack.c.b16 %v2533, %v2527
    %v3152 = vpack.c.b16 %v2534, %v2528
    %v3153 = vpack.c.b16 %v2535, %v2529
    %v3154 = vpack.c.b16 %v2536, %v2530
    %v3155 = vpack.c.b16 %v2537, %v2531
    %v3156 = vpack.c.b16 %v2538, %v2532
    %v3157 = vpack.c.b16 %v2545, %v2539
    %v3158 = vpack.c.b16 %v2546, %v2540
    %v3159 = vpack.c.b16 %v2547, %v2541
    %v3160 = vpack.c.b16 %v2548, %v2542
    %v3161 = vpack.c.b16 %v2549, %v2543
    %v3162 = vpack.c.b16 %v2550, %v2544
    %v3163 = vpack.c.b16 %v2557, %v2551
    %v3164 = vpack.c.b16 %v2558, %v2552
    %v3165 = vpack.c.b16 %v2559, %v2553
    %v3166 = vpack.c.b16 %v2560, %v2554
    %v3167 = vpack.c.b16 %v2561, %v2555
    %v3168 = vpack.c.b16 %v2562, %v2556
    %v3169 = vpack.c.b16 %v2569, %v2563
    %v3170 = vpack.c.b16 %v2570, %v2564
    %v3171 = vpack.c.b16 %v2571, %v2565
    %v3172 = vpack.c.b16 %v2572, %v2566
    %v3173 = vpack.c.b16 %v2573, %v2567
    %v3174 = vpack.c.b16 %v2574, %v2568
    %v3175 = vpack.c.b16 %v2581, %v2575
    %v3176 = vpack.c.b16 %v2582, %v2576
    %v3177 = vpack.c.b16 %v2583, %v2577
    %v3178 = vpack.c.b16 %v2584, %v2578
    %v3179 = vpack.c.b16 %v2585, %v2579
    %v3180 = vpack.c.b16 %v2586, %v2580
    %v3181 = vpack.c.b16 %v2593, %v2587
    %v3182 = vpack.c.b16 %v2594, %v2588
    %v3183 = vpack.c.b16 %v2595, %v2589
    %v3184 = vpack.c.b16 %v2596, %v2590
    %v3185 = vpack.c.b16 %v2597, %v2591
    %v3186 = vpack.c.b16 %v2598, %v2592
    %v3187 = vpack.c.b16 %v2605, %v2599
    %v3188 = vpack.c.b16 %v2606, %v2600
    %v3189 = vpack.c.b16 %v2607, %v2601
    %v3190 = vpack.c.b16 %v2608, %v2602
    %v3191 = vpack.c.b16 %v2609, %v2603
    %v3192 = vpack.c.b16 %v2610, %v2604
    %v3193 = vpack.c.b16 %v2617, %v2611
    %v3194 = vpack.c.b16 %v2618, %v2612
    %v3195 = vpack.c.b16 %v2619, %v2613
    %v3196 = vpack.c.b16 %v2620, %v2614
    %v3197 = vpack.c.b16 %v2621, %v2615
    %v3198 = vpack.c.b16 %v2622, %v2616
    %v3199 = vpack.c.b16 %v2629, %v2623
    %v3200 = vpack.c.b16 %v2630, %v2624
    %v3201 = vpack.c.b16 %v2631, %v2625
    %v3202 = vpack.c.b16 %v2632, %v2626
    %v3203 = vpack.c.b16 %v2633, %v2627
    %v3204 = vpack.c.b16 %v2634, %v2628
    %v3205 = vpack.c.b16 %v2641, %v2635
    %v3206 = vpack.c.b16 %v2642, %v2636
    %v3207 = vpack.c.b16 %v2643, %v2637
    %v3208 = vpack.c.b16 %v2644, %v2638
    %v3209 = vpack.c.b16 %v2645, %v2639
    %v3210 = vpack.c.b16 %v2646, %v2640
    %v3211 = vpack.c.b16 %v2653, %v2647
    %v3212 = vpack.c.b16 %v2654, %v2648
    %v3213 = vpack.c.b16 %v2655, %v2649
    %v3214 = vpack.c.b16 %v2656, %v2650
    %v3215 = vpack.c.b16 %v2657, %v2651
    %v3216 = vpack.c.b16 %v2658, %v2652
    %v3217 = vpack.c.b16 %v2665, %v2659
    %v3218 = vpack.c.b16 %v2666, %v2660
    %v3219 = vpack.c.b16 %v2667, %v2661
    %v3220 = vpack.c.b16 %v2668, %v2662
    %v3221 = vpack.c.b16 %v2669, %v2663
    %v3222 = vpack.c.b16 %v2670, %v2664
    %v3223 = vpack.c.b16 %v2677, %v2671
    %v3224 = vpack.c.b16 %v2678, %v2672
    %v3225 = vpack.c.b16 %v2679, %v2673
    %v3226 = vpack.c.b16 %v2680, %v2674
    %v3227 = vpack.c.b16 %v2681, %v2675
    %v3228 = vpack.c.b16 %v2682, %v2676
    %v3229 = vpack.c.b16 %v2689, %v2683
    %v3230 = vpack.c.b16 %v2690, %v2684
    %v3231 = vpack.c.b16 %v2691, %v2685
    %v3232 = vpack.c.b16 %v2692, %v2686
    %v3233 = vpack.c.b16 %v2693, %v2687
    %v3234 = vpack.c.b16 %v2694, %v2688
    %v3235 = vpack.c.b16 %v2701, %v2695
    %v3236 = vpack.c.b16 %v2702, %v2696
    %v3237 = vpack.c.b16 %v2703, %v2697
    %v3238 = vpack.c.b16 %v2704, %v2698
    %v3239 = vpack.c.b16 %v2705, %v2699
    %v3240 = vpack.c.b16 %v2706, %v2700
    %v3241 = vpack.c.b16 %v2713, %v2707
    %v3242 = vpack.c.b16 %v2714, %v2708
    %v3243 = vpack.c.b16 %v2715, %v2709
    %v3244 = vpack.c.b16 %v2716, %v2710
    %v3245 = vpack.c.b16 %v2717, %v2711
    %v3246 = vpack.c.b16 %v2718, %v2712
    %v3247 = vpack.c.b16 %v2725, %v2719
    %v3248 = vpack.c.b16 %v2726, %v2720
    %v3249 = vpack.c.b16 %v2727, %v2721
    %v3250 = vpack.c.b16 %v2728, %v2722
    %v3251 = vpack.c.b16 %v2729, %v2723
    %v3252 = vpack.c.b16 %v2730, %v2724
    %v3253 = vpack.c.b16 %v2737, %v2731
    %v3254 = vpack.c.b16 %v2738, %v2732
    %v3255 = vpack.c.b16 %v2739, %v2733
    %v3256 = vpack.c.b16 %v2740, %v2734
    %v3257 = vpack.c.b16 %v2741, %v2735
    %v3258 = vpack.c.b16 %v2742, %v2736
    %v3259 = vpack.c.b16 %v2749, %v2743
    %v3260 = vpack.c.b16 %v2750, %v2744
    %v3261 = vpack.c.b16 %v2751, %v2745
    %v3262 = vpack.c.b16 %v2752, %v2746
    %v3263 = vpack.c.b16 %v2753, %v2747
    %v3264 = vpack.c.b16 %v2754, %v2748
    %v3265 = vpack.c.b16 %v2761, %v2755
    %v3266 = vpack.c.b16 %v2762, %v2756
    %v3267 = vpack.c.b16 %v2763, %v2757
    %v3268 = vpack.c.b16 %v2764, %v2758
    %v3269 = vpack.c.b16 %v2765, %v2759
    %v3270 = vpack.c.b16 %v2766, %v2760
    %v3271 = vpack.c.b16 %v2773, %v2767
    %v3272 = vpack.c.b16 %v2774, %v2768
    %v3273 = vpack.c.b16 %v2775, %v2769
    %v3274 = vpack.c.b16 %v2776, %v2770
    %v3275 = vpack.c.b16 %v2777, %v2771
    %v3276 = vpack.c.b16 %v2778, %v2772
    %v3277 = vpack.c.b16 %v2785, %v2779
    %v3278 = vpack.c.b16 %v2786, %v2780
    %v3279 = vpack.c.b16 %v2787, %v2781
    %v3280 = vpack.c.b16 %v2788, %v2782
    %v3281 = vpack.c.b16 %v2789, %v2783
    %v3282 = vpack.c.b16 %v2790, %v2784
    %v3283 = vpack.c.b16 %v2797, %v2791
    %v3284 = vpack.c.b16 %v2798, %v2792
    %v3285 = vpack.c.b16 %v2799, %v2793
    %v3286 = vpack.c.b16 %v2800, %v2794
    %v3287 = vpack.c.b16 %v2801, %v2795
    %v3288 = vpack.c.b16 %v2802, %v2796
    %v3289 = vpack.c.b16 %v2809, %v2803
    %v3290 = vpack.c.b16 %v2810, %v2804
    %v3291 = vpack.c.b16 %v2811, %v2805
    %v3292 = vpack.c.b16 %v2812, %v2806
    %v3293 = vpack.c.b16 %v2813, %v2807
    %v3294 = vpack.c.b16 %v2814, %v2808
    %v3295 = vpack.c.b16 %v2821, %v2815
    %v3296 = vpack.c.b16 %v2822, %v2816
    %v3297 = vpack.c.b16 %v2823, %v2817
    %v3298 = vpack.c.b16 %v2824, %v2818
    %v3299 = vpack.c.b16 %v2825, %v2819
    %v3300 = vpack.c.b16 %v2826, %v2820
    %v3301 = vpack.c.b16 %v2833, %v2827
    %v3302 = vpack.c.b16 %v2834, %v2828
    %v3303 = vpack.c.b16 %v2835, %v2829
    %v3304 = vpack.c.b16 %v2836, %v2830
    %v3305 = vpack.c.b16 %v2837, %v2831
    %v3306 = vpack.c.b16 %v2838, %v2832
    %v3307 = vpack.c.b16 %v2845, %v2839
    %v3308 = vpack.c.b16 %v2846, %v2840
    %v3309 = vpack.c.b16 %v2847, %v2841
    %v3310 = vpack.c.b16 %v2848, %v2842
    %v3311 = vpack.c.b16 %v2849, %v2843
    %v3312 = vpack.c.b16 %v2850, %v2844
    %v3313 = vpack.c.b16 %v2857, %v2851
    %v3314 = vpack.c.b16 %v2858, %v2852
    %v3315 = vpack.c.b16 %v2859, %v2853
    %v3316 = vpack.c.b16 %v2860, %v2854
    %v3317 = vpack.c.b16 %v2861, %v2855
    %v3318 = vpack.c.b16 %v2862, %v2856
    %v3319 = vpack.c.b16 %v2869, %v2863
    %v3320 = vpack.c.b16 %v2870, %v2864
    %v3321 = vpack.c.b16 %v2871, %v2865
    %v3322 = vpack.c.b16 %v2872, %v2866
    %v3323 = vpack.c.b16 %v2873, %v2867
    %v3324 = vpack.c.b16 %v2874, %v2868
    %v3325 = vpack.c.b16 %v2881, %v2875
    %v3326 = vpack.c.b16 %v2882, %v2876
    %v3327 = vpack.c.b16 %v2883, %v2877
    %v3328 = vpack.c.b16 %v2884, %v2878
    %v3329 = vpack.c.b16 %v2885, %v2879
    %v3330 = vpack.c.b16 %v2886, %v2880
    %v3331 = vpack.c.b16 %v2893, %v2887
    %v3332 = vpack.c.b16 %v2894, %v2888
    %v3333 = vpack.c.b16 %v2895, %v2889
    %v3334 = vpack.c.b16 %v2896, %v2890
    %v3335 = vpack.c.b16 %v2897, %v2891
    %v3336 = vpack.c.b16 %v2898, %v2892
    %v3337 = vpack.c.b16 %v2905, %v2899
    %v3338 = vpack.c.b16 %v2906, %v2900
    %v3339 = vpack.c.b16 %v2907, %v2901
    %v3340 = vpack.c.b16 %v2908, %v2902
    %v3341 = vpack.c.b16 %v2909, %v2903
    %v3342 = vpack.c.b16 %v2910, %v2904
    %v3343 = vpack.c.b16 %v2917, %v2911
    %v3344 = vpack.c.b16 %v2918, %v2912
    %v3345 = vpack.c.b16 %v2919, %v2913
    %v3346 = vpack.c.b16 %v2920, %v2914
    %v3347 = vpack.c.b16 %v2921, %v2915
    %v3348 = vpack.c.b16 %v2922, %v2916
    %v3349 = vpack.c.b16 %v2929, %v2923
    %v3350 = vpack.c.b16 %v2930, %v2924
    %v3351 = vpack.c.b16 %v2931, %v2925
    %v3352 = vpack.c.b16 %v2932, %v2926
    %v3353 = vpack.c.b16 %v2933, %v2927
    %v3354 = vpack.c.b16 %v2934, %v2928
    %v3355 = vpack.c.b16 %v2941, %v2935
    %v3356 = vpack.c.b16 %v2942, %v2936
    %v3357 = vpack.c.b16 %v2943, %v2937
    %v3358 = vpack.c.b16 %v2944, %v2938
    %v3359 = vpack.c.b16 %v2945, %v2939
    %v3360 = vpack.c.b16 %v2946, %v2940
    %v3361 = vpack.c.b16 %v2953, %v2947
    %v3362 = vpack.c.b16 %v2954, %v2948
    %v3363 = vpack.c.b16 %v2955, %v2949
    %v3364 = vpack.c.b16 %v2956, %v2950
    %v3365 = vpack.c.b16 %v2957, %v2951
    %v3366 = vpack.c.b16 %v2958, %v2952
    %v3367 = vpack.c.b16 %v2965, %v2959
    %v3368 = vpack.c.b16 %v2966, %v2960
    %v3369 = vpack.c.b16 %v2967, %v2961
    %v3370 = vpack.c.b16 %v2968, %v2962
    %v3371 = vpack.c.b16 %v2969, %v2963
    %v3372 = vpack.c.b16 %v2970, %v2964
    %v3373 = vpack.c.b16 %v2977, %v2971
    %v3374 = vpack.c.b16 %v2978, %v2972
    %v3375 = vpack.c.b16 %v2979, %v2973
    %v3376 = vpack.c.b16 %v2980, %v2974
    %v3377 = vpack.c.b16 %v2981, %v2975
    %v3378 = vpack.c.b16 %v2982, %v2976
    %v3379 = vpack.c.b16 %v2989, %v2983
    %v3380 = vpack.c.b16 %v2990, %v2984
    %v3381 = vpack.c.b16 %v2991, %v2985
    %v3382 = vpack.c.b16 %v2992, %v2986
    %v3383 = vpack.c.b16 %v2993, %v2987
    %v3384 = vpack.c.b16 %v2994, %v2988
    %v3385 = vpack.c.b16 %v3001, %v2995
    %v3386 = vpack.c.b16 %v3002, %v2996
    %v3387 = vpack.c.b16 %v3003, %v2997
    %v3388 = vpack.c.b16 %v3004, %v2998
    %v3389 = vpack.c.b16 %v3005, %v2999
    %v3390 = vpack.c.b16 %v3006, %v3000
    %3775 = vmatprep.subr.bf16.mxu0 %v3008
    %3776 = vmatpush1.bf16.msra.mxu0 %v3007
    %3777 = vmatprep.subr.bf16.mxu0 %v3014
    %3778 = vmatpush1.bf16.msra.mxu0 %v3013
    %3779 = vmatprep.subr.bf16.mxu0 %v3020
    %3780 = vmatpush1.bf16.msra.mxu0 %v3019
    %3781 = vmatprep.subr.bf16.mxu0 %v3026
    %3782 = vmatpush1.bf16.msra.mxu0 %v3025
    %3783 = vmatprep.subr.bf16.mxu0 %v3032
    %3784 = vmatpush1.bf16.msra.mxu0 %v3031
    %3785 = vmatprep.subr.bf16.mxu0 %v3038
    %3786 = vmatpush1.bf16.msra.mxu0 %v3037
    %3787 = vmatprep.subr.bf16.mxu0 %v3044
    %3788 = vmatpush1.bf16.msra.mxu0 %v3043
    %3789 = vmatprep.subr.bf16.mxu0 %v3050
    %3790 = vmatpush1.bf16.msra.mxu0 %v3049
    %3791 = vmatprep.subr.bf16.mxu0 %v3056
    %3792 = vmatpush1.bf16.msra.mxu0 %v3055
    %3793 = vmatprep.subr.bf16.mxu0 %v3062
    %3794 = vmatpush1.bf16.msra.mxu0 %v3061
    %3795 = vmatprep.subr.bf16.mxu0 %v3068
    %3796 = vmatpush1.bf16.msra.mxu0 %v3067
    %3797 = vmatprep.subr.bf16.mxu0 %v3074
    %3798 = vmatpush1.bf16.msra.mxu0 %v3073
    %3799 = vmatprep.subr.bf16.mxu0 %v3080
    %3800 = vmatpush1.bf16.msra.mxu0 %v3079
    %3801 = vmatprep.subr.bf16.mxu0 %v3086
    %3802 = vmatpush1.bf16.msra.mxu0 %v3085
    %3803 = vmatprep.subr.bf16.mxu0 %v3092
    %3804 = vmatpush1.bf16.msra.mxu0 %v3091
    %3805 = vmatprep.subr.bf16.mxu0 %v3098
    %3806 = vmatpush1.bf16.msra.mxu0 %v3097
    %3807 = vmatprep.mubr.bf16.mxu0 %v1432
    %3808 = vmatmul.mubr.bf16.gmra.mrb[0].mxu0 %v1431
    %v3809 = vpop.f32.mrb[0].mxu0
    %v3810 = vadd.f32 %v1828, %v3809
    %v3811 = vpop.f32.mrb[0].mxu0
    %v3812 = vadd.f32 %v1832, %v3811
    %v3813 = vpop.f32.mrb[0].mxu0
    %v3814 = vpop.f32.mrb[0].mxu0
    %3815 = vdwg.mxu0
    %3816 = vmatprep.subr.bf16.mxu0 %v3104
    %3817 = vmatpush1.bf16.msra.mxu0 %v3103
    %3818 = vmatprep.subr.bf16.mxu0 %v3110
    %3819 = vmatpush1.bf16.msra.mxu0 %v3109
    %3820 = vmatprep.subr.bf16.mxu0 %v3116
    %3821 = vmatpush1.bf16.msra.mxu0 %v3115
    %3822 = vmatprep.subr.bf16.mxu0 %v3122
    %3823 = vmatpush1.bf16.msra.mxu0 %v3121
    %3824 = vmatprep.subr.bf16.mxu0 %v3128
    %3825 = vmatpush1.bf16.msra.mxu0 %v3127
    %3826 = vmatprep.subr.bf16.mxu0 %v3134
    %3827 = vmatpush1.bf16.msra.mxu0 %v3133
    %3828 = vmatprep.subr.bf16.mxu0 %v3140
    %3829 = vmatpush1.bf16.msra.mxu0 %v3139
    %3830 = vmatprep.subr.bf16.mxu0 %v3146
    %3831 = vmatpush1.bf16.msra.mxu0 %v3145
    %3832 = vmatprep.subr.bf16.mxu0 %v3152
    %3833 = vmatpush1.bf16.msra.mxu0 %v3151
    %3834 = vmatprep.subr.bf16.mxu0 %v3158
    %3835 = vmatpush1.bf16.msra.mxu0 %v3157
    %3836 = vmatprep.subr.bf16.mxu0 %v3164
    %3837 = vmatpush1.bf16.msra.mxu0 %v3163
    %3838 = vmatprep.subr.bf16.mxu0 %v3170
    %3839 = vmatpush1.bf16.msra.mxu0 %v3169
    %3840 = vmatprep.subr.bf16.mxu0 %v3176
    %3841 = vmatpush1.bf16.msra.mxu0 %v3175
    %3842 = vmatprep.subr.bf16.mxu0 %v3182
    %3843 = vmatpush1.bf16.msra.mxu0 %v3181
    %3844 = vmatprep.subr.bf16.mxu0 %v3188
    %3845 = vmatpush1.bf16.msra.mxu0 %v3187
    %3846 = vmatprep.subr.bf16.mxu0 %v3194
    %3847 = vmatpush1.bf16.msra.mxu0 %v3193
    %3848 = vmatprep.mubr.bf16.mxu0 %v1434
    %3849 = vmatmul.mubr.bf16.gmra.mrb[0].mxu0 %v1433
    %v3850 = vpop.f32.mrb[0].mxu0
    %v3851 = vadd.f32 %v3810, %v3850
    %v3852 = vpop.f32.mrb[0].mxu0
    %v3853 = vadd.f32 %v3812, %v3852
    %v3854 = vpop.f32.mrb[0].mxu0
    %v3855 = vpop.f32.mrb[0].mxu0
    %3856 = vdwg.mxu0
    %3857 = vmatprep.subr.bf16.mxu0 %v3200
    %3858 = vmatpush1.bf16.msra.mxu0 %v3199
    %3859 = vmatprep.subr.bf16.mxu0 %v3206
    %3860 = vmatpush1.bf16.msra.mxu0 %v3205
    %3861 = vmatprep.subr.bf16.mxu0 %v3212
    %3862 = vmatpush1.bf16.msra.mxu0 %v3211
    %3863 = vmatprep.subr.bf16.mxu0 %v3218
    %3864 = vmatpush1.bf16.msra.mxu0 %v3217
    %3865 = vmatprep.subr.bf16.mxu0 %v3224
    %3866 = vmatpush1.bf16.msra.mxu0 %v3223
    %3867 = vmatprep.subr.bf16.mxu0 %v3230
    %3868 = vmatpush1.bf16.msra.mxu0 %v3229
    %3869 = vmatprep.subr.bf16.mxu0 %v3236
    %3870 = vmatpush1.bf16.msra.mxu0 %v3235
    %3871 = vmatprep.subr.bf16.mxu0 %v3242
    %3872 = vmatpush1.bf16.msra.mxu0 %v3241
    %3873 = vmatprep.subr.bf16.mxu0 %v3248
    %3874 = vmatpush1.bf16.msra.mxu0 %v3247
    %3875 = vmatprep.subr.bf16.mxu0 %v3254
    %3876 = vmatpush1.bf16.msra.mxu0 %v3253
    %3877 = vmatprep.subr.bf16.mxu0 %v3260
    %3878 = vmatpush1.bf16.msra.mxu0 %v3259
    %3879 = vmatprep.subr.bf16.mxu0 %v3266
    %3880 = vmatpush1.bf16.msra.mxu0 %v3265
    %3881 = vmatprep.subr.bf16.mxu0 %v3272
    %3882 = vmatpush1.bf16.msra.mxu0 %v3271
    %3883 = vmatprep.subr.bf16.mxu0 %v3278
    %3884 = vmatpush1.bf16.msra.mxu0 %v3277
    %3885 = vmatprep.subr.bf16.mxu0 %v3284
    %3886 = vmatpush1.bf16.msra.mxu0 %v3283
    %3887 = vmatprep.subr.bf16.mxu0 %v3290
    %3888 = vmatpush1.bf16.msra.mxu0 %v3289
    %3889 = vmatprep.mubr.bf16.mxu0 %v1436
    %3890 = vmatmul.mubr.bf16.gmra.mrb[0].mxu0 %v1435
    %v3891 = vpop.f32.mrb[0].mxu0
    %v3892 = vadd.f32 %v3851, %v3891
    %v3893 = vpop.f32.mrb[0].mxu0
    %v3894 = vadd.f32 %v3853, %v3893
    %v3895 = vpop.f32.mrb[0].mxu0
    %v3896 = vpop.f32.mrb[0].mxu0
    %3897 = vdwg.mxu0
    %3898 = vmatprep.subr.bf16.mxu0 %v3296
    %3899 = vmatpush1.bf16.msra.mxu0 %v3295
    %3900 = vmatprep.subr.bf16.mxu0 %v3302
    %3901 = vmatpush1.bf16.msra.mxu0 %v3301
    %3902 = vmatprep.subr.bf16.mxu0 %v3308
    %3903 = vmatpush1.bf16.msra.mxu0 %v3307
    %3904 = vmatprep.subr.bf16.mxu0 %v3314
    %3905 = vmatpush1.bf16.msra.mxu0 %v3313
    %3906 = vmatprep.subr.bf16.mxu0 %v3320
    %3907 = vmatpush1.bf16.msra.mxu0 %v3319
    %3908 = vmatprep.subr.bf16.mxu0 %v3326
    %3909 = vmatpush1.bf16.msra.mxu0 %v3325
    %3910 = vmatprep.subr.bf16.mxu0 %v3332
    %3911 = vmatpush1.bf16.msra.mxu0 %v3331
    %3912 = vmatprep.subr.bf16.mxu0 %v3338
    %3913 = vmatpush1.bf16.msra.mxu0 %v3337
    %3914 = vmatprep.subr.bf16.mxu0 %v3344
    %3915 = vmatpush1.bf16.msra.mxu0 %v3343
    %3916 = vmatprep.subr.bf16.mxu0 %v3350
    %3917 = vmatpush1.bf16.msra.mxu0 %v3349
    %3918 = vmatprep.subr.bf16.mxu0 %v3356
    %3919 = vmatpush1.bf16.msra.mxu0 %v3355
    %3920 = vmatprep.subr.bf16.mxu0 %v3362
    %3921 = vmatpush1.bf16.msra.mxu0 %v3361
    %3922 = vmatprep.subr.bf16.mxu0 %v3368
    %3923 = vmatpush1.bf16.msra.mxu0 %v3367
    %3924 = vmatprep.subr.bf16.mxu0 %v3374
    %3925 = vmatpush1.bf16.msra.mxu0 %v3373
    %3926 = vmatprep.subr.bf16.mxu0 %v3380
    %3927 = vmatpush1.bf16.msra.mxu0 %v3379
    %3928 = vmatprep.subr.bf16.mxu0 %v3386
    %3929 = vmatpush1.bf16.msra.mxu0 %v3385
    %3930 = vmatprep.mubr.bf16.mxu0 %v1438
    %3931 = vmatmul.mubr.bf16.gmra.mrb[0].mxu0 %v1437
    %v3932 = vpop.f32.mrb[0].mxu0
    %v3933 = vadd.f32 %v3892, %v3932
    %v3934 = vpop.f32.mrb[0].mxu0
    %v3935 = vadd.f32 %v3894, %v3934
    %v3936 = vpop.f32.mrb[0].mxu0
    %v3937 = vpop.f32.mrb[0].mxu0
    %3938 = vdwg.mxu0
    %3939 = vmatprep.subr.bf16.mxu0 %v3010
    %3940 = vmatpush1.bf16.msra.mxu0 %v3009
    %3941 = vmatprep.subr.bf16.mxu0 %v3016
    %3942 = vmatpush1.bf16.msra.mxu0 %v3015
    %3943 = vmatprep.subr.bf16.mxu0 %v3022
    %3944 = vmatpush1.bf16.msra.mxu0 %v3021
    %3945 = vmatprep.subr.bf16.mxu0 %v3028
    %3946 = vmatpush1.bf16.msra.mxu0 %v3027
    %3947 = vmatprep.subr.bf16.mxu0 %v3034
    %3948 = vmatpush1.bf16.msra.mxu0 %v3033
    %3949 = vmatprep.subr.bf16.mxu0 %v3040
    %3950 = vmatpush1.bf16.msra.mxu0 %v3039
    %3951 = vmatprep.subr.bf16.mxu0 %v3046
    %3952 = vmatpush1.bf16.msra.mxu0 %v3045
    %3953 = vmatprep.subr.bf16.mxu0 %v3052
    %3954 = vmatpush1.bf16.msra.mxu0 %v3051
    %3955 = vmatprep.subr.bf16.mxu0 %v3058
    %3956 = vmatpush1.bf16.msra.mxu0 %v3057
    %3957 = vmatprep.subr.bf16.mxu0 %v3064
    %3958 = vmatpush1.bf16.msra.mxu0 %v3063
    %3959 = vmatprep.subr.bf16.mxu0 %v3070
    %3960 = vmatpush1.bf16.msra.mxu0 %v3069
    %3961 = vmatprep.subr.bf16.mxu0 %v3076
    %3962 = vmatpush1.bf16.msra.mxu0 %v3075
    %3963 = vmatprep.subr.bf16.mxu0 %v3082
    %3964 = vmatpush1.bf16.msra.mxu0 %v3081
    %3965 = vmatprep.subr.bf16.mxu0 %v3088
    %3966 = vmatpush1.bf16.msra.mxu0 %v3087
    %3967 = vmatprep.subr.bf16.mxu0 %v3094
    %3968 = vmatpush1.bf16.msra.mxu0 %v3093
    %3969 = vmatprep.subr.bf16.mxu0 %v3100
    %3970 = vmatpush1.bf16.msra.mxu0 %v3099
    %3971 = vmatprep.mubr.bf16.mxu0 %v1432
    %3972 = vmatmul.mubr.bf16.gmra.mrb[0].mxu0 %v1431
    %v3973 = vpop.f32.mrb[0].mxu0
    %v3974 = vadd.f32 %v1836, %v3973
    %v3975 = vpop.f32.mrb[0].mxu0
    %v3976 = vadd.f32 %v1840, %v3975
    %v3977 = vpop.f32.mrb[0].mxu0
    %v3978 = vpop.f32.mrb[0].mxu0
    %3979 = vdwg.mxu0
    %3980 = vmatprep.subr.bf16.mxu0 %v3106
    %3981 = vmatpush1.bf16.msra.mxu0 %v3105
    %3982 = vmatprep.subr.bf16.mxu0 %v3112
    %3983 = vmatpush1.bf16.msra.mxu0 %v3111
    %3984 = vmatprep.subr.bf16.mxu0 %v3118
    %3985 = vmatpush1.bf16.msra.mxu0 %v3117
    %3986 = vmatprep.subr.bf16.mxu0 %v3124
    %3987 = vmatpush1.bf16.msra.mxu0 %v3123
    %3988 = vmatprep.subr.bf16.mxu0 %v3130
    %3989 = vmatpush1.bf16.msra.mxu0 %v3129
    %3990 = vmatprep.subr.bf16.mxu0 %v3136
    %3991 = vmatpush1.bf16.msra.mxu0 %v3135
    %3992 = vmatprep.subr.bf16.mxu0 %v3142
    %3993 = vmatpush1.bf16.msra.mxu0 %v3141
    %3994 = vmatprep.subr.bf16.mxu0 %v3148
    %3995 = vmatpush1.bf16.msra.mxu0 %v3147
    %3996 = vmatprep.subr.bf16.mxu0 %v3154
    %3997 = vmatpush1.bf16.msra.mxu0 %v3153
    %3998 = vmatprep.subr.bf16.mxu0 %v3160
    %3999 = vmatpush1.bf16.msra.mxu0 %v3159
    %4000 = vmatprep.subr.bf16.mxu0 %v3166
    %4001 = vmatpush1.bf16.msra.mxu0 %v3165
    %4002 = vmatprep.subr.bf16.mxu0 %v3172
    %4003 = vmatpush1.bf16.msra.mxu0 %v3171
    %4004 = vmatprep.subr.bf16.mxu0 %v3178
    %4005 = vmatpush1.bf16.msra.mxu0 %v3177
    %4006 = vmatprep.subr.bf16.mxu0 %v3184
    %4007 = vmatpush1.bf16.msra.mxu0 %v3183
    %4008 = vmatprep.subr.bf16.mxu0 %v3190
    %4009 = vmatpush1.bf16.msra.mxu0 %v3189
    %4010 = vmatprep.subr.bf16.mxu0 %v3196
    %4011 = vmatpush1.bf16.msra.mxu0 %v3195
    %4012 = vmatprep.mubr.bf16.mxu0 %v1434
    %4013 = vmatmul.mubr.bf16.gmra.mrb[0].mxu0 %v1433
    %v4014 = vpop.f32.mrb[0].mxu0
    %v4015 = vadd.f32 %v3974, %v4014
    %v4016 = vpop.f32.mrb[0].mxu0
    %v4017 = vadd.f32 %v3976, %v4016
    %v4018 = vpop.f32.mrb[0].mxu0
    %v4019 = vpop.f32.mrb[0].mxu0
    %4020 = vdwg.mxu0
    %4021 = vmatprep.subr.bf16.mxu0 %v3202
    %4022 = vmatpush1.bf16.msra.mxu0 %v3201
    %4023 = vmatprep.subr.bf16.mxu0 %v3208
    %4024 = vmatpush1.bf16.msra.mxu0 %v3207
    %4025 = vmatprep.subr.bf16.mxu0 %v3214
    %4026 = vmatpush1.bf16.msra.mxu0 %v3213
    %4027 = vmatprep.subr.bf16.mxu0 %v3220
    %4028 = vmatpush1.bf16.msra.mxu0 %v3219
    %4029 = vmatprep.subr.bf16.mxu0 %v3226
    %4030 = vmatpush1.bf16.msra.mxu0 %v3225
    %4031 = vmatprep.subr.bf16.mxu0 %v3232
    %4032 = vmatpush1.bf16.msra.mxu0 %v3231
    %4033 = vmatprep.subr.bf16.mxu0 %v3238
    %4034 = vmatpush1.bf16.msra.mxu0 %v3237
    %4035 = vmatprep.subr.bf16.mxu0 %v3244
    %4036 = vmatpush1.bf16.msra.mxu0 %v3243
    %4037 = vmatprep.subr.bf16.mxu0 %v3250
    %4038 = vmatpush1.bf16.msra.mxu0 %v3249
    %4039 = vmatprep.subr.bf16.mxu0 %v3256
    %4040 = vmatpush1.bf16.msra.mxu0 %v3255
    %4041 = vmatprep.subr.bf16.mxu0 %v3262
    %4042 = vmatpush1.bf16.msra.mxu0 %v3261
    %4043 = vmatprep.subr.bf16.mxu0 %v3268
    %4044 = vmatpush1.bf16.msra.mxu0 %v3267
    %4045 = vmatprep.subr.bf16.mxu0 %v3274
    %4046 = vmatpush1.bf16.msra.mxu0 %v3273
    %4047 = vmatprep.subr.bf16.mxu0 %v3280
    %4048 = vmatpush1.bf16.msra.mxu0 %v3279
    %4049 = vmatprep.subr.bf16.mxu0 %v3286
    %4050 = vmatpush1.bf16.msra.mxu0 %v3285
    %4051 = vmatprep.subr.bf16.mxu0 %v3292
    %4052 = vmatpush1.bf16.msra.mxu0 %v3291
    %4053 = vmatprep.mubr.bf16.mxu0 %v1436
    %4054 = vmatmul.mubr.bf16.gmra.mrb[0].mxu0 %v1435
    %v4055 = vpop.f32.mrb[0].mxu0
    %v4056 = vadd.f32 %v4015, %v4055
    %v4057 = vpop.f32.mrb[0].mxu0
    %v4058 = vadd.f32 %v4017, %v4057
    %v4059 = vpop.f32.mrb[0].mxu0
    %v4060 = vpop.f32.mrb[0].mxu0
    %4061 = vdwg.mxu0
    %4062 = vmatprep.subr.bf16.mxu0 %v3298
    %4063 = vmatpush1.bf16.msra.mxu0 %v3297
    %4064 = vmatprep.subr.bf16.mxu0 %v3304
    %4065 = vmatpush1.bf16.msra.mxu0 %v3303
    %4066 = vmatprep.subr.bf16.mxu0 %v3310
    %4067 = vmatpush1.bf16.msra.mxu0 %v3309
    %4068 = vmatprep.subr.bf16.mxu0 %v3316
    %4069 = vmatpush1.bf16.msra.mxu0 %v3315
    %4070 = vmatprep.subr.bf16.mxu0 %v3322
    %4071 = vmatpush1.bf16.msra.mxu0 %v3321
    %4072 = vmatprep.subr.bf16.mxu0 %v3328
    %4073 = vmatpush1.bf16.msra.mxu0 %v3327
    %4074 = vmatprep.subr.bf16.mxu0 %v3334
    %4075 = vmatpush1.bf16.msra.mxu0 %v3333
    %4076 = vmatprep.subr.bf16.mxu0 %v3340
    %4077 = vmatpush1.bf16.msra.mxu0 %v3339
    %4078 = vmatprep.subr.bf16.mxu0 %v3346
    %4079 = vmatpush1.bf16.msra.mxu0 %v3345
    %4080 = vmatprep.subr.bf16.mxu0 %v3352
    %4081 = vmatpush1.bf16.msra.mxu0 %v3351
    %4082 = vmatprep.subr.bf16.mxu0 %v3358
    %4083 = vmatpush1.bf16.msra.mxu0 %v3357
    %4084 = vmatprep.subr.bf16.mxu0 %v3364
    %4085 = vmatpush1.bf16.msra.mxu0 %v3363
    %4086 = vmatprep.subr.bf16.mxu0 %v3370
    %4087 = vmatpush1.bf16.msra.mxu0 %v3369
    %4088 = vmatprep.subr.bf16.mxu0 %v3376
    %4089 = vmatpush1.bf16.msra.mxu0 %v3375
    %4090 = vmatprep.subr.bf16.mxu0 %v3382
    %4091 = vmatpush1.bf16.msra.mxu0 %v3381
    %4092 = vmatprep.subr.bf16.mxu0 %v3388
    %4093 = vmatpush1.bf16.msra.mxu0 %v3387
    %4094 = vmatprep.mubr.bf16.mxu0 %v1438
    %4095 = vmatmul.mubr.bf16.gmra.mrb[0].mxu0 %v1437
    %v4096 = vpop.f32.mrb[0].mxu0
    %v4097 = vadd.f32 %v4056, %v4096
    %v4098 = vpop.f32.mrb[0].mxu0
    %v4099 = vadd.f32 %v4058, %v4098
    %v4100 = vpop.f32.mrb[0].mxu0
    %v4101 = vpop.f32.mrb[0].mxu0
    %4102 = vdwg.mxu0
    %4103 = vmatprep.subr.bf16.mxu0 %v3012
    %4104 = vmatpush1.bf16.msra.mxu0 %v3011
    %4105 = vmatprep.subr.bf16.mxu0 %v3018
    %4106 = vmatpush1.bf16.msra.mxu0 %v3017
    %4107 = vmatprep.subr.bf16.mxu0 %v3024
    %4108 = vmatpush1.bf16.msra.mxu0 %v3023
    %4109 = vmatprep.subr.bf16.mxu0 %v3030
    %4110 = vmatpush1.bf16.msra.mxu0 %v3029
    %4111 = vmatprep.subr.bf16.mxu0 %v3036
    %4112 = vmatpush1.bf16.msra.mxu0 %v3035
    %4113 = vmatprep.subr.bf16.mxu0 %v3042
    %4114 = vmatpush1.bf16.msra.mxu0 %v3041
    %4115 = vmatprep.subr.bf16.mxu0 %v3048
    %4116 = vmatpush1.bf16.msra.mxu0 %v3047
    %4117 = vmatprep.subr.bf16.mxu0 %v3054
    %4118 = vmatpush1.bf16.msra.mxu0 %v3053
    %4119 = vmatprep.subr.bf16.mxu0 %v3060
    %4120 = vmatpush1.bf16.msra.mxu0 %v3059
    %4121 = vmatprep.subr.bf16.mxu0 %v3066
    %4122 = vmatpush1.bf16.msra.mxu0 %v3065
    %4123 = vmatprep.subr.bf16.mxu0 %v3072
    %4124 = vmatpush1.bf16.msra.mxu0 %v3071
    %4125 = vmatprep.subr.bf16.mxu0 %v3078
    %4126 = vmatpush1.bf16.msra.mxu0 %v3077
    %4127 = vmatprep.subr.bf16.mxu0 %v3084
    %4128 = vmatpush1.bf16.msra.mxu0 %v3083
    %4129 = vmatprep.subr.bf16.mxu0 %v3090
    %4130 = vmatpush1.bf16.msra.mxu0 %v3089
    %4131 = vmatprep.subr.bf16.mxu0 %v3096
    %4132 = vmatpush1.bf16.msra.mxu0 %v3095
    %4133 = vmatprep.subr.bf16.mxu0 %v3102
    %4134 = vmatpush1.bf16.msra.mxu0 %v3101
    %4135 = vmatprep.mubr.bf16.mxu0 %v1432
    %4136 = vmatmul.mubr.bf16.gmra.mrb[0].mxu0 %v1431
    %v4137 = vpop.f32.mrb[0].mxu0
    %v4138 = vadd.f32 %v1844, %v4137
    %v4139 = vpop.f32.mrb[0].mxu0
    %v4140 = vadd.f32 %v1848, %v4139
    %v4141 = vpop.f32.mrb[0].mxu0
    %v4142 = vpop.f32.mrb[0].mxu0
    %4143 = vdwg.mxu0
    %4144 = vmatprep.subr.bf16.mxu0 %v3108
    %4145 = vmatpush1.bf16.msra.mxu0 %v3107
    %4146 = vmatprep.subr.bf16.mxu0 %v3114
    %4147 = vmatpush1.bf16.msra.mxu0 %v3113
    %4148 = vmatprep.subr.bf16.mxu0 %v3120
    %4149 = vmatpush1.bf16.msra.mxu0 %v3119
    %4150 = vmatprep.subr.bf16.mxu0 %v3126
    %4151 = vmatpush1.bf16.msra.mxu0 %v3125
    %4152 = vmatprep.subr.bf16.mxu0 %v3132
    %4153 = vmatpush1.bf16.msra.mxu0 %v3131
    %4154 = vmatprep.subr.bf16.mxu0 %v3138
    %4155 = vmatpush1.bf16.msra.mxu0 %v3137
    %4156 = vmatprep.subr.bf16.mxu0 %v3144
    %4157 = vmatpush1.bf16.msra.mxu0 %v3143
    %4158 = vmatprep.subr.bf16.mxu0 %v3150
    %4159 = vmatpush1.bf16.msra.mxu0 %v3149
    %4160 = vmatprep.subr.bf16.mxu0 %v3156
    %4161 = vmatpush1.bf16.msra.mxu0 %v3155
    %4162 = vmatprep.subr.bf16.mxu0 %v3162
    %4163 = vmatpush1.bf16.msra.mxu0 %v3161
    %4164 = vmatprep.subr.bf16.mxu0 %v3168
    %4165 = vmatpush1.bf16.msra.mxu0 %v3167
    %4166 = vmatprep.subr.bf16.mxu0 %v3174
    %4167 = vmatpush1.bf16.msra.mxu0 %v3173
    %4168 = vmatprep.subr.bf16.mxu0 %v3180
    %4169 = vmatpush1.bf16.msra.mxu0 %v3179
    %4170 = vmatprep.subr.bf16.mxu0 %v3186
    %4171 = vmatpush1.bf16.msra.mxu0 %v3185
    %4172 = vmatprep.subr.bf16.mxu0 %v3192
    %4173 = vmatpush1.bf16.msra.mxu0 %v3191
    %4174 = vmatprep.subr.bf16.mxu0 %v3198
    %4175 = vmatpush1.bf16.msra.mxu0 %v3197
    %4176 = vmatprep.mubr.bf16.mxu0 %v1434
    %4177 = vmatmul.mubr.bf16.gmra.mrb[0].mxu0 %v1433
    %v4178 = vpop.f32.mrb[0].mxu0
    %v4179 = vadd.f32 %v4138, %v4178
    %v4180 = vpop.f32.mrb[0].mxu0
    %v4181 = vadd.f32 %v4140, %v4180
    %v4182 = vpop.f32.mrb[0].mxu0
    %v4183 = vpop.f32.mrb[0].mxu0
    %4184 = vdwg.mxu0
    %4185 = vmatprep.subr.bf16.mxu0 %v3204
    %4186 = vmatpush1.bf16.msra.mxu0 %v3203
    %4187 = vmatprep.subr.bf16.mxu0 %v3210
    %4188 = vmatpush1.bf16.msra.mxu0 %v3209
    %4189 = vmatprep.subr.bf16.mxu0 %v3216
    %4190 = vmatpush1.bf16.msra.mxu0 %v3215
    %4191 = vmatprep.subr.bf16.mxu0 %v3222
    %4192 = vmatpush1.bf16.msra.mxu0 %v3221
    %4193 = vmatprep.subr.bf16.mxu0 %v3228
    %4194 = vmatpush1.bf16.msra.mxu0 %v3227
    %4195 = vmatprep.subr.bf16.mxu0 %v3234
    %4196 = vmatpush1.bf16.msra.mxu0 %v3233
    %4197 = vmatprep.subr.bf16.mxu0 %v3240
    %4198 = vmatpush1.bf16.msra.mxu0 %v3239
    %4199 = vmatprep.subr.bf16.mxu0 %v3246
    %4200 = vmatpush1.bf16.msra.mxu0 %v3245
    %4201 = vmatprep.subr.bf16.mxu0 %v3252
    %4202 = vmatpush1.bf16.msra.mxu0 %v3251
    %4203 = vmatprep.subr.bf16.mxu0 %v3258
    %4204 = vmatpush1.bf16.msra.mxu0 %v3257
    %4205 = vmatprep.subr.bf16.mxu0 %v3264
    %4206 = vmatpush1.bf16.msra.mxu0 %v3263
    %4207 = vmatprep.subr.bf16.mxu0 %v3270
    %4208 = vmatpush1.bf16.msra.mxu0 %v3269
    %4209 = vmatprep.subr.bf16.mxu0 %v3276
    %4210 = vmatpush1.bf16.msra.mxu0 %v3275
    %4211 = vmatprep.subr.bf16.mxu0 %v3282
    %4212 = vmatpush1.bf16.msra.mxu0 %v3281
    %4213 = vmatprep.subr.bf16.mxu0 %v3288
    %4214 = vmatpush1.bf16.msra.mxu0 %v3287
    %4215 = vmatprep.subr.bf16.mxu0 %v3294
    %4216 = vmatpush1.bf16.msra.mxu0 %v3293
    %4217 = vmatprep.mubr.bf16.mxu0 %v1436
    %4218 = vmatmul.mubr.bf16.gmra.mrb[0].mxu0 %v1435
    %v4219 = vpop.f32.mrb[0].mxu0
    %v4220 = vadd.f32 %v4179, %v4219
    %v4221 = vpop.f32.mrb[0].mxu0
    %v4222 = vadd.f32 %v4181, %v4221
    %v4223 = vpop.f32.mrb[0].mxu0
    %v4224 = vpop.f32.mrb[0].mxu0
    %4225 = vdwg.mxu0
    %4226 = vmatprep.subr.bf16.mxu0 %v3300
    %4227 = vmatpush1.bf16.msra.mxu0 %v3299
    %4228 = vmatprep.subr.bf16.mxu0 %v3306
    %4229 = vmatpush1.bf16.msra.mxu0 %v3305
    %4230 = vmatprep.subr.bf16.mxu0 %v3312
    %4231 = vmatpush1.bf16.msra.mxu0 %v3311
    %4232 = vmatprep.subr.bf16.mxu0 %v3318
    %4233 = vmatpush1.bf16.msra.mxu0 %v3317
    %4234 = vmatprep.subr.bf16.mxu0 %v3324
    %4235 = vmatpush1.bf16.msra.mxu0 %v3323
    %4236 = vmatprep.subr.bf16.mxu0 %v3330
    %4237 = vmatpush1.bf16.msra.mxu0 %v3329
    %4238 = vmatprep.subr.bf16.mxu0 %v3336
    %4239 = vmatpush1.bf16.msra.mxu0 %v3335
    %4240 = vmatprep.subr.bf16.mxu0 %v3342
    %4241 = vmatpush1.bf16.msra.mxu0 %v3341
    %4242 = vmatprep.subr.bf16.mxu0 %v3348
    %4243 = vmatpush1.bf16.msra.mxu0 %v3347
    %4244 = vmatprep.subr.bf16.mxu0 %v3354
    %4245 = vmatpush1.bf16.msra.mxu0 %v3353
    %4246 = vmatprep.subr.bf16.mxu0 %v3360
    %4247 = vmatpush1.bf16.msra.mxu0 %v3359
    %4248 = vmatprep.subr.bf16.mxu0 %v3366
    %4249 = vmatpush1.bf16.msra.mxu0 %v3365
    %4250 = vmatprep.subr.bf16.mxu0 %v3372
    %4251 = vmatpush1.bf16.msra.mxu0 %v3371
    %4252 = vmatprep.subr.bf16.mxu0 %v3378
    %4253 = vmatpush1.bf16.msra.mxu0 %v3377
    %4254 = vmatprep.subr.bf16.mxu0 %v3384
    %4255 = vmatpush1.bf16.msra.mxu0 %v3383
    %4256 = vmatprep.subr.bf16.mxu0 %v3390
    %4257 = vmatpush1.bf16.msra.mxu0 %v3389
    %4258 = vmatprep.mubr.bf16.mxu0 %v1438
    %4259 = vmatmul.mubr.bf16.gmra.mrb[0].mxu0 %v1437
    %v4260 = vpop.f32.mrb[0].mxu0
    %v4261 = vadd.f32 %v4220, %v4260
    %v4262 = vpop.f32.mrb[0].mxu0
    %v4263 = vadd.f32 %v4222, %v4262
    %v4264 = vpop.f32.mrb[0].mxu0
    %v4265 = vpop.f32.mrb[0].mxu0
    %4266 = vdwg.mxu0
    %v4267 = vld [vmem:[%s11] sm:$0xff]
    %v4268 = vld [vmem:[%s11 + $0x8] sm:$0xff]
    %v4269 = vld [vmem:[%s12] sm:$0xff]
    %v4270 = vld [vmem:[%s12 + $0x8] sm:$0xff]
    %v4271 = vld [vmem:[#allocation15] sm:$0xff]
    %v4272 = vld [vmem:[#allocation15 + $0x8] sm:$0xff]
    %v4273 = vld [vmem:[#allocation15 + $0x10] sm:$0xff]
    %v4274 = vld [vmem:[#allocation15 + $0x18] sm:$0xff]
    %v4275 = vld [vmem:[#allocation15 + $0x20] sm:$0xff]
    %v4276 = vld [vmem:[#allocation15 + $0x28] sm:$0xff]
    %v4278 = vsel %vm154, %v4269, 0
    %v4281 = vsel %vm154, %v4270, 0
    %4283 = vmatprep.subr.mxu0 %v4272
    %4284 = vmatpush1.msra.mxu0 %v4271
    %4285 = vmatprep.subr.mxu0 0.0
    %4286 = vmatpush1.msra.mxu0 0.0
    %4287 = vmatprep.subr.mxu0 0.0
    %4288 = vmatpush1.msra.mxu0 0.0
    %4289 = vmatprep.subr.mxu0 0.0
    %4290 = vmatpush1.msra.mxu0 0.0
    %4291 = vmatprep.subr.mxu0 0.0
    %4292 = vmatpush1.msra.mxu0 0.0
    %4293 = vmatprep.subr.mxu0 0.0
    %4294 = vmatpush1.msra.mxu0 0.0
    %4295 = vmatprep.subr.mxu0 0.0
    %4296 = vmatpush1.msra.mxu0 0.0
    %4297 = vmatprep.subr.mxu0 0.0
    %4298 = vmatpush1.msra.mxu0 0.0
    %4299 = vmatprep.subr.mxu0 0.0
    %4300 = vmatpush1.msra.mxu0 0.0
    %4301 = vmatprep.subr.mxu0 0.0
    %4302 = vmatpush1.msra.mxu0 0.0
    %4303 = vmatprep.subr.mxu0 0.0
    %4304 = vmatpush1.msra.mxu0 0.0
    %4305 = vmatprep.subr.mxu0 0.0
    %4306 = vmatpush1.msra.mxu0 0.0
    %4307 = vmatprep.subr.mxu0 0.0
    %4308 = vmatpush1.msra.mxu0 0.0
    %4309 = vmatprep.subr.mxu0 0.0
    %4310 = vmatpush1.msra.mxu0 0.0
    %4311 = vmatprep.subr.mxu0 0.0
    %4312 = vmatpush1.msra.mxu0 0.0
    %4313 = vmatprep.subr.mxu0 0.0
    %4314 = vmatpush1.msra.mxu0 0.0
    %4315 = vmatprep.subr.mxu0 0.0
    %4316 = vmatpush1.msra.mxu0 0.0
    %4317 = vmatprep.subr.mxu0 0.0
    %4318 = vmatpush1.msra.mxu0 0.0
    %4319 = vmatprep.subr.mxu0 0.0
    %4320 = vmatpush1.msra.mxu0 0.0
    %4321 = vmatprep.subr.mxu0 0.0
    %4322 = vmatpush1.msra.mxu0 0.0
    %4323 = vmatprep.subr.mxu0 0.0
    %4324 = vmatpush1.msra.mxu0 0.0
    %4325 = vmatprep.subr.mxu0 0.0
    %4326 = vmatpush1.msra.mxu0 0.0
    %4327 = vmatprep.subr.mxu0 0.0
    %4328 = vmatpush1.msra.mxu0 0.0
    %4329 = vmatprep.subr.mxu0 0.0
    %4330 = vmatpush1.msra.mxu0 0.0
    %4331 = vmatprep.subr.mxu0 0.0
    %4332 = vmatpush1.msra.mxu0 0.0
    %4333 = vmatprep.subr.mxu0 0.0
    %4334 = vmatpush1.msra.mxu0 0.0
    %4335 = vmatprep.subr.mxu0 0.0
    %4336 = vmatpush1.msra.mxu0 0.0
    %4337 = vmatprep.subr.mxu0 0.0
    %4338 = vmatpush1.msra.mxu0 0.0
    %4339 = vmatprep.subr.mxu0 0.0
    %4340 = vmatpush1.msra.mxu0 0.0
    %4341 = vmatprep.subr.mxu0 0.0
    %4342 = vmatpush1.msra.mxu0 0.0
    %4343 = vmatprep.subr.mxu0 0.0
    %4344 = vmatpush1.msra.mxu0 0.0
    %4345 = vmatprep.subr.mxu0 0.0
    %4346 = vmatpush1.msra.mxu0 0.0
    %4347 = vmatprep.mubr.f32.mxu0 0.0
    %4348 = vmatmul.mubr.f32.gmra.mrb[0].mxu0 %v4278
    %v4349 = vpop.f32.mrb[0].mxu0
    %v4350 = vadd.f32 0.0, %v4349
    %v4351 = vpop.f32.mrb[0].mxu0
    %v4352 = vadd.f32 0.0, %v4351
    %4353 = vmatprep.mubr.f32.mxu0 0.0
    %4354 = vmatmul.mubr.f32.gmra.mrb[0].mxu0 %v4281
    %v4355 = vpop.f32.mrb[0].mxu0
    %v4356 = vadd.f32 0.0, %v4355
    %v4357 = vpop.f32.mrb[0].mxu0
    %v4358 = vadd.f32 0.0, %v4357
    %4359 = vdwg.mxu0
    %4360 = vmatprep.subr.mxu0 %v4274
    %4361 = vmatpush1.msra.mxu0 %v4273
    %4362 = vmatprep.subr.mxu0 0.0
    %4363 = vmatpush1.msra.mxu0 0.0
    %4364 = vmatprep.subr.mxu0 0.0
    %4365 = vmatpush1.msra.mxu0 0.0
    %4366 = vmatprep.subr.mxu0 0.0
    %4367 = vmatpush1.msra.mxu0 0.0
    %4368 = vmatprep.subr.mxu0 0.0
    %4369 = vmatpush1.msra.mxu0 0.0
    %4370 = vmatprep.subr.mxu0 0.0
    %4371 = vmatpush1.msra.mxu0 0.0
    %4372 = vmatprep.subr.mxu0 0.0
    %4373 = vmatpush1.msra.mxu0 0.0
    %4374 = vmatprep.subr.mxu0 0.0
    %4375 = vmatpush1.msra.mxu0 0.0
    %4376 = vmatprep.subr.mxu0 0.0
    %4377 = vmatpush1.msra.mxu0 0.0
    %4378 = vmatprep.subr.mxu0 0.0
    %4379 = vmatpush1.msra.mxu0 0.0
    %4380 = vmatprep.subr.mxu0 0.0
    %4381 = vmatpush1.msra.mxu0 0.0
    %4382 = vmatprep.subr.mxu0 0.0
    %4383 = vmatpush1.msra.mxu0 0.0
    %4384 = vmatprep.subr.mxu0 0.0
    %4385 = vmatpush1.msra.mxu0 0.0
    %4386 = vmatprep.subr.mxu0 0.0
    %4387 = vmatpush1.msra.mxu0 0.0
    %4388 = vmatprep.subr.mxu0 0.0
    %4389 = vmatpush1.msra.mxu0 0.0
    %4390 = vmatprep.subr.mxu0 0.0
    %4391 = vmatpush1.msra.mxu0 0.0
    %4392 = vmatprep.subr.mxu0 0.0
    %4393 = vmatpush1.msra.mxu0 0.0
    %4394 = vmatprep.subr.mxu0 0.0
    %4395 = vmatpush1.msra.mxu0 0.0
    %4396 = vmatprep.subr.mxu0 0.0
    %4397 = vmatpush1.msra.mxu0 0.0
    %4398 = vmatprep.subr.mxu0 0.0
    %4399 = vmatpush1.msra.mxu0 0.0
    %4400 = vmatprep.subr.mxu0 0.0
    %4401 = vmatpush1.msra.mxu0 0.0
    %4402 = vmatprep.subr.mxu0 0.0
    %4403 = vmatpush1.msra.mxu0 0.0
    %4404 = vmatprep.subr.mxu0 0.0
    %4405 = vmatpush1.msra.mxu0 0.0
    %4406 = vmatprep.subr.mxu0 0.0
    %4407 = vmatpush1.msra.mxu0 0.0
    %4408 = vmatprep.subr.mxu0 0.0
    %4409 = vmatpush1.msra.mxu0 0.0
    %4410 = vmatprep.subr.mxu0 0.0
    %4411 = vmatpush1.msra.mxu0 0.0
    %4412 = vmatprep.subr.mxu0 0.0
    %4413 = vmatpush1.msra.mxu0 0.0
    %4414 = vmatprep.subr.mxu0 0.0
    %4415 = vmatpush1.msra.mxu0 0.0
    %4416 = vmatprep.subr.mxu0 0.0
    %4417 = vmatpush1.msra.mxu0 0.0
    %4418 = vmatprep.subr.mxu0 0.0
    %4419 = vmatpush1.msra.mxu0 0.0
    %4420 = vmatprep.subr.mxu0 0.0
    %4421 = vmatpush1.msra.mxu0 0.0
    %4422 = vmatprep.subr.mxu0 0.0
    %4423 = vmatpush1.msra.mxu0 0.0
    %4424 = vmatprep.mubr.f32.mxu0 0.0
    %4425 = vmatmul.mubr.f32.gmra.mrb[0].mxu0 %v4278
    %v4426 = vpop.f32.mrb[0].mxu0
    %v4427 = vadd.f32 0.0, %v4426
    %v4428 = vpop.f32.mrb[0].mxu0
    %v4429 = vadd.f32 0.0, %v4428
    %4430 = vmatprep.mubr.f32.mxu0 0.0
    %4431 = vmatmul.mubr.f32.gmra.mrb[0].mxu0 %v4281
    %v4432 = vpop.f32.mrb[0].mxu0
    %v4433 = vadd.f32 0.0, %v4432
    %v4434 = vpop.f32.mrb[0].mxu0
    %v4435 = vadd.f32 0.0, %v4434
    %4436 = vdwg.mxu0
    %4437 = vmatprep.subr.mxu0 %v4276
    %4438 = vmatpush1.msra.mxu0 %v4275
    %4439 = vmatprep.subr.mxu0 0.0
    %4440 = vmatpush1.msra.mxu0 0.0
    %4441 = vmatprep.subr.mxu0 0.0
    %4442 = vmatpush1.msra.mxu0 0.0
    %4443 = vmatprep.subr.mxu0 0.0
    %4444 = vmatpush1.msra.mxu0 0.0
    %4445 = vmatprep.subr.mxu0 0.0
    %4446 = vmatpush1.msra.mxu0 0.0
    %4447 = vmatprep.subr.mxu0 0.0
    %4448 = vmatpush1.msra.mxu0 0.0
    %4449 = vmatprep.subr.mxu0 0.0
    %4450 = vmatpush1.msra.mxu0 0.0
    %4451 = vmatprep.subr.mxu0 0.0
    %4452 = vmatpush1.msra.mxu0 0.0
    %4453 = vmatprep.subr.mxu0 0.0
    %4454 = vmatpush1.msra.mxu0 0.0
    %4455 = vmatprep.subr.mxu0 0.0
    %4456 = vmatpush1.msra.mxu0 0.0
    %4457 = vmatprep.subr.mxu0 0.0
    %4458 = vmatpush1.msra.mxu0 0.0
    %4459 = vmatprep.subr.mxu0 0.0
    %4460 = vmatpush1.msra.mxu0 0.0
    %4461 = vmatprep.subr.mxu0 0.0
    %4462 = vmatpush1.msra.mxu0 0.0
    %4463 = vmatprep.subr.mxu0 0.0
    %4464 = vmatpush1.msra.mxu0 0.0
    %4465 = vmatprep.subr.mxu0 0.0
    %4466 = vmatpush1.msra.mxu0 0.0
    %4467 = vmatprep.subr.mxu0 0.0
    %4468 = vmatpush1.msra.mxu0 0.0
    %4469 = vmatprep.subr.mxu0 0.0
    %4470 = vmatpush1.msra.mxu0 0.0
    %4471 = vmatprep.subr.mxu0 0.0
    %4472 = vmatpush1.msra.mxu0 0.0
    %4473 = vmatprep.subr.mxu0 0.0
    %4474 = vmatpush1.msra.mxu0 0.0
    %4475 = vmatprep.subr.mxu0 0.0
    %4476 = vmatpush1.msra.mxu0 0.0
    %4477 = vmatprep.subr.mxu0 0.0
    %4478 = vmatpush1.msra.mxu0 0.0
    %4479 = vmatprep.subr.mxu0 0.0
    %4480 = vmatpush1.msra.mxu0 0.0
    %4481 = vmatprep.subr.mxu0 0.0
    %4482 = vmatpush1.msra.mxu0 0.0
    %4483 = vmatprep.subr.mxu0 0.0
    %4484 = vmatpush1.msra.mxu0 0.0
    %4485 = vmatprep.subr.mxu0 0.0
    %4486 = vmatpush1.msra.mxu0 0.0
    %4487 = vmatprep.subr.mxu0 0.0
    %4488 = vmatpush1.msra.mxu0 0.0
    %4489 = vmatprep.subr.mxu0 0.0
    %4490 = vmatpush1.msra.mxu0 0.0
    %4491 = vmatprep.subr.mxu0 0.0
    %4492 = vmatpush1.msra.mxu0 0.0
    %4493 = vmatprep.subr.mxu0 0.0
    %4494 = vmatpush1.msra.mxu0 0.0
    %4495 = vmatprep.subr.mxu0 0.0
    %4496 = vmatpush1.msra.mxu0 0.0
    %4497 = vmatprep.subr.mxu0 0.0
    %4498 = vmatpush1.msra.mxu0 0.0
    %4499 = vmatprep.subr.mxu0 0.0
    %4500 = vmatpush1.msra.mxu0 0.0
    %4501 = vmatprep.mubr.f32.mxu0 0.0
    %4502 = vmatmul.mubr.f32.gmra.mrb[0].mxu0 %v4278
    %v4503 = vpop.f32.mrb[0].mxu0
    %v4504 = vadd.f32 0.0, %v4503
    %v4505 = vpop.f32.mrb[0].mxu0
    %v4506 = vadd.f32 0.0, %v4505
    %4507 = vmatprep.mubr.f32.mxu0 0.0
    %4508 = vmatmul.mubr.f32.gmra.mrb[0].mxu0 %v4281
    %v4509 = vpop.f32.mrb[0].mxu0
    %v4510 = vadd.f32 0.0, %v4509
    %v4511 = vpop.f32.mrb[0].mxu0
    %v4512 = vadd.f32 0.0, %v4511
    %4513 = vdwg.mxu0
    %v4515 = vsel %vm154, %v4267, 0
    %v4518 = vsel %vm154, %v4268, 0
    %4520 = vmatprep.subr.mxu0 %v3935
    %4521 = vmatpush1.msra.mxu0 %v3933
    %4522 = vmatprep.subr.mxu0 0.0
    %4523 = vmatpush1.msra.mxu0 0.0
    %4524 = vmatprep.subr.mxu0 0.0
    %4525 = vmatpush1.msra.mxu0 0.0
    %4526 = vmatprep.subr.mxu0 0.0
    %4527 = vmatpush1.msra.mxu0 0.0
    %4528 = vmatprep.subr.mxu0 0.0
    %4529 = vmatpush1.msra.mxu0 0.0
    %4530 = vmatprep.subr.mxu0 0.0
    %4531 = vmatpush1.msra.mxu0 0.0
    %4532 = vmatprep.subr.mxu0 0.0
    %4533 = vmatpush1.msra.mxu0 0.0
    %4534 = vmatprep.subr.mxu0 0.0
    %4535 = vmatpush1.msra.mxu0 0.0
    %4536 = vmatprep.subr.mxu0 0.0
    %4537 = vmatpush1.msra.mxu0 0.0
    %4538 = vmatprep.subr.mxu0 0.0
    %4539 = vmatpush1.msra.mxu0 0.0
    %4540 = vmatprep.subr.mxu0 0.0
    %4541 = vmatpush1.msra.mxu0 0.0
    %4542 = vmatprep.subr.mxu0 0.0
    %4543 = vmatpush1.msra.mxu0 0.0
    %4544 = vmatprep.subr.mxu0 0.0
    %4545 = vmatpush1.msra.mxu0 0.0
    %4546 = vmatprep.subr.mxu0 0.0
    %4547 = vmatpush1.msra.mxu0 0.0
    %4548 = vmatprep.subr.mxu0 0.0
    %4549 = vmatpush1.msra.mxu0 0.0
    %4550 = vmatprep.subr.mxu0 0.0
    %4551 = vmatpush1.msra.mxu0 0.0
    %4552 = vmatprep.subr.mxu0 0.0
    %4553 = vmatpush1.msra.mxu0 0.0
    %4554 = vmatprep.subr.mxu0 0.0
    %4555 = vmatpush1.msra.mxu0 0.0
    %4556 = vmatprep.subr.mxu0 0.0
    %4557 = vmatpush1.msra.mxu0 0.0
    %4558 = vmatprep.subr.mxu0 0.0
    %4559 = vmatpush1.msra.mxu0 0.0
    %4560 = vmatprep.subr.mxu0 0.0
    %4561 = vmatpush1.msra.mxu0 0.0
    %4562 = vmatprep.subr.mxu0 0.0
    %4563 = vmatpush1.msra.mxu0 0.0
    %4564 = vmatprep.subr.mxu0 0.0
    %4565 = vmatpush1.msra.mxu0 0.0
    %4566 = vmatprep.subr.mxu0 0.0
    %4567 = vmatpush1.msra.mxu0 0.0
    %4568 = vmatprep.subr.mxu0 0.0
    %4569 = vmatpush1.msra.mxu0 0.0
    %4570 = vmatprep.subr.mxu0 0.0
    %4571 = vmatpush1.msra.mxu0 0.0
    %4572 = vmatprep.subr.mxu0 0.0
    %4573 = vmatpush1.msra.mxu0 0.0
    %4574 = vmatprep.subr.mxu0 0.0
    %4575 = vmatpush1.msra.mxu0 0.0
    %4576 = vmatprep.subr.mxu0 0.0
    %4577 = vmatpush1.msra.mxu0 0.0
    %4578 = vmatprep.subr.mxu0 0.0
    %4579 = vmatpush1.msra.mxu0 0.0
    %4580 = vmatprep.subr.mxu0 0.0
    %4581 = vmatpush1.msra.mxu0 0.0
    %4582 = vmatprep.subr.mxu0 0.0
    %4583 = vmatpush1.msra.mxu0 0.0
    %4584 = vmatprep.mubr.f32.mxu0 0.0
    %4585 = vmatmul.mubr.f32.gmra.mrb[0].mxu0 %v4515
    %v4586 = vpop.f32.mrb[0].mxu0
    %v4587 = vadd.f32 %v4350, %v4586
    %v4588 = vpop.f32.mrb[0].mxu0
    %v4589 = vadd.f32 %v4352, %v4588
    %4590 = vmatprep.mubr.f32.mxu0 0.0
    %4591 = vmatmul.mubr.f32.gmra.mrb[0].mxu0 %v4518
    %v4592 = vpop.f32.mrb[0].mxu0
    %v4593 = vadd.f32 %v4356, %v4592
    %v4594 = vpop.f32.mrb[0].mxu0
    %v4595 = vadd.f32 %v4358, %v4594
    %4596 = vdwg.mxu0
    %4597 = vmatprep.subr.mxu0 %v4099
    %4598 = vmatpush1.msra.mxu0 %v4097
    %4599 = vmatprep.subr.mxu0 0.0
    %4600 = vmatpush1.msra.mxu0 0.0
    %4601 = vmatprep.subr.mxu0 0.0
    %4602 = vmatpush1.msra.mxu0 0.0
    %4603 = vmatprep.subr.mxu0 0.0
    %4604 = vmatpush1.msra.mxu0 0.0
    %4605 = vmatprep.subr.mxu0 0.0
    %4606 = vmatpush1.msra.mxu0 0.0
    %4607 = vmatprep.subr.mxu0 0.0
    %4608 = vmatpush1.msra.mxu0 0.0
    %4609 = vmatprep.subr.mxu0 0.0
    %4610 = vmatpush1.msra.mxu0 0.0
    %4611 = vmatprep.subr.mxu0 0.0
    %4612 = vmatpush1.msra.mxu0 0.0
    %4613 = vmatprep.subr.mxu0 0.0
    %4614 = vmatpush1.msra.mxu0 0.0
    %4615 = vmatprep.subr.mxu0 0.0
    %4616 = vmatpush1.msra.mxu0 0.0
    %4617 = vmatprep.subr.mxu0 0.0
    %4618 = vmatpush1.msra.mxu0 0.0
    %4619 = vmatprep.subr.mxu0 0.0
    %4620 = vmatpush1.msra.mxu0 0.0
    %4621 = vmatprep.subr.mxu0 0.0
    %4622 = vmatpush1.msra.mxu0 0.0
    %4623 = vmatprep.subr.mxu0 0.0
    %4624 = vmatpush1.msra.mxu0 0.0
    %4625 = vmatprep.subr.mxu0 0.0
    %4626 = vmatpush1.msra.mxu0 0.0
    %4627 = vmatprep.subr.mxu0 0.0
    %4628 = vmatpush1.msra.mxu0 0.0
    %4629 = vmatprep.subr.mxu0 0.0
    %4630 = vmatpush1.msra.mxu0 0.0
    %4631 = vmatprep.subr.mxu0 0.0
    %4632 = vmatpush1.msra.mxu0 0.0
    %4633 = vmatprep.subr.mxu0 0.0
    %4634 = vmatpush1.msra.mxu0 0.0
    %4635 = vmatprep.subr.mxu0 0.0
    %4636 = vmatpush1.msra.mxu0 0.0
    %4637 = vmatprep.subr.mxu0 0.0
    %4638 = vmatpush1.msra.mxu0 0.0
    %4639 = vmatprep.subr.mxu0 0.0
    %4640 = vmatpush1.msra.mxu0 0.0
    %4641 = vmatprep.subr.mxu0 0.0
    %4642 = vmatpush1.msra.mxu0 0.0
    %4643 = vmatprep.subr.mxu0 0.0
    %4644 = vmatpush1.msra.mxu0 0.0
    %4645 = vmatprep.subr.mxu0 0.0
    %4646 = vmatpush1.msra.mxu0 0.0
    %4647 = vmatprep.subr.mxu0 0.0
    %4648 = vmatpush1.msra.mxu0 0.0
    %4649 = vmatprep.subr.mxu0 0.0
    %4650 = vmatpush1.msra.mxu0 0.0
    %4651 = vmatprep.subr.mxu0 0.0
    %4652 = vmatpush1.msra.mxu0 0.0
    %4653 = vmatprep.subr.mxu0 0.0
    %4654 = vmatpush1.msra.mxu0 0.0
    %4655 = vmatprep.subr.mxu0 0.0
    %4656 = vmatpush1.msra.mxu0 0.0
    %4657 = vmatprep.subr.mxu0 0.0
    %4658 = vmatpush1.msra.mxu0 0.0
    %4659 = vmatprep.subr.mxu0 0.0
    %4660 = vmatpush1.msra.mxu0 0.0
    %4661 = vmatprep.mubr.f32.mxu0 0.0
    %4662 = vmatmul.mubr.f32.gmra.mrb[0].mxu0 %v4515
    %v4663 = vpop.f32.mrb[0].mxu0
    %v4664 = vadd.f32 %v4427, %v4663
    %v4665 = vpop.f32.mrb[0].mxu0
    %v4666 = vadd.f32 %v4429, %v4665
    %4667 = vmatprep.mubr.f32.mxu0 0.0
    %4668 = vmatmul.mubr.f32.gmra.mrb[0].mxu0 %v4518
    %v4669 = vpop.f32.mrb[0].mxu0
    %v4670 = vadd.f32 %v4433, %v4669
    %v4671 = vpop.f32.mrb[0].mxu0
    %v4672 = vadd.f32 %v4435, %v4671
    %4673 = vdwg.mxu0
    %4674 = vmatprep.subr.mxu0 %v4263
    %4675 = vmatpush1.msra.mxu0 %v4261
    %4676 = vmatprep.subr.mxu0 0.0
    %4677 = vmatpush1.msra.mxu0 0.0
    %4678 = vmatprep.subr.mxu0 0.0
    %4679 = vmatpush1.msra.mxu0 0.0
    %4680 = vmatprep.subr.mxu0 0.0
    %4681 = vmatpush1.msra.mxu0 0.0
    %4682 = vmatprep.subr.mxu0 0.0
    %4683 = vmatpush1.msra.mxu0 0.0
    %4684 = vmatprep.subr.mxu0 0.0
    %4685 = vmatpush1.msra.mxu0 0.0
    %4686 = vmatprep.subr.mxu0 0.0
    %4687 = vmatpush1.msra.mxu0 0.0
    %4688 = vmatprep.subr.mxu0 0.0
    %4689 = vmatpush1.msra.mxu0 0.0
    %4690 = vmatprep.subr.mxu0 0.0
    %4691 = vmatpush1.msra.mxu0 0.0
    %4692 = vmatprep.subr.mxu0 0.0
    %4693 = vmatpush1.msra.mxu0 0.0
    %4694 = vmatprep.subr.mxu0 0.0
    %4695 = vmatpush1.msra.mxu0 0.0
    %4696 = vmatprep.subr.mxu0 0.0
    %4697 = vmatpush1.msra.mxu0 0.0
    %4698 = vmatprep.subr.mxu0 0.0
    %4699 = vmatpush1.msra.mxu0 0.0
    %4700 = vmatprep.subr.mxu0 0.0
    %4701 = vmatpush1.msra.mxu0 0.0
    %4702 = vmatprep.subr.mxu0 0.0
    %4703 = vmatpush1.msra.mxu0 0.0
    %4704 = vmatprep.subr.mxu0 0.0
    %4705 = vmatpush1.msra.mxu0 0.0
    %4706 = vmatprep.subr.mxu0 0.0
    %4707 = vmatpush1.msra.mxu0 0.0
    %4708 = vmatprep.subr.mxu0 0.0
    %4709 = vmatpush1.msra.mxu0 0.0
    %4710 = vmatprep.subr.mxu0 0.0
    %4711 = vmatpush1.msra.mxu0 0.0
    %4712 = vmatprep.subr.mxu0 0.0
    %4713 = vmatpush1.msra.mxu0 0.0
    %4714 = vmatprep.subr.mxu0 0.0
    %4715 = vmatpush1.msra.mxu0 0.0
    %4716 = vmatprep.subr.mxu0 0.0
    %4717 = vmatpush1.msra.mxu0 0.0
    %4718 = vmatprep.subr.mxu0 0.0
    %4719 = vmatpush1.msra.mxu0 0.0
    %4720 = vmatprep.subr.mxu0 0.0
    %4721 = vmatpush1.msra.mxu0 0.0
    %4722 = vmatprep.subr.mxu0 0.0
    %4723 = vmatpush1.msra.mxu0 0.0
    %4724 = vmatprep.subr.mxu0 0.0
    %4725 = vmatpush1.msra.mxu0 0.0
    %4726 = vmatprep.subr.mxu0 0.0
    %4727 = vmatpush1.msra.mxu0 0.0
    %4728 = vmatprep.subr.mxu0 0.0
    %4729 = vmatpush1.msra.mxu0 0.0
    %4730 = vmatprep.subr.mxu0 0.0
    %4731 = vmatpush1.msra.mxu0 0.0
    %4732 = vmatprep.subr.mxu0 0.0
    %4733 = vmatpush1.msra.mxu0 0.0
    %4734 = vmatprep.subr.mxu0 0.0
    %4735 = vmatpush1.msra.mxu0 0.0
    %4736 = vmatprep.subr.mxu0 0.0
    %4737 = vmatpush1.msra.mxu0 0.0
    %4738 = vmatprep.mubr.f32.mxu0 0.0
    %4739 = vmatmul.mubr.f32.gmra.mrb[0].mxu0 %v4515
    %v4740 = vpop.f32.mrb[0].mxu0
    %v4741 = vadd.f32 %v4504, %v4740
    %v4742 = vpop.f32.mrb[0].mxu0
    %v4743 = vadd.f32 %v4506, %v4742
    %4744 = vmatprep.mubr.f32.mxu0 0.0
    %4745 = vmatmul.mubr.f32.gmra.mrb[0].mxu0 %v4518
    %v4746 = vpop.f32.mrb[0].mxu0
    %v4747 = vadd.f32 %v4510, %v4746
    %v4748 = vpop.f32.mrb[0].mxu0
    %v4749 = vadd.f32 %v4512, %v4748
    %4750 = vdwg.mxu0
    %4751 = vst [vmem:[#allocation17] sm:$0xff] %v4587
    %4752 = vst [vmem:[#allocation17 + $0x8] sm:$0xff] %v4589
    %4753 = vst [vmem:[#allocation17 + $0x10] sm:$0xff] %v4664
    %4754 = vst [vmem:[#allocation17 + $0x18] sm:$0xff] %v4666
    %4755 = vst [vmem:[#allocation17 + $0x20] sm:$0xff] %v4741
    %4756 = vst [vmem:[#allocation17 + $0x28] sm:$0xff] %v4743
    %4757 = vst [vmem:[#allocation17 + $0x30] sm:$0xff] %v4593
    %4758 = vst [vmem:[#allocation17 + $0x38] sm:$0xff] %v4595
    %4759 = vst [vmem:[#allocation17 + $0x40] sm:$0xff] %v4670
    %4760 = vst [vmem:[#allocation17 + $0x48] sm:$0xff] %v4672
    %4761 = vst [vmem:[#allocation17 + $0x50] sm:$0xff] %v4747
    %4762 = vst [vmem:[#allocation17 + $0x58] sm:$0xff] %v4749
    // Predicated region
    $region90: #{tpu_custom_call.1} parent=1 // pred_check
      _
    $region91: #{tpu_custom_call.1} parent=1 // pred_check_branch
      %4764 = sbr.rel (0) target = $region93
    $region92: #{tpu_custom_call.1} parent=1 // pred_region
      %s4766 = ssub.s32 1536, 1536
      %4767 = vsyncadd [#allocation5], %s4766
      %s4768 = sshll.u32 [#allocation17], 4
      %s4769 = int_to_ptr.vmem [resolvable:$true] %s4768
      %4774 = dma.vmem_to_hbm [thread:$0]  %s4769, 1536, %s14, [#allocation5], 768, 768, 48
    $region93: #{tpu_custom_call.1} parent=1 // pred_fallthru
      _
    // Predicated region
    $region94: #{tpu_custom_call.1} parent=1 // pred_check
      _
    $region95: #{tpu_custom_call.1} parent=1 // pred_check_branch
      %4776 = sbr.rel (0) target = $region97
    $region96: #{tpu_custom_call.1} parent=1 // pred_region
      %4777 = dma.done [#allocation5], 1536
    $region97: #{tpu_custom_call.1} parent=1 // pred_fallthru
      _
    %4778 = vsyncpa [#allocation4], 1
    %4779 = vsyncpa [#allocation7], 1
    %4780 = vsyncpa [#allocation10], 1
    %4781 = vsyncpa [#allocation13], 1
    %4782 = vsyncpa [#allocation16], 1
    %4783 = vsyncpa [#allocation5], 1

</llo_original>
